<compile_context>
chip_gen: v7x
topology: tpu7x:2x2x1
jax: 0.10.0
libtpu: 0.0.40
codegen_flags: <defaults>
</compile_context>

<pallas_src>
import math
import functools

import jax
import jax.numpy as jnp
from jax.experimental import pallas as pl
from jax.experimental.pallas import tpu as pltpu


# ------------------------------- Pallas kernel --------------------------------

def local_module_kernel(x_ref, gvecs_ref, w_emb_ref, vecs_ref,
                        wq_ref, wk_ref, wv_ref, bq_ref, bk_ref, bv_ref,
                        wo_ref, w1_ref, b1_ref, w2_ref,
                        o_ref, *, num_heads, n_layers, eps_ln):
    # gvecs rows: 0 emb_bias, 1 final_ln gamma, 2 final_ln beta,
    #             3 readout w_target, 4 readout w_neighbor, 5 readout bias (bcast)
    # vecs[l] rows: 0 ln1_g, 1 ln1_b, 2 ln2_g, 3 ln2_b,
    #               4 bn_in_scale, 5 bn_in_shift, 6 bn_out_scale, 7 bn_out_shift,
    #               8 out_proj bias, 9 ffn second-linear bias
    f32, bf16 = jnp.float32, jnp.bfloat16
    L = x_ref.shape[1]
    D = w_emb_ref.shape[1]
    H = num_heads

    def ln(v, g, b):
        mu = jnp.mean(v, axis=-1, keepdims=True)
        var = jnp.mean((v - mu) ** 2, axis=-1, keepdims=True)
        return (v - mu) * jax.lax.rsqrt(var + eps_ln) * g + b

    def gvec(i):
        return gvecs_ref[i:i + 1, :]                              # (1, D) f32

    # ---------------- embedding: x @ W_emb + b ----------------
    x_in = x_ref[0].astype(bf16)                                  # (L, In)
    h = jnp.dot(x_in, w_emb_ref[...],
                preferred_element_type=f32) + gvec(0)             # (L, D) f32

    # ---------------- encoder layers (static unroll) ----------------
    for l in range(n_layers):
        vc = vecs_ref[l]                                          # (10, D) f32

        def lvec(i, _vc=vc):
            return _vc[i:i + 1, :]                                # (1, D)

        # ---- self-attention sublayer ----
        resid = h
        xn = ln(h, lvec(0), lvec(1))
        xb = jnp.broadcast_to(xn.astype(bf16)[None], (H, L, D))   # (H, L, D) bf16

        # per-head projections as head-batched matmuls (scale folded into Wq/bq)
        q = jnp.einsum('hld,hde->hle', xb, wq_ref[l],
                       preferred_element_type=f32) + bq_ref[l]    # (H, L, hd) f32
        k = jnp.einsum('hld,hde->hle', xb, wk_ref[l],
                       preferred_element_type=f32) + bk_ref[l]
        v = jnp.einsum('hld,hde->hle', xb, wv_ref[l],
                       preferred_element_type=f32) + bv_ref[l]

        s = jnp.einsum('hle,hme->hlm', q.astype(bf16), k.astype(bf16),
                       preferred_element_type=f32)                # (H, L, L)
        s = s - jnp.max(s, axis=-1, keepdims=True)
        p = jnp.exp(s)
        p = p * pl.reciprocal(jnp.sum(p, axis=-1, keepdims=True), approx=True)

        o_h = jnp.einsum('hlm,hme->hle', p.astype(bf16), v.astype(bf16),
                         preferred_element_type=f32)              # (H, L, hd)
        # per-head output projection, summed over heads == concat(...) @ Wo
        proj = jnp.einsum('hle,hed->hld', o_h.astype(bf16), wo_ref[l],
                          preferred_element_type=f32)             # (H, L, D)
        attn = jnp.sum(proj, axis=0) + lvec(8)                    # (L, D)
        h = resid + attn                                          # dropout = identity

        # ---- FFN sublayer (BatchNorm folded to scale/shift) ----
        resid = h
        xn = ln(h, lvec(2), lvec(3))
        xn = xn * lvec(4) + lvec(5)                               # bn_in (eval)
        h1 = jnp.dot(xn.astype(bf16), w1_ref[l],
                     preferred_element_type=f32) + b1_ref[l]      # (L, F)
        h1 = 0.5 * h1 * (1.0 + jax.lax.erf(h1 * (1.0 / math.sqrt(2.0))))  # exact GELU
        h2 = jnp.dot(h1.astype(bf16), w2_ref[l],
                     preferred_element_type=f32) + lvec(9)        # (L, D), +b2
        h2 = h2 * lvec(6) + lvec(7)                               # bn_out (eval)
        h = resid + h2

    # ---------------- final LayerNorm ----------------
    out = ln(h, gvec(1), gvec(2))                                 # (L, D)

    # ---------------- attention readout ----------------
    # score_i = [out_0 ; out_i] @ w_att + b = out_0.w_t + out_i.w_n + b,
    # softmax over i = 1..L-1, weighted sum of neighbors, plus node row.
    node = out[0:1, :]                                            # (1, D)
    t_term = jnp.sum(node * gvec(3), axis=-1, keepdims=True)      # (1, 1)
    b_att = gvecs_ref[5:6, 0:1]                                   # (1, 1)
    scores = jnp.sum(out * gvec(4), axis=-1, keepdims=True) + t_term + b_att  # (L, 1)
    row_id = jax.lax.broadcasted_iota(jnp.int32, (L, 1), 0)
    scores = jnp.where(row_id == 0, -jnp.inf, scores)             # exclude node row
    scores = scores - jnp.max(scores, axis=0, keepdims=True)
    att_w = jnp.exp(scores)                                       # row 0 -> 0
    att_w = att_w * pl.reciprocal(jnp.sum(att_w, axis=0, keepdims=True), approx=True)
    neigh = jnp.sum(out * att_w, axis=0, keepdims=True)           # (1, D)

    o_ref[0] = (node + neigh).astype(o_ref.dtype)


# ----------------------------- wrapper / params --------------------------------

def prepare_kernel_params(raw, *, num_heads, eps_bn=1e-5):
    """Fold BN(eval) + attention scale, split per-head weights, cast to bf16."""
    D = raw["w_emb"].shape[1]
    H = num_heads
    hd = D // H
    scale = 1.0 / math.sqrt(hd)
    bf16 = jnp.bfloat16

    gvecs = jnp.stack([
        raw["b_emb"], raw["fln_g"], raw["fln_b"],
        raw["w_att"][:D], raw["w_att"][D:],
        jnp.full((D,), raw["b_att"], jnp.float32),
    ], axis=0)

    vecs, wq, wk, wv, bq, bk, bv, wo, w1, b1, w2 = ([] for _ in range(11))
    for lp in raw["layers"]:
        bn_in_s = lp["bn_in_g"] * jax.lax.rsqrt(lp["bn_in_var"] + eps_bn)
        bn_in_b = lp["bn_in_b"] - lp["bn_in_mean"] * bn_in_s
        bn_out_s = lp["bn_out_g"] * jax.lax.rsqrt(lp["bn_out_var"] + eps_bn)
        bn_out_b = lp["bn_out_b"] - lp["bn_out_mean"] * bn_out_s
        vecs.append(jnp.stack([lp["ln1_g"], lp["ln1_b"], lp["ln2_g"], lp["ln2_b"],
                               bn_in_s, bn_in_b, bn_out_s, bn_out_b,
                               lp["bo"], lp["b2"]], axis=0))
        wq.append((lp["wq"] * scale).reshape(D, H, hd).transpose(1, 0, 2))
        wk.append(lp["wk"].reshape(D, H, hd).transpose(1, 0, 2))
        wv.append(lp["wv"].reshape(D, H, hd).transpose(1, 0, 2))
        bq.append((lp["bq"] * scale).reshape(H, 1, hd))
        bk.append(lp["bk"].reshape(H, 1, hd))
        bv.append(lp["bv"].reshape(H, 1, hd))
        wo.append(lp["wo"].reshape(H, hd, D))
        w1.append(lp["w1"])
        b1.append(lp["b1"].reshape(1, -1))
        w2.append(lp["w2"])

    st = lambda xs: jnp.stack(xs, axis=0)
    return dict(
        gvecs=gvecs,
        w_emb=raw["w_emb"].astype(bf16),
        vecs=st(vecs),
        wq=st(wq).astype(bf16), wk=st(wk).astype(bf16), wv=st(wv).astype(bf16),
        bq=st(bq), bk=st(bk), bv=st(bv),
        wo=st(wo).astype(bf16),
        w1=st(w1).astype(bf16), b1=st(b1), w2=st(w2).astype(bf16),
    )


def local_module_forward(x, kp, *, num_heads, eps_ln=1e-5):
    B, L, In = x.shape
    n_layers, _, D = kp["vecs"].shape
    F = kp["w1"].shape[-1]

    kernel = functools.partial(local_module_kernel, num_heads=num_heads,
                               n_layers=n_layers, eps_ln=eps_ln)

    def full_spec(arr):
        nd = arr.ndim
        if nd == 2:
            return pl.BlockSpec(arr.shape, lambda b: (0, 0))
        if nd == 3:
            return pl.BlockSpec(arr.shape, lambda b: (0, 0, 0))
        return pl.BlockSpec(arr.shape, lambda b: (0, 0, 0, 0))

    order = ["gvecs", "w_emb", "vecs", "wq", "wk", "wv", "bq", "bk", "bv",
             "wo", "w1", "b1", "w2"]
    args = [kp[k] for k in order]

    # cost estimate (per-batch matmul flops, softmax/GELU transcendentals)
    flops_layer = 8 * L * D * D + 4 * L * L * D + 4 * L * D * F
    flops = B * (2 * L * In * D + n_layers * flops_layer)
    transcendentals = B * (n_layers * (num_heads * L * L + L * F) + L)
    param_bytes = sum(int(a.size) * a.dtype.itemsize for a in args)
    bytes_accessed = int(x.size) * x.dtype.itemsize + param_bytes + B * D * 4

    # scoped-VMEM limit sized from the resident footprint (weights + activations),
    # clamped to a range that is safe on v5e/v6e (128 MiB) and v7x (64 MiB).
    resident = param_bytes + 16 * L * (In + 3 * D + F) + 16 * num_heads * L * L
    vmem_limit = int(min(48 * 1024 * 1024, max(32 * 1024 * 1024, 2 * resident)))

    out = pl.pallas_call(
        kernel,
        out_shape=jax.ShapeDtypeStruct((B, 1, D), jnp.float32),
        grid=(B,),
        in_specs=[pl.BlockSpec((1, L, In), lambda b: (b, 0, 0))] +
                 [full_spec(a) for a in args],
        out_specs=pl.BlockSpec((1, 1, D), lambda b: (b, 0, 0)),
        compiler_params=pltpu.CompilerParams(
            dimension_semantics=("parallel",),
            vmem_limit_bytes=vmem_limit),
        cost_estimate=pl.CostEstimate(flops=int(flops),
                                      transcendentals=int(transcendentals),
                                      bytes_accessed=int(bytes_accessed)),
    )(x, *args)
    return jnp.squeeze(out)   # torch .squeeze(): (B, D) for B > 1


# ------------------------------ pure-JAX reference -----------------------------

def reference(x, raw, *, num_heads, eps_ln=1e-5, eps_bn=1e-5):
    H = num_heads

    def ln(v, g, b):
        mu = v.mean(-1, keepdims=True)
        var = ((v - mu) ** 2).mean(-1, keepdims=True)
        return (v - mu) / jnp.sqrt(var + eps_ln) * g + b

    t = x @ raw["w_emb"] + raw["b_emb"]
    B, L, D = t.shape
    hd = D // H
    for lp in raw["layers"]:
        resid = t
        xn = ln(t, lp["ln1_g"], lp["ln1_b"])
        q = xn @ lp["wq"] + lp["bq"]
        k = xn @ lp["wk"] + lp["bk"]
        v = xn @ lp["wv"] + lp["bv"]
        qh = q.reshape(B, L, H, hd).transpose(0, 2, 1, 3)
        kh = k.reshape(B, L, H, hd).transpose(0, 2, 1, 3)
        vh = v.reshape(B, L, H, hd).transpose(0, 2, 1, 3)
        s = jnp.einsum("bhld,bhmd->bhlm", qh, kh) / math.sqrt(hd)
        a = jax.nn.softmax(s, axis=-1)
        o = jnp.einsum("bhlm,bhmd->bhld", a, vh).transpose(0, 2, 1, 3).reshape(B, L, D)
        o = o @ lp["wo"] + lp["bo"]
        t = resid + o

        resid = t
        xn = ln(t, lp["ln2_g"], lp["ln2_b"])
        xn = (xn - lp["bn_in_mean"]) / jnp.sqrt(lp["bn_in_var"] + eps_bn) \
            * lp["bn_in_g"] + lp["bn_in_b"]
        h1 = xn @ lp["w1"] + lp["b1"]
        h1 = 0.5 * h1 * (1.0 + jax.lax.erf(h1 / math.sqrt(2.0)))
        h2 = h1 @ lp["w2"] + lp["b2"]
        h2 = (h2 - lp["bn_out_mean"]) / jnp.sqrt(lp["bn_out_var"] + eps_bn) \
            * lp["bn_out_g"] + lp["bn_out_b"]
        t = resid + h2

    out = ln(t, raw["fln_g"], raw["fln_b"])
    node = out[:, 0:1, :]
    target = jnp.repeat(node, L - 1, axis=1)
    neigh = out[:, 1:, :]
    cat = jnp.concatenate([target, neigh], axis=2)
    att = cat @ raw["w_att"][:, None] + raw["b_att"]
    att = jax.nn.softmax(att, axis=1)
    neigh_sum = jnp.sum(neigh * att, axis=1, keepdims=True)
    return jnp.squeeze(node + neigh_sum)


# ------------------------------------ main -------------------------------------

if __name__ == "__main__":
    # LocalModule defaults (hidden_dim=64, ffn=2*hidden, num_heads=8, n_layers=1)
    # at small seq/batch: batched_data is (B, seq_len, input_dim).
    B, L, In = 2, 8, 16
    D, F, H, n_layers = 64, 128, 8, 1

    keys = iter(jax.random.split(jax.random.PRNGKey(0), 64))

    def rnd(shape, s=0.1):
        return s * jax.random.normal(next(keys), shape, jnp.float32)

    layers = []
    for _ in range(n_layers):
        layers.append(dict(
            ln1_g=1.0 + rnd((D,)), ln1_b=rnd((D,)),
            wq=rnd((D, D)), bq=rnd((D,), 0.05),
            wk=rnd((D, D)), bk=rnd((D,), 0.05),
            wv=rnd((D, D)), bv=rnd((D,), 0.05),
            wo=rnd((D, D)), bo=rnd((D,), 0.05),
            ln2_g=1.0 + rnd((D,)), ln2_b=rnd((D,)),
            bn_in_g=1.0 + rnd((D,)), bn_in_b=rnd((D,)),
            bn_in_mean=rnd((D,)), bn_in_var=1.0 + jnp.abs(rnd((D,))),
            bn_out_g=1.0 + rnd((D,)), bn_out_b=rnd((D,)),
            bn_out_mean=rnd((D,)), bn_out_var=1.0 + jnp.abs(rnd((D,))),
            w1=rnd((D, F)), b1=rnd((F,), 0.05),
            w2=rnd((F, D)), b2=rnd((D,), 0.05),
        ))
    raw = dict(
        w_emb=rnd((In, D)), b_emb=rnd((D,), 0.05),
        layers=layers,
        fln_g=1.0 + rnd((D,)), fln_b=rnd((D,)),
        w_att=rnd((2 * D,)), b_att=rnd((), 0.05),
    )

    x = jax.random.normal(next(keys), (B, L, In), jnp.float32)

    kp = prepare_kernel_params(raw, num_heads=H)
    out = local_module_forward(x, kp, num_heads=H)
    out = jax.block_until_ready(out)

    ref = reference(x, raw, num_heads=H)
    assert out.shape == (B, D), out.shape
    err = jnp.max(jnp.abs(out - ref))
    # bf16 matmul operands (f32 accumulation) -> slightly relaxed tolerance.
    assert jnp.allclose(out, ref, atol=5e-2, rtol=5e-2), f"max abs err {err}"

    print("KERNEL_OK")
</pallas_src>

<mosaic_0001>
module attributes {stable_mosaic.version = 11 : i64} {
  func.func @local_module_kernel(%arg0: i32, %arg1: memref<1x8x16xf32, #tpu.memory_space<vmem>>, %arg2: memref<6x64xf32, #tpu.memory_space<vmem>>, %arg3: memref<16x64xbf16, #tpu.memory_space<vmem>>, %arg4: memref<1x10x64xf32, #tpu.memory_space<vmem>>, %arg5: memref<1x8x64x8xbf16, #tpu.memory_space<vmem>>, %arg6: memref<1x8x64x8xbf16, #tpu.memory_space<vmem>>, %arg7: memref<1x8x64x8xbf16, #tpu.memory_space<vmem>>, %arg8: memref<1x8x1x8xf32, #tpu.memory_space<vmem>>, %arg9: memref<1x8x1x8xf32, #tpu.memory_space<vmem>>, %arg10: memref<1x8x1x8xf32, #tpu.memory_space<vmem>>, %arg11: memref<1x8x8x64xbf16, #tpu.memory_space<vmem>>, %arg12: memref<1x64x128xbf16, #tpu.memory_space<vmem>>, %arg13: memref<1x1x128xf32, #tpu.memory_space<vmem>>, %arg14: memref<1x128x64xbf16, #tpu.memory_space<vmem>>, %arg15: memref<1x1x64xf32, #tpu.memory_space<vmem>>) attributes {dimension_semantics = [#tpu.dimension_semantics<parallel>], iteration_bounds = array<i64: 2>, scalar_prefetch = 0 : i64, scratch_operands = 0 : i64, tpu.core_type = #tpu.core_type<tc>, window_params = [{transform_indices = @transform_0, window_bounds = array<i64: 1, 8, 16>}, {pipeline_mode = #tpu.pipeline_mode<synchronous>, transform_indices = @transform_1, window_bounds = array<i64: 6, 64>}, {pipeline_mode = #tpu.pipeline_mode<synchronous>, transform_indices = @transform_2, window_bounds = array<i64: 16, 64>}, {pipeline_mode = #tpu.pipeline_mode<synchronous>, transform_indices = @transform_3, window_bounds = array<i64: 1, 10, 64>}, {pipeline_mode = #tpu.pipeline_mode<synchronous>, transform_indices = @transform_4, window_bounds = array<i64: 1, 8, 64, 8>}, {pipeline_mode = #tpu.pipeline_mode<synchronous>, transform_indices = @transform_5, window_bounds = array<i64: 1, 8, 64, 8>}, {pipeline_mode = #tpu.pipeline_mode<synchronous>, transform_indices = @transform_6, window_bounds = array<i64: 1, 8, 64, 8>}, {pipeline_mode = #tpu.pipeline_mode<synchronous>, transform_indices = @transform_7, window_bounds = array<i64: 1, 8, 1, 8>}, {pipeline_mode = #tpu.pipeline_mode<synchronous>, transform_indices = @transform_8, window_bounds = array<i64: 1, 8, 1, 8>}, {pipeline_mode = #tpu.pipeline_mode<synchronous>, transform_indices = @transform_9, window_bounds = array<i64: 1, 8, 1, 8>}, {pipeline_mode = #tpu.pipeline_mode<synchronous>, transform_indices = @transform_10, window_bounds = array<i64: 1, 8, 8, 64>}, {pipeline_mode = #tpu.pipeline_mode<synchronous>, transform_indices = @transform_11, window_bounds = array<i64: 1, 64, 128>}, {pipeline_mode = #tpu.pipeline_mode<synchronous>, transform_indices = @transform_12, window_bounds = array<i64: 1, 1, 128>}, {pipeline_mode = #tpu.pipeline_mode<synchronous>, transform_indices = @transform_13, window_bounds = array<i64: 1, 128, 64>}, {transform_indices = @transform_14, window_bounds = array<i64: 1, 1, 64>}]} {
    %c0 = arith.constant 0 : index
    %c0_0 = arith.constant 0 : index
    %c0_1 = arith.constant 0 : index
    %0 = vector.load %arg1[%c0, %c0_0, %c0_1] : memref<1x8x16xf32, #tpu.memory_space<vmem>>, vector<1x8x16xf32>
    %1 = vector.shape_cast %0 : vector<1x8x16xf32> to vector<8x16xf32>
    %2 = arith.truncf %1 : vector<8x16xf32> to vector<8x16xbf16>
    %c0_2 = arith.constant 0 : index
    %c0_3 = arith.constant 0 : index
    %3 = vector.load %arg3[%c0_2, %c0_3] : memref<16x64xbf16, #tpu.memory_space<vmem>>, vector<16x64xbf16>
    %cst = arith.constant dense<0.000000e+00> : vector<8x64xf32>
    %4 = tpu.matmul %2, %3, %cst {dimension_numbers = #tpu.dot_dimension_numbers<[1], [0], [0], [1], [0, 0, 1, 1], [], []>} : vector<8x16xbf16>, vector<16x64xbf16>, vector<8x64xf32> -> vector<8x64xf32>
    %c0_4 = arith.constant 0 : index
    %c0_5 = arith.constant 0 : index
    %5 = vector.load %arg2[%c0_4, %c0_5] : memref<6x64xf32, #tpu.memory_space<vmem>>, vector<1x64xf32>
    %6 = vector.broadcast %5 : vector<1x64xf32> to vector<8x64xf32>
    %7 = arith.addf %4, %6 : vector<8x64xf32>
    %c0_6 = arith.constant 0 : index
    %c0_7 = arith.constant 0 : index
    %c0_8 = arith.constant 0 : index
    %8 = vector.load %arg4[%c0_6, %c0_7, %c0_8] : memref<1x10x64xf32, #tpu.memory_space<vmem>>, vector<1x10x64xf32>
    %9 = vector.shape_cast %8 : vector<1x10x64xf32> to vector<10x64xf32>
    %10 = vector.extract_strided_slice %9 {offsets = [0, 0], sizes = [1, 64], strides = [1, 1]} : vector<10x64xf32> to vector<1x64xf32>
    %11 = vector.extract_strided_slice %9 {offsets = [1, 0], sizes = [1, 64], strides = [1, 1]} : vector<10x64xf32> to vector<1x64xf32>
    %cst_9 = arith.constant dense<0.000000e+00> : vector<8xf32>
    %12 = vector.multi_reduction <add>, %7, %cst_9 [1] : vector<8x64xf32> to vector<8xf32>
    %13 = vector.shape_cast %12 : vector<8xf32> to vector<8x1xf32>
    %cst_10 = arith.constant 6.400000e+01 : f32
    %14 = vector.broadcast %cst_10 : f32 to vector<8x1xf32>
    %15 = arith.divf %13, %14 : vector<8x1xf32>
    %16 = vector.broadcast %15 : vector<8x1xf32> to vector<8x64xf32>
    %17 = arith.subf %7, %16 : vector<8x64xf32>
    %18 = arith.mulf %17, %17 : vector<8x64xf32>
    %cst_11 = arith.constant dense<0.000000e+00> : vector<8xf32>
    %19 = vector.multi_reduction <add>, %18, %cst_11 [1] : vector<8x64xf32> to vector<8xf32>
    %20 = vector.shape_cast %19 : vector<8xf32> to vector<8x1xf32>
    %cst_12 = arith.constant 6.400000e+01 : f32
    %21 = vector.broadcast %cst_12 : f32 to vector<8x1xf32>
    %22 = arith.divf %20, %21 : vector<8x1xf32>
    %23 = vector.broadcast %15 : vector<8x1xf32> to vector<8x64xf32>
    %24 = arith.subf %7, %23 : vector<8x64xf32>
    %cst_13 = arith.constant 9.99999974E-6 : f32
    %25 = vector.broadcast %cst_13 : f32 to vector<8x1xf32>
    %26 = arith.addf %22, %25 : vector<8x1xf32>
    %27 = math.rsqrt %26 : vector<8x1xf32>
    %28 = vector.broadcast %27 : vector<8x1xf32> to vector<8x64xf32>
    %29 = arith.mulf %24, %28 : vector<8x64xf32>
    %30 = vector.broadcast %10 : vector<1x64xf32> to vector<8x64xf32>
    %31 = arith.mulf %29, %30 : vector<8x64xf32>
    %32 = vector.broadcast %11 : vector<1x64xf32> to vector<8x64xf32>
    %33 = arith.addf %31, %32 : vector<8x64xf32>
    %34 = arith.truncf %33 : vector<8x64xf32> to vector<8x64xbf16>
    %35 = vector.shape_cast %34 : vector<8x64xbf16> to vector<1x8x64xbf16>
    %36 = vector.shape_cast %35 : vector<1x8x64xbf16> to vector<1x8x64xbf16>
    %37 = vector.broadcast %36 : vector<1x8x64xbf16> to vector<8x8x64xbf16>
    %c0_14 = arith.constant 0 : index
    %c0_15 = arith.constant 0 : index
    %c0_16 = arith.constant 0 : index
    %c0_17 = arith.constant 0 : index
    %38 = vector.load %arg5[%c0_14, %c0_15, %c0_16, %c0_17] : memref<1x8x64x8xbf16, #tpu.memory_space<vmem>>, vector<1x8x64x8xbf16>
    %39 = vector.shape_cast %38 : vector<1x8x64x8xbf16> to vector<8x64x8xbf16>
    "tpu.trace_start"() <{level = 10 : i32, message = "hld,hde->hle"}> : () -> ()
    %cst_18 = arith.constant dense<0.000000e+00> : vector<8x8x8xf32>
    %40 = tpu.matmul %37, %39, %cst_18 {dimension_numbers = #tpu.dot_dimension_numbers<[2], [1], [1], [2], [0, 0, 0, 1, 1, 2], [0], [0]>} : vector<8x8x64xbf16>, vector<8x64x8xbf16>, vector<8x8x8xf32> -> vector<8x8x8xf32>
    "tpu.trace_stop"() : () -> ()
    %c0_19 = arith.constant 0 : index
    %c0_20 = arith.constant 0 : index
    %c0_21 = arith.constant 0 : index
    %c0_22 = arith.constant 0 : index
    %41 = vector.load %arg8[%c0_19, %c0_20, %c0_21, %c0_22] : memref<1x8x1x8xf32, #tpu.memory_space<vmem>>, vector<1x8x1x8xf32>
    %42 = vector.shape_cast %41 : vector<1x8x1x8xf32> to vector<8x1x8xf32>
    %43 = vector.broadcast %42 : vector<8x1x8xf32> to vector<8x8x8xf32>
    %44 = arith.addf %40, %43 : vector<8x8x8xf32>
    %c0_23 = arith.constant 0 : index
    %c0_24 = arith.constant 0 : index
    %c0_25 = arith.constant 0 : index
    %c0_26 = arith.constant 0 : index
    %45 = vector.load %arg6[%c0_23, %c0_24, %c0_25, %c0_26] : memref<1x8x64x8xbf16, #tpu.memory_space<vmem>>, vector<1x8x64x8xbf16>
    %46 = vector.shape_cast %45 : vector<1x8x64x8xbf16> to vector<8x64x8xbf16>
    "tpu.trace_start"() <{level = 10 : i32, message = "hld,hde->hle"}> : () -> ()
    %cst_27 = arith.constant dense<0.000000e+00> : vector<8x8x8xf32>
    %47 = tpu.matmul %37, %46, %cst_27 {dimension_numbers = #tpu.dot_dimension_numbers<[2], [1], [1], [2], [0, 0, 0, 1, 1, 2], [0], [0]>} : vector<8x8x64xbf16>, vector<8x64x8xbf16>, vector<8x8x8xf32> -> vector<8x8x8xf32>
    "tpu.trace_stop"() : () -> ()
    %c0_28 = arith.constant 0 : index
    %c0_29 = arith.constant 0 : index
    %c0_30 = arith.constant 0 : index
    %c0_31 = arith.constant 0 : index
    %48 = vector.load %arg9[%c0_28, %c0_29, %c0_30, %c0_31] : memref<1x8x1x8xf32, #tpu.memory_space<vmem>>, vector<1x8x1x8xf32>
    %49 = vector.shape_cast %48 : vector<1x8x1x8xf32> to vector<8x1x8xf32>
    %50 = vector.broadcast %49 : vector<8x1x8xf32> to vector<8x8x8xf32>
    %51 = arith.addf %47, %50 : vector<8x8x8xf32>
    %c0_32 = arith.constant 0 : index
    %c0_33 = arith.constant 0 : index
    %c0_34 = arith.constant 0 : index
    %c0_35 = arith.constant 0 : index
    %52 = vector.load %arg7[%c0_32, %c0_33, %c0_34, %c0_35] : memref<1x8x64x8xbf16, #tpu.memory_space<vmem>>, vector<1x8x64x8xbf16>
    %53 = vector.shape_cast %52 : vector<1x8x64x8xbf16> to vector<8x64x8xbf16>
    "tpu.trace_start"() <{level = 10 : i32, message = "hld,hde->hle"}> : () -> ()
    %cst_36 = arith.constant dense<0.000000e+00> : vector<8x8x8xf32>
    %54 = tpu.matmul %37, %53, %cst_36 {dimension_numbers = #tpu.dot_dimension_numbers<[2], [1], [1], [2], [0, 0, 0, 1, 1, 2], [0], [0]>} : vector<8x8x64xbf16>, vector<8x64x8xbf16>, vector<8x8x8xf32> -> vector<8x8x8xf32>
    "tpu.trace_stop"() : () -> ()
    %c0_37 = arith.constant 0 : index
    %c0_38 = arith.constant 0 : index
    %c0_39 = arith.constant 0 : index
    %c0_40 = arith.constant 0 : index
    %55 = vector.load %arg10[%c0_37, %c0_38, %c0_39, %c0_40] : memref<1x8x1x8xf32, #tpu.memory_space<vmem>>, vector<1x8x1x8xf32>
    %56 = vector.shape_cast %55 : vector<1x8x1x8xf32> to vector<8x1x8xf32>
    %57 = vector.broadcast %56 : vector<8x1x8xf32> to vector<8x8x8xf32>
    %58 = arith.addf %54, %57 : vector<8x8x8xf32>
    %59 = arith.truncf %44 : vector<8x8x8xf32> to vector<8x8x8xbf16>
    %60 = arith.truncf %51 : vector<8x8x8xf32> to vector<8x8x8xbf16>
    "tpu.trace_start"() <{level = 10 : i32, message = "hle,hme->hlm"}> : () -> ()
    %cst_41 = arith.constant dense<0.000000e+00> : vector<8x8x8xf32>
    %61 = tpu.matmul %59, %60, %cst_41 {dimension_numbers = #tpu.dot_dimension_numbers<[2], [2], [1], [1], [0, 0, 0, 1, 1, 1], [0], [0]>} : vector<8x8x8xbf16>, vector<8x8x8xbf16>, vector<8x8x8xf32> -> vector<8x8x8xf32>
    "tpu.trace_stop"() : () -> ()
    %cst_42 = arith.constant dense<0xFF800000> : vector<8x8xf32>
    %62 = vector.multi_reduction <maximumf>, %61, %cst_42 [2] : vector<8x8x8xf32> to vector<8x8xf32>
    %63 = vector.shape_cast %62 : vector<8x8xf32> to vector<8x8x1xf32>
    %64 = vector.broadcast %63 : vector<8x8x1xf32> to vector<8x8x8xf32>
    %65 = arith.subf %61, %64 : vector<8x8x8xf32>
    %66 = math.exp %65 : vector<8x8x8xf32>
    %cst_43 = arith.constant dense<0.000000e+00> : vector<8x8xf32>
    %67 = vector.multi_reduction <add>, %66, %cst_43 [2] : vector<8x8x8xf32> to vector<8x8xf32>
    %68 = vector.shape_cast %67 : vector<8x8xf32> to vector<8x8x1xf32>
    %69 = tpu.reciprocal %68 {approx = true} : vector<8x8x1xf32> -> vector<8x8x1xf32>
    %70 = vector.broadcast %69 : vector<8x8x1xf32> to vector<8x8x8xf32>
    %71 = arith.mulf %66, %70 : vector<8x8x8xf32>
    %72 = arith.truncf %71 : vector<8x8x8xf32> to vector<8x8x8xbf16>
    %73 = arith.truncf %58 : vector<8x8x8xf32> to vector<8x8x8xbf16>
    "tpu.trace_start"() <{level = 10 : i32, message = "hlm,hme->hle"}> : () -> ()
    %cst_44 = arith.constant dense<0.000000e+00> : vector<8x8x8xf32>
    %74 = tpu.matmul %72, %73, %cst_44 {dimension_numbers = #tpu.dot_dimension_numbers<[2], [1], [1], [2], [0, 0, 0, 1, 1, 2], [0], [0]>} : vector<8x8x8xbf16>, vector<8x8x8xbf16>, vector<8x8x8xf32> -> vector<8x8x8xf32>
    "tpu.trace_stop"() : () -> ()
    %75 = arith.truncf %74 : vector<8x8x8xf32> to vector<8x8x8xbf16>
    %c0_45 = arith.constant 0 : index
    %c0_46 = arith.constant 0 : index
    %c0_47 = arith.constant 0 : index
    %c0_48 = arith.constant 0 : index
    %76 = vector.load %arg11[%c0_45, %c0_46, %c0_47, %c0_48] : memref<1x8x8x64xbf16, #tpu.memory_space<vmem>>, vector<1x8x8x64xbf16>
    %77 = vector.shape_cast %76 : vector<1x8x8x64xbf16> to vector<8x8x64xbf16>
    "tpu.trace_start"() <{level = 10 : i32, message = "hle,hed->hld"}> : () -> ()
    %cst_49 = arith.constant dense<0.000000e+00> : vector<8x8x64xf32>
    %78 = tpu.matmul %75, %77, %cst_49 {dimension_numbers = #tpu.dot_dimension_numbers<[2], [1], [1], [2], [0, 0, 0, 1, 1, 2], [0], [0]>} : vector<8x8x8xbf16>, vector<8x8x64xbf16>, vector<8x8x64xf32> -> vector<8x8x64xf32>
    "tpu.trace_stop"() : () -> ()
    %cst_50 = arith.constant dense<0.000000e+00> : vector<8x64xf32>
    %79 = vector.multi_reduction <add>, %78, %cst_50 [0] : vector<8x8x64xf32> to vector<8x64xf32>
    %80 = vector.extract_strided_slice %9 {offsets = [8, 0], sizes = [1, 64], strides = [1, 1]} : vector<10x64xf32> to vector<1x64xf32>
    %81 = vector.broadcast %80 : vector<1x64xf32> to vector<8x64xf32>
    %82 = arith.addf %79, %81 : vector<8x64xf32>
    %83 = arith.addf %7, %82 : vector<8x64xf32>
    %84 = vector.extract_strided_slice %9 {offsets = [2, 0], sizes = [1, 64], strides = [1, 1]} : vector<10x64xf32> to vector<1x64xf32>
    %85 = vector.extract_strided_slice %9 {offsets = [3, 0], sizes = [1, 64], strides = [1, 1]} : vector<10x64xf32> to vector<1x64xf32>
    %cst_51 = arith.constant dense<0.000000e+00> : vector<8xf32>
    %86 = vector.multi_reduction <add>, %83, %cst_51 [1] : vector<8x64xf32> to vector<8xf32>
    %87 = vector.shape_cast %86 : vector<8xf32> to vector<8x1xf32>
    %cst_52 = arith.constant 6.400000e+01 : f32
    %88 = vector.broadcast %cst_52 : f32 to vector<8x1xf32>
    %89 = arith.divf %87, %88 : vector<8x1xf32>
    %90 = vector.broadcast %89 : vector<8x1xf32> to vector<8x64xf32>
    %91 = arith.subf %83, %90 : vector<8x64xf32>
    %92 = arith.mulf %91, %91 : vector<8x64xf32>
    %cst_53 = arith.constant dense<0.000000e+00> : vector<8xf32>
    %93 = vector.multi_reduction <add>, %92, %cst_53 [1] : vector<8x64xf32> to vector<8xf32>
    %94 = vector.shape_cast %93 : vector<8xf32> to vector<8x1xf32>
    %cst_54 = arith.constant 6.400000e+01 : f32
    %95 = vector.broadcast %cst_54 : f32 to vector<8x1xf32>
    %96 = arith.divf %94, %95 : vector<8x1xf32>
    %97 = vector.broadcast %89 : vector<8x1xf32> to vector<8x64xf32>
    %98 = arith.subf %83, %97 : vector<8x64xf32>
    %cst_55 = arith.constant 9.99999974E-6 : f32
    %99 = vector.broadcast %cst_55 : f32 to vector<8x1xf32>
    %100 = arith.addf %96, %99 : vector<8x1xf32>
    %101 = math.rsqrt %100 : vector<8x1xf32>
    %102 = vector.broadcast %101 : vector<8x1xf32> to vector<8x64xf32>
    %103 = arith.mulf %98, %102 : vector<8x64xf32>
    %104 = vector.broadcast %84 : vector<1x64xf32> to vector<8x64xf32>
    %105 = arith.mulf %103, %104 : vector<8x64xf32>
    %106 = vector.broadcast %85 : vector<1x64xf32> to vector<8x64xf32>
    %107 = arith.addf %105, %106 : vector<8x64xf32>
    %108 = vector.extract_strided_slice %9 {offsets = [4, 0], sizes = [1, 64], strides = [1, 1]} : vector<10x64xf32> to vector<1x64xf32>
    %109 = vector.broadcast %108 : vector<1x64xf32> to vector<8x64xf32>
    %110 = arith.mulf %107, %109 : vector<8x64xf32>
    %111 = vector.extract_strided_slice %9 {offsets = [5, 0], sizes = [1, 64], strides = [1, 1]} : vector<10x64xf32> to vector<1x64xf32>
    %112 = vector.broadcast %111 : vector<1x64xf32> to vector<8x64xf32>
    %113 = arith.addf %110, %112 : vector<8x64xf32>
    %114 = arith.truncf %113 : vector<8x64xf32> to vector<8x64xbf16>
    %c0_56 = arith.constant 0 : index
    %c0_57 = arith.constant 0 : index
    %c0_58 = arith.constant 0 : index
    %115 = vector.load %arg12[%c0_56, %c0_57, %c0_58] : memref<1x64x128xbf16, #tpu.memory_space<vmem>>, vector<1x64x128xbf16>
    %116 = vector.shape_cast %115 : vector<1x64x128xbf16> to vector<64x128xbf16>
    %cst_59 = arith.constant dense<0.000000e+00> : vector<8x128xf32>
    %117 = tpu.matmul %114, %116, %cst_59 {dimension_numbers = #tpu.dot_dimension_numbers<[1], [0], [0], [1], [0, 0, 1, 1], [], []>} : vector<8x64xbf16>, vector<64x128xbf16>, vector<8x128xf32> -> vector<8x128xf32>
    %c0_60 = arith.constant 0 : index
    %c0_61 = arith.constant 0 : index
    %c0_62 = arith.constant 0 : index
    %118 = vector.load %arg13[%c0_60, %c0_61, %c0_62] : memref<1x1x128xf32, #tpu.memory_space<vmem>>, vector<1x1x128xf32>
    %119 = vector.shape_cast %118 : vector<1x1x128xf32> to vector<1x128xf32>
    %120 = vector.broadcast %119 : vector<1x128xf32> to vector<8x128xf32>
    %121 = arith.addf %117, %120 : vector<8x128xf32>
    %cst_63 = arith.constant 5.000000e-01 : f32
    %122 = vector.broadcast %cst_63 : f32 to vector<8x128xf32>
    %123 = arith.mulf %122, %121 : vector<8x128xf32>
    %cst_64 = arith.constant 0.707106769 : f32
    %124 = vector.broadcast %cst_64 : f32 to vector<8x128xf32>
    %125 = arith.mulf %121, %124 : vector<8x128xf32>
    %126 = math.erf %125 : vector<8x128xf32>
    %cst_65 = arith.constant 1.000000e+00 : f32
    %127 = vector.broadcast %cst_65 : f32 to vector<8x128xf32>
    %128 = arith.addf %127, %126 : vector<8x128xf32>
    %129 = arith.mulf %123, %128 : vector<8x128xf32>
    %130 = arith.truncf %129 : vector<8x128xf32> to vector<8x128xbf16>
    %c0_66 = arith.constant 0 : index
    %c0_67 = arith.constant 0 : index
    %c0_68 = arith.constant 0 : index
    %131 = vector.load %arg14[%c0_66, %c0_67, %c0_68] : memref<1x128x64xbf16, #tpu.memory_space<vmem>>, vector<1x128x64xbf16>
    %132 = vector.shape_cast %131 : vector<1x128x64xbf16> to vector<128x64xbf16>
    %cst_69 = arith.constant dense<0.000000e+00> : vector<8x64xf32>
    %133 = tpu.matmul %130, %132, %cst_69 {dimension_numbers = #tpu.dot_dimension_numbers<[1], [0], [0], [1], [0, 0, 1, 1], [], []>} : vector<8x128xbf16>, vector<128x64xbf16>, vector<8x64xf32> -> vector<8x64xf32>
    %134 = vector.extract_strided_slice %9 {offsets = [9, 0], sizes = [1, 64], strides = [1, 1]} : vector<10x64xf32> to vector<1x64xf32>
    %135 = vector.broadcast %134 : vector<1x64xf32> to vector<8x64xf32>
    %136 = arith.addf %133, %135 : vector<8x64xf32>
    %137 = vector.extract_strided_slice %9 {offsets = [6, 0], sizes = [1, 64], strides = [1, 1]} : vector<10x64xf32> to vector<1x64xf32>
    %138 = vector.broadcast %137 : vector<1x64xf32> to vector<8x64xf32>
    %139 = arith.mulf %136, %138 : vector<8x64xf32>
    %140 = vector.extract_strided_slice %9 {offsets = [7, 0], sizes = [1, 64], strides = [1, 1]} : vector<10x64xf32> to vector<1x64xf32>
    %141 = vector.broadcast %140 : vector<1x64xf32> to vector<8x64xf32>
    %142 = arith.addf %139, %141 : vector<8x64xf32>
    %143 = arith.addf %83, %142 : vector<8x64xf32>
    %c1 = arith.constant 1 : index
    %c0_70 = arith.constant 0 : index
    %144 = vector.load %arg2[%c1, %c0_70] : memref<6x64xf32, #tpu.memory_space<vmem>>, vector<1x64xf32>
    %c2 = arith.constant 2 : index
    %c0_71 = arith.constant 0 : index
    %145 = vector.load %arg2[%c2, %c0_71] : memref<6x64xf32, #tpu.memory_space<vmem>>, vector<1x64xf32>
    %cst_72 = arith.constant dense<0.000000e+00> : vector<8xf32>
    %146 = vector.multi_reduction <add>, %143, %cst_72 [1] : vector<8x64xf32> to vector<8xf32>
    %147 = vector.shape_cast %146 : vector<8xf32> to vector<8x1xf32>
    %cst_73 = arith.constant 6.400000e+01 : f32
    %148 = vector.broadcast %cst_73 : f32 to vector<8x1xf32>
    %149 = arith.divf %147, %148 : vector<8x1xf32>
    %150 = vector.broadcast %149 : vector<8x1xf32> to vector<8x64xf32>
    %151 = arith.subf %143, %150 : vector<8x64xf32>
    %152 = arith.mulf %151, %151 : vector<8x64xf32>
    %cst_74 = arith.constant dense<0.000000e+00> : vector<8xf32>
    %153 = vector.multi_reduction <add>, %152, %cst_74 [1] : vector<8x64xf32> to vector<8xf32>
    %154 = vector.shape_cast %153 : vector<8xf32> to vector<8x1xf32>
    %cst_75 = arith.constant 6.400000e+01 : f32
    %155 = vector.broadcast %cst_75 : f32 to vector<8x1xf32>
    %156 = arith.divf %154, %155 : vector<8x1xf32>
    %157 = vector.broadcast %149 : vector<8x1xf32> to vector<8x64xf32>
    %158 = arith.subf %143, %157 : vector<8x64xf32>
    %cst_76 = arith.constant 9.99999974E-6 : f32
    %159 = vector.broadcast %cst_76 : f32 to vector<8x1xf32>
    %160 = arith.addf %156, %159 : vector<8x1xf32>
    %161 = math.rsqrt %160 : vector<8x1xf32>
    %162 = vector.broadcast %161 : vector<8x1xf32> to vector<8x64xf32>
    %163 = arith.mulf %158, %162 : vector<8x64xf32>
    %164 = vector.broadcast %144 : vector<1x64xf32> to vector<8x64xf32>
    %165 = arith.mulf %163, %164 : vector<8x64xf32>
    %166 = vector.broadcast %145 : vector<1x64xf32> to vector<8x64xf32>
    %167 = arith.addf %165, %166 : vector<8x64xf32>
    %168 = vector.extract_strided_slice %167 {offsets = [0, 0], sizes = [1, 64], strides = [1, 1]} : vector<8x64xf32> to vector<1x64xf32>
    %c3 = arith.constant 3 : index
    %c0_77 = arith.constant 0 : index
    %169 = vector.load %arg2[%c3, %c0_77] : memref<6x64xf32, #tpu.memory_space<vmem>>, vector<1x64xf32>
    %170 = arith.mulf %168, %169 : vector<1x64xf32>
    %cst_78 = arith.constant dense<0.000000e+00> : vector<1xf32>
    %171 = vector.multi_reduction <add>, %170, %cst_78 [1] : vector<1x64xf32> to vector<1xf32>
    %172 = vector.shape_cast %171 : vector<1xf32> to vector<1x1xf32>
    %c5 = arith.constant 5 : index
    %c0_79 = arith.constant 0 : index
    %173 = vector.load %arg2[%c5, %c0_79] : memref<6x64xf32, #tpu.memory_space<vmem>>, vector<1x1xf32>
    %c4 = arith.constant 4 : index
    %c0_80 = arith.constant 0 : index
    %174 = vector.load %arg2[%c4, %c0_80] : memref<6x64xf32, #tpu.memory_space<vmem>>, vector<1x64xf32>
    %175 = vector.broadcast %174 : vector<1x64xf32> to vector<8x64xf32>
    %176 = arith.mulf %167, %175 : vector<8x64xf32>
    %cst_81 = arith.constant dense<0.000000e+00> : vector<8xf32>
    %177 = vector.multi_reduction <add>, %176, %cst_81 [1] : vector<8x64xf32> to vector<8xf32>
    %178 = vector.shape_cast %177 : vector<8xf32> to vector<8x1xf32>
    %179 = vector.broadcast %172 : vector<1x1xf32> to vector<8x1xf32>
    %180 = arith.addf %178, %179 : vector<8x1xf32>
    %181 = vector.broadcast %173 : vector<1x1xf32> to vector<8x1xf32>
    %182 = arith.addf %180, %181 : vector<8x1xf32>
    %183 = tpu.iota {dimensions = array<i32: 0>} : vector<8x1xi32>
    %c0_i32 = arith.constant 0 : i32
    %184 = vector.broadcast %c0_i32 : i32 to vector<8x1xi32>
    %185 = arith.cmpi eq, %183, %184 : vector<8x1xi32>
    %cst_82 = arith.constant 0xFF800000 : f32
    %186 = vector.broadcast %cst_82 : f32 to vector<8x1xf32>
    %187 = arith.select %185, %186, %182 : vector<8x1xi1>, vector<8x1xf32>
    %cst_83 = arith.constant dense<0xFF800000> : vector<1xf32>
    %188 = vector.multi_reduction <maximumf>, %187, %cst_83 [0] : vector<8x1xf32> to vector<1xf32>
    %189 = vector.shape_cast %188 : vector<1xf32> to vector<1x1xf32>
    %190 = vector.broadcast %189 : vector<1x1xf32> to vector<8x1xf32>
    %191 = arith.subf %187, %190 : vector<8x1xf32>
    %192 = math.exp %191 : vector<8x1xf32>
    %cst_84 = arith.constant dense<0.000000e+00> : vector<1xf32>
    %193 = vector.multi_reduction <add>, %192, %cst_84 [0] : vector<8x1xf32> to vector<1xf32>
    %194 = vector.shape_cast %193 : vector<1xf32> to vector<1x1xf32>
    %195 = tpu.reciprocal %194 {approx = true} : vector<1x1xf32> -> vector<1x1xf32>
    %196 = vector.broadcast %195 : vector<1x1xf32> to vector<8x1xf32>
    %197 = arith.mulf %192, %196 : vector<8x1xf32>
    %198 = vector.broadcast %197 : vector<8x1xf32> to vector<8x64xf32>
    %199 = arith.mulf %167, %198 : vector<8x64xf32>
    %cst_85 = arith.constant dense<0.000000e+00> : vector<64xf32>
    %200 = vector.multi_reduction <add>, %199, %cst_85 [0] : vector<8x64xf32> to vector<64xf32>
    %201 = vector.shape_cast %200 : vector<64xf32> to vector<1x64xf32>
    %202 = arith.addf %168, %201 : vector<1x64xf32>
    %c0_86 = arith.constant 0 : index
    %c0_87 = arith.constant 0 : index
    %c0_88 = arith.constant 0 : index
    %203 = vector.load %arg15[%c0_86, %c0_87, %c0_88] : memref<1x1x64xf32, #tpu.memory_space<vmem>>, vector<1x1x64xf32>
    %204 = vector.shape_cast %203 : vector<1x1x64xf32> to vector<1x64xf32>
    %205 = vector.shape_cast %202 : vector<1x64xf32> to vector<1x1x64xf32>
    tpu.vector_store %arg15[%c0_86, %c0_87, %c0_88], %205 {strides = array<i32>} : memref<1x1x64xf32, #tpu.memory_space<vmem>>, vector<1x1x64xf32>,
    return
  }
  func.func @transform_0(%arg0: i32) -> (i32, i32, i32) {
    %c0_i32 = arith.constant 0 : i32
    %c0_i32_0 = arith.constant 0 : i32
    %c0_i32_1 = arith.constant 0 : i32
    return %arg0, %c0_i32, %c0_i32_0 : i32, i32, i32
  }
  func.func @transform_1(%arg0: i32) -> (i32, i32) {
    %c0_i32 = arith.constant 0 : i32
    %c0_i32_0 = arith.constant 0 : i32
    %c0_i32_1 = arith.constant 0 : i32
    return %c0_i32, %c0_i32_0 : i32, i32
  }
  func.func @transform_2(%arg0: i32) -> (i32, i32) {
    %c0_i32 = arith.constant 0 : i32
    %c0_i32_0 = arith.constant 0 : i32
    %c0_i32_1 = arith.constant 0 : i32
    return %c0_i32, %c0_i32_0 : i32, i32
  }
  func.func @transform_3(%arg0: i32) -> (i32, i32, i32) {
    %c0_i32 = arith.constant 0 : i32
    %c0_i32_0 = arith.constant 0 : i32
    %c0_i32_1 = arith.constant 0 : i32
    %c0_i32_2 = arith.constant 0 : i32
    return %c0_i32, %c0_i32_0, %c0_i32_1 : i32, i32, i32
  }
  func.func @transform_4(%arg0: i32) -> (i32, i32, i32, i32) {
    %c0_i32 = arith.constant 0 : i32
    %c0_i32_0 = arith.constant 0 : i32
    %c0_i32_1 = arith.constant 0 : i32
    %c0_i32_2 = arith.constant 0 : i32
    %c0_i32_3 = arith.constant 0 : i32
    return %c0_i32, %c0_i32_0, %c0_i32_1, %c0_i32_2 : i32, i32, i32, i32
  }
  func.func @transform_5(%arg0: i32) -> (i32, i32, i32, i32) {
    %c0_i32 = arith.constant 0 : i32
    %c0_i32_0 = arith.constant 0 : i32
    %c0_i32_1 = arith.constant 0 : i32
    %c0_i32_2 = arith.constant 0 : i32
    %c0_i32_3 = arith.constant 0 : i32
    return %c0_i32, %c0_i32_0, %c0_i32_1, %c0_i32_2 : i32, i32, i32, i32
  }
  func.func @transform_6(%arg0: i32) -> (i32, i32, i32, i32) {
    %c0_i32 = arith.constant 0 : i32
    %c0_i32_0 = arith.constant 0 : i32
    %c0_i32_1 = arith.constant 0 : i32
    %c0_i32_2 = arith.constant 0 : i32
    %c0_i32_3 = arith.constant 0 : i32
    return %c0_i32, %c0_i32_0, %c0_i32_1, %c0_i32_2 : i32, i32, i32, i32
  }
  func.func @transform_7(%arg0: i32) -> (i32, i32, i32, i32) {
    %c0_i32 = arith.constant 0 : i32
    %c0_i32_0 = arith.constant 0 : i32
    %c0_i32_1 = arith.constant 0 : i32
    %c0_i32_2 = arith.constant 0 : i32
    %c0_i32_3 = arith.constant 0 : i32
    return %c0_i32, %c0_i32_0, %c0_i32_1, %c0_i32_2 : i32, i32, i32, i32
  }
  func.func @transform_8(%arg0: i32) -> (i32, i32, i32, i32) {
    %c0_i32 = arith.constant 0 : i32
    %c0_i32_0 = arith.constant 0 : i32
    %c0_i32_1 = arith.constant 0 : i32
    %c0_i32_2 = arith.constant 0 : i32
    %c0_i32_3 = arith.constant 0 : i32
    return %c0_i32, %c0_i32_0, %c0_i32_1, %c0_i32_2 : i32, i32, i32, i32
  }
  func.func @transform_9(%arg0: i32) -> (i32, i32, i32, i32) {
    %c0_i32 = arith.constant 0 : i32
    %c0_i32_0 = arith.constant 0 : i32
    %c0_i32_1 = arith.constant 0 : i32
    %c0_i32_2 = arith.constant 0 : i32
    %c0_i32_3 = arith.constant 0 : i32
    return %c0_i32, %c0_i32_0, %c0_i32_1, %c0_i32_2 : i32, i32, i32, i32
  }
  func.func @transform_10(%arg0: i32) -> (i32, i32, i32, i32) {
    %c0_i32 = arith.constant 0 : i32
    %c0_i32_0 = arith.constant 0 : i32
    %c0_i32_1 = arith.constant 0 : i32
    %c0_i32_2 = arith.constant 0 : i32
    %c0_i32_3 = arith.constant 0 : i32
    return %c0_i32, %c0_i32_0, %c0_i32_1, %c0_i32_2 : i32, i32, i32, i32
  }
  func.func @transform_11(%arg0: i32) -> (i32, i32, i32) {
    %c0_i32 = arith.constant 0 : i32
    %c0_i32_0 = arith.constant 0 : i32
    %c0_i32_1 = arith.constant 0 : i32
    %c0_i32_2 = arith.constant 0 : i32
    return %c0_i32, %c0_i32_0, %c0_i32_1 : i32, i32, i32
  }
  func.func @transform_12(%arg0: i32) -> (i32, i32, i32) {
    %c0_i32 = arith.constant 0 : i32
    %c0_i32_0 = arith.constant 0 : i32
    %c0_i32_1 = arith.constant 0 : i32
    %c0_i32_2 = arith.constant 0 : i32
    return %c0_i32, %c0_i32_0, %c0_i32_1 : i32, i32, i32
  }
  func.func @transform_13(%arg0: i32) -> (i32, i32, i32) {
    %c0_i32 = arith.constant 0 : i32
    %c0_i32_0 = arith.constant 0 : i32
    %c0_i32_1 = arith.constant 0 : i32
    %c0_i32_2 = arith.constant 0 : i32
    return %c0_i32, %c0_i32_0, %c0_i32_1 : i32, i32, i32
  }
  func.func @transform_14(%arg0: i32) -> (i32, i32, i32) {
    %c0_i32 = arith.constant 0 : i32
    %c0_i32_0 = arith.constant 0 : i32
    %c0_i32_1 = arith.constant 0 : i32
    return %arg0, %c0_i32, %c0_i32_0 : i32, i32, i32
  }
}

</mosaic_0001>

<llo_original>
// kernel: tpu_custom_call.1
$region0: #{tpu_custom_call.1}
  #allocation0 [shape = 'u32[]', space=smem, size = 0x4, offset = 0x4, fixed_abs, tag = 'smem constant byte address 0x4 - core index']
  #allocation1 [shape = 'u32[144,128]{1,0:T(1,128)}', space=vmem, size = 0x12000, scoped, tag = 'internal scratch']
  %s0 = inlined_call_operand.vmem [shape: f32[2,8,16], index: 0, kind: input, shape index: {}]
  %s1 = inlined_call_operand.vmem [shape: f32[6,64], index: 1, kind: input, shape index: {}]
  %s2 = inlined_call_operand.vmem [shape: bf16[16,64], index: 2, kind: input, shape index: {}]
  %s3 = inlined_call_operand.vmem [shape: f32[1,10,64], index: 3, kind: input, shape index: {}]
  %s4 = inlined_call_operand.vmem [shape: bf16[1,8,64,8], index: 4, kind: input, shape index: {}]
  %s5 = inlined_call_operand.vmem [shape: bf16[1,8,64,8], index: 5, kind: input, shape index: {}]
  %s6 = inlined_call_operand.vmem [shape: bf16[1,8,64,8], index: 6, kind: input, shape index: {}]
  %s7 = inlined_call_operand.vmem [shape: f32[1,8,1,8], index: 7, kind: input, shape index: {}]
  %s8 = inlined_call_operand.vmem [shape: f32[1,8,1,8], index: 8, kind: input, shape index: {}]
  %s9 = inlined_call_operand.vmem [shape: f32[1,8,1,8], index: 9, kind: input, shape index: {}]
  %s10 = inlined_call_operand.vmem [shape: bf16[1,8,8,64], index: 10, kind: input, shape index: {}]
  %s11 = inlined_call_operand.vmem [shape: bf16[1,64,128], index: 11, kind: input, shape index: {}]
  %s12 = inlined_call_operand.vmem [shape: f32[1,1,128], index: 12, kind: input, shape index: {}]
  %s13 = inlined_call_operand.vmem [shape: bf16[1,128,64], index: 13, kind: input, shape index: {}]
  %s14 = inlined_call_operand.hbm [shape: f32[2,1,64], index: 14, kind: output, shape index: {}]
  %s15 = sld [smem:[#allocation0]]
  $region89: #{tpu_custom_call.1} parent=0
    _
  %s17 = ssub.s32 1, %s15
  %s18 = scalar_select 0, %s17, %s15
  $region1: #{tpu_custom_call.1} parent=0
    #allocation2 [shape = 'u8[1024]{0}', space=vmem, size = 0x400, scoped, tag = 'output window, operand 0']
    #allocation3 [shape = 's32[2]{0}', space=sflag, size = 0x8, scoped, tag = 'scoped memory for tpu_custom_call.1']
    %19 = vsyncpa [#allocation3], 0
    %s20 = scalar_lea.sflag [#allocation3], 1
    %21 = vsyncpa %s20, 0
    loop: start=0, step=1, limit=4
    $region2: #{tpu_custom_call.1} parent=1 // loop_pre_header
      _
    $region3: #{tpu_custom_call.1} parent=1 // loop_header
      %s23 = sphi 0, %s27
      %p24 = scmp.ge.s32.totalorder %s23, 4
      %s33 = sphi 0, %s35
      %s36 = sphi 0, %s33
      %s37 = sphi 0, %s36
      %s53 = sphi 0, %s37
      %s57 = sphi 0, %s57
      %s59 = sphi 0, %s57
      %s60 = sphi 0, %s59
      %s74 = sphi 0, %s60
      %s78 = sphi 0, %s78
      %s80 = sphi 0, %s78
      %s81 = sphi 0, %s80
      %s95 = sphi 0, %s81
      %s99 = sphi 0, %s99
      %s101 = sphi 0, %s99
      %s102 = sphi 0, %s101
      %s116 = sphi 0, %s102
      %s120 = sphi 0, %s120
      %s122 = sphi 0, %s120
      %s123 = sphi 0, %s122
      %s137 = sphi 0, %s123
      %s141 = sphi 0, %s141
      %s143 = sphi 0, %s141
      %s144 = sphi 0, %s143
      %s158 = sphi 0, %s144
      %s162 = sphi 0, %s162
      %s164 = sphi 0, %s162
      %s165 = sphi 0, %s164
      %s179 = sphi 0, %s165
      %s183 = sphi 0, %s183
      %s185 = sphi 0, %s183
      %s186 = sphi 0, %s185
      %s200 = sphi 0, %s186
      %s204 = sphi 0, %s204
      %s206 = sphi 0, %s204
      %s207 = sphi 0, %s206
      %s221 = sphi 0, %s207
      %s225 = sphi 0, %s225
      %s227 = sphi 0, %s225
      %s228 = sphi 0, %s227
      %s242 = sphi 0, %s228
      %s246 = sphi 0, %s246
      %s248 = sphi 0, %s246
      %s249 = sphi 0, %s248
      %s263 = sphi 0, %s249
      %s267 = sphi 0, %s267
      %s269 = sphi 0, %s267
      %s270 = sphi 0, %s269
      %s284 = sphi 0, %s270
      %s288 = sphi 0, %s288
      %s290 = sphi 0, %s288
      %s291 = sphi 0, %s290
      %s305 = sphi 0, %s291
      %s309 = sphi 0, %s309
      %s311 = sphi 0, %s309
      %s312 = sphi 0, %s311
      %s326 = sphi 0, %s312
      %s332 = sphi 0, %s334
      %s335 = sphi 0, %s332
      %s336 = sphi 0, %s335
      %s352 = sphi 0, %s336
    $region4: #{tpu_custom_call.1} parent=1 // loop_header_branch
      %26 = sbr.rel (%p24) target = $region8
    $region5: #{tpu_custom_call.1} parent=1 // loop_body
      %s28 = ssub.s32 %s23, 1
      %s29 = ssub.s32 %s23, 2
      %s30 = sadd.s32 %s23, 1
      %s31 = ssub.s32 %s23, %s30
      %p32 = scmp.eq.s32.totalorder %s31, 0
      %s34 = sadd.s32 %s33, 1
      %s35 = scalar_select %p32, %s33, %s34
      %p38 = pneg %p32
      %p39 = scmp.eq.s32.totalorder %s23, 1
      %p40 = por %p38, %p39
      %p41 = scmp.ne.s32.totalorder %s33, %s36
      %p42 = scmp.eq.s32.totalorder %s23, 0
      %p43 = por %p41, %p42
      %p44 = scmp.ne.s32.totalorder %s33, %s36
      %p45 = scmp.eq.s32.totalorder %s28, 1
      %p46 = por %p44, %p45
      %p47 = scmp.ne.s32.totalorder %s36, %s37
      %p48 = scmp.eq.s32.totalorder %s28, 0
      %p49 = por %p47, %p48
      %p50 = scmp.ne.s32.totalorder %s36, %s37
      %p51 = scmp.eq.s32.totalorder %s29, 1
      %p52 = por %p50, %p51
      %p54 = scmp.ne.s32.totalorder %s37, %s53
      %p55 = scmp.eq.s32.totalorder %s29, 0
      %p56 = por %p54, %p55
      %s58 = sadd.s32 %s57, 1
      %p61 = scmp.eq.s32.totalorder %s23, 1
      %p62 = scmp.ne.s32.totalorder %s57, %s59
      %p63 = scmp.eq.s32.totalorder %s23, 0
      %p64 = por %p62, %p63
      %p65 = scmp.ne.s32.totalorder %s57, %s59
      %p66 = scmp.eq.s32.totalorder %s28, 1
      %p67 = por %p65, %p66
      %p68 = scmp.ne.s32.totalorder %s59, %s60
      %p69 = scmp.eq.s32.totalorder %s28, 0
      %p70 = por %p68, %p69
      %p71 = scmp.ne.s32.totalorder %s59, %s60
      %p72 = scmp.eq.s32.totalorder %s29, 1
      %p73 = por %p71, %p72
      %p75 = scmp.ne.s32.totalorder %s60, %s74
      %p76 = scmp.eq.s32.totalorder %s29, 0
      %p77 = por %p75, %p76
      %s79 = sadd.s32 %s78, 1
      %p82 = scmp.eq.s32.totalorder %s23, 1
      %p83 = scmp.ne.s32.totalorder %s78, %s80
      %p84 = scmp.eq.s32.totalorder %s23, 0
      %p85 = por %p83, %p84
      %p86 = scmp.ne.s32.totalorder %s78, %s80
      %p87 = scmp.eq.s32.totalorder %s28, 1
      %p88 = por %p86, %p87
      %p89 = scmp.ne.s32.totalorder %s80, %s81
      %p90 = scmp.eq.s32.totalorder %s28, 0
      %p91 = por %p89, %p90
      %p92 = scmp.ne.s32.totalorder %s80, %s81
      %p93 = scmp.eq.s32.totalorder %s29, 1
      %p94 = por %p92, %p93
      %p96 = scmp.ne.s32.totalorder %s81, %s95
      %p97 = scmp.eq.s32.totalorder %s29, 0
      %p98 = por %p96, %p97
      %s100 = sadd.s32 %s99, 1
      %p103 = scmp.eq.s32.totalorder %s23, 1
      %p104 = scmp.ne.s32.totalorder %s99, %s101
      %p105 = scmp.eq.s32.totalorder %s23, 0
      %p106 = por %p104, %p105
      %p107 = scmp.ne.s32.totalorder %s99, %s101
      %p108 = scmp.eq.s32.totalorder %s28, 1
      %p109 = por %p107, %p108
      %p110 = scmp.ne.s32.totalorder %s101, %s102
      %p111 = scmp.eq.s32.totalorder %s28, 0
      %p112 = por %p110, %p111
      %p113 = scmp.ne.s32.totalorder %s101, %s102
      %p114 = scmp.eq.s32.totalorder %s29, 1
      %p115 = por %p113, %p114
      %p117 = scmp.ne.s32.totalorder %s102, %s116
      %p118 = scmp.eq.s32.totalorder %s29, 0
      %p119 = por %p117, %p118
      %s121 = sadd.s32 %s120, 1
      %p124 = scmp.eq.s32.totalorder %s23, 1
      %p125 = scmp.ne.s32.totalorder %s120, %s122
      %p126 = scmp.eq.s32.totalorder %s23, 0
      %p127 = por %p125, %p126
      %p128 = scmp.ne.s32.totalorder %s120, %s122
      %p129 = scmp.eq.s32.totalorder %s28, 1
      %p130 = por %p128, %p129
      %p131 = scmp.ne.s32.totalorder %s122, %s123
      %p132 = scmp.eq.s32.totalorder %s28, 0
      %p133 = por %p131, %p132
      %p134 = scmp.ne.s32.totalorder %s122, %s123
      %p135 = scmp.eq.s32.totalorder %s29, 1
      %p136 = por %p134, %p135
      %p138 = scmp.ne.s32.totalorder %s123, %s137
      %p139 = scmp.eq.s32.totalorder %s29, 0
      %p140 = por %p138, %p139
      %s142 = sadd.s32 %s141, 1
      %p145 = scmp.eq.s32.totalorder %s23, 1
      %p146 = scmp.ne.s32.totalorder %s141, %s143
      %p147 = scmp.eq.s32.totalorder %s23, 0
      %p148 = por %p146, %p147
      %p149 = scmp.ne.s32.totalorder %s141, %s143
      %p150 = scmp.eq.s32.totalorder %s28, 1
      %p151 = por %p149, %p150
      %p152 = scmp.ne.s32.totalorder %s143, %s144
      %p153 = scmp.eq.s32.totalorder %s28, 0
      %p154 = por %p152, %p153
      %p155 = scmp.ne.s32.totalorder %s143, %s144
      %p156 = scmp.eq.s32.totalorder %s29, 1
      %p157 = por %p155, %p156
      %p159 = scmp.ne.s32.totalorder %s144, %s158
      %p160 = scmp.eq.s32.totalorder %s29, 0
      %p161 = por %p159, %p160
      %s163 = sadd.s32 %s162, 1
      %p166 = scmp.eq.s32.totalorder %s23, 1
      %p167 = scmp.ne.s32.totalorder %s162, %s164
      %p168 = scmp.eq.s32.totalorder %s23, 0
      %p169 = por %p167, %p168
      %p170 = scmp.ne.s32.totalorder %s162, %s164
      %p171 = scmp.eq.s32.totalorder %s28, 1
      %p172 = por %p170, %p171
      %p173 = scmp.ne.s32.totalorder %s164, %s165
      %p174 = scmp.eq.s32.totalorder %s28, 0
      %p175 = por %p173, %p174
      %p176 = scmp.ne.s32.totalorder %s164, %s165
      %p177 = scmp.eq.s32.totalorder %s29, 1
      %p178 = por %p176, %p177
      %p180 = scmp.ne.s32.totalorder %s165, %s179
      %p181 = scmp.eq.s32.totalorder %s29, 0
      %p182 = por %p180, %p181
      %s184 = sadd.s32 %s183, 1
      %p187 = scmp.eq.s32.totalorder %s23, 1
      %p188 = scmp.ne.s32.totalorder %s183, %s185
      %p189 = scmp.eq.s32.totalorder %s23, 0
      %p190 = por %p188, %p189
      %p191 = scmp.ne.s32.totalorder %s183, %s185
      %p192 = scmp.eq.s32.totalorder %s28, 1
      %p193 = por %p191, %p192
      %p194 = scmp.ne.s32.totalorder %s185, %s186
      %p195 = scmp.eq.s32.totalorder %s28, 0
      %p196 = por %p194, %p195
      %p197 = scmp.ne.s32.totalorder %s185, %s186
      %p198 = scmp.eq.s32.totalorder %s29, 1
      %p199 = por %p197, %p198
      %p201 = scmp.ne.s32.totalorder %s186, %s200
      %p202 = scmp.eq.s32.totalorder %s29, 0
      %p203 = por %p201, %p202
      %s205 = sadd.s32 %s204, 1
      %p208 = scmp.eq.s32.totalorder %s23, 1
      %p209 = scmp.ne.s32.totalorder %s204, %s206
      %p210 = scmp.eq.s32.totalorder %s23, 0
      %p211 = por %p209, %p210
      %p212 = scmp.ne.s32.totalorder %s204, %s206
      %p213 = scmp.eq.s32.totalorder %s28, 1
      %p214 = por %p212, %p213
      %p215 = scmp.ne.s32.totalorder %s206, %s207
      %p216 = scmp.eq.s32.totalorder %s28, 0
      %p217 = por %p215, %p216
      %p218 = scmp.ne.s32.totalorder %s206, %s207
      %p219 = scmp.eq.s32.totalorder %s29, 1
      %p220 = por %p218, %p219
      %p222 = scmp.ne.s32.totalorder %s207, %s221
      %p223 = scmp.eq.s32.totalorder %s29, 0
      %p224 = por %p222, %p223
      %s226 = sadd.s32 %s225, 1
      %p229 = scmp.eq.s32.totalorder %s23, 1
      %p230 = scmp.ne.s32.totalorder %s225, %s227
      %p231 = scmp.eq.s32.totalorder %s23, 0
      %p232 = por %p230, %p231
      %p233 = scmp.ne.s32.totalorder %s225, %s227
      %p234 = scmp.eq.s32.totalorder %s28, 1
      %p235 = por %p233, %p234
      %p236 = scmp.ne.s32.totalorder %s227, %s228
      %p237 = scmp.eq.s32.totalorder %s28, 0
      %p238 = por %p236, %p237
      %p239 = scmp.ne.s32.totalorder %s227, %s228
      %p240 = scmp.eq.s32.totalorder %s29, 1
      %p241 = por %p239, %p240
      %p243 = scmp.ne.s32.totalorder %s228, %s242
      %p244 = scmp.eq.s32.totalorder %s29, 0
      %p245 = por %p243, %p244
      %s247 = sadd.s32 %s246, 1
      %p250 = scmp.eq.s32.totalorder %s23, 1
      %p251 = scmp.ne.s32.totalorder %s246, %s248
      %p252 = scmp.eq.s32.totalorder %s23, 0
      %p253 = por %p251, %p252
      %p254 = scmp.ne.s32.totalorder %s246, %s248
      %p255 = scmp.eq.s32.totalorder %s28, 1
      %p256 = por %p254, %p255
      %p257 = scmp.ne.s32.totalorder %s248, %s249
      %p258 = scmp.eq.s32.totalorder %s28, 0
      %p259 = por %p257, %p258
      %p260 = scmp.ne.s32.totalorder %s248, %s249
      %p261 = scmp.eq.s32.totalorder %s29, 1
      %p262 = por %p260, %p261
      %p264 = scmp.ne.s32.totalorder %s249, %s263
      %p265 = scmp.eq.s32.totalorder %s29, 0
      %p266 = por %p264, %p265
      %s268 = sadd.s32 %s267, 1
      %p271 = scmp.eq.s32.totalorder %s23, 1
      %p272 = scmp.ne.s32.totalorder %s267, %s269
      %p273 = scmp.eq.s32.totalorder %s23, 0
      %p274 = por %p272, %p273
      %p275 = scmp.ne.s32.totalorder %s267, %s269
      %p276 = scmp.eq.s32.totalorder %s28, 1
      %p277 = por %p275, %p276
      %p278 = scmp.ne.s32.totalorder %s269, %s270
      %p279 = scmp.eq.s32.totalorder %s28, 0
      %p280 = por %p278, %p279
      %p281 = scmp.ne.s32.totalorder %s269, %s270
      %p282 = scmp.eq.s32.totalorder %s29, 1
      %p283 = por %p281, %p282
      %p285 = scmp.ne.s32.totalorder %s270, %s284
      %p286 = scmp.eq.s32.totalorder %s29, 0
      %p287 = por %p285, %p286
      %s289 = sadd.s32 %s288, 1
      %p292 = scmp.eq.s32.totalorder %s23, 1
      %p293 = scmp.ne.s32.totalorder %s288, %s290
      %p294 = scmp.eq.s32.totalorder %s23, 0
      %p295 = por %p293, %p294
      %p296 = scmp.ne.s32.totalorder %s288, %s290
      %p297 = scmp.eq.s32.totalorder %s28, 1
      %p298 = por %p296, %p297
      %p299 = scmp.ne.s32.totalorder %s290, %s291
      %p300 = scmp.eq.s32.totalorder %s28, 0
      %p301 = por %p299, %p300
      %p302 = scmp.ne.s32.totalorder %s290, %s291
      %p303 = scmp.eq.s32.totalorder %s29, 1
      %p304 = por %p302, %p303
      %p306 = scmp.ne.s32.totalorder %s291, %s305
      %p307 = scmp.eq.s32.totalorder %s29, 0
      %p308 = por %p306, %p307
      %s310 = sadd.s32 %s309, 1
      %p313 = scmp.eq.s32.totalorder %s23, 1
      %p314 = scmp.ne.s32.totalorder %s309, %s311
      %p315 = scmp.eq.s32.totalorder %s23, 0
      %p316 = por %p314, %p315
      %p317 = scmp.ne.s32.totalorder %s309, %s311
      %p318 = scmp.eq.s32.totalorder %s28, 1
      %p319 = por %p317, %p318
      %p320 = scmp.ne.s32.totalorder %s311, %s312
      %p321 = scmp.eq.s32.totalorder %s28, 0
      %p322 = por %p320, %p321
      %p323 = scmp.ne.s32.totalorder %s311, %s312
      %p324 = scmp.eq.s32.totalorder %s29, 1
      %p325 = por %p323, %p324
      %p327 = scmp.ne.s32.totalorder %s312, %s326
      %p328 = scmp.eq.s32.totalorder %s29, 0
      %p329 = por %p327, %p328
      %s330 = ssub.s32 %s23, %s30
      %p331 = scmp.eq.s32.totalorder %s330, 0
      %s333 = sadd.s32 %s332, 1
      %s334 = scalar_select %p331, %s332, %s333
      %p337 = pneg %p331
      %p338 = scmp.eq.s32.totalorder %s23, 1
      %p339 = por %p337, %p338
      %p340 = scmp.ne.s32.totalorder %s332, %s335
      %p341 = scmp.eq.s32.totalorder %s23, 0
      %p342 = por %p340, %p341
      %p343 = scmp.ne.s32.totalorder %s332, %s335
      %p344 = scmp.eq.s32.totalorder %s28, 1
      %p345 = por %p343, %p344
      %p346 = scmp.ne.s32.totalorder %s335, %s336
      %p347 = scmp.eq.s32.totalorder %s28, 0
      %p348 = por %p346, %p347
      %p349 = scmp.ne.s32.totalorder %s335, %s336
      %p350 = scmp.eq.s32.totalorder %s29, 1
      %p351 = por %p349, %p350
      %p353 = scmp.ne.s32.totalorder %s336, %s352
      %p354 = scmp.eq.s32.totalorder %s29, 0
      %p355 = por %p353, %p354
      %p356 = scmp.le.s32.totalorder 1, %s23
      %p357 = scmp.lt.s32.totalorder %s23, 3
      %p358 = pnand %p356, %p357
      %p359 = pneg %p358
      // Predicated region
      $region9: #{tpu_custom_call.1} parent=5 // pred_check
        _
      $region10: #{tpu_custom_call.1} parent=5 // pred_check_branch
        %361 = sbr.rel (%p358) target = $region12
      $region11: #{tpu_custom_call.1} parent=5 // pred_region
        %s362 = ssub.s32 %s23, 1
        // Predicated region
        $region13: #{tpu_custom_call.1} parent=11 // pred_check
          %p363 = pneg %p70
        $region14: #{tpu_custom_call.1} parent=11 // pred_check_branch
          %365 = sbr.rel (%p363) target = $region16
        $region15: #{tpu_custom_call.1} parent=11 // pred_region
          _
        $region16: #{tpu_custom_call.1} parent=11 // pred_fallthru
          _
        // Predicated region
        $region17: #{tpu_custom_call.1} parent=11 // pred_check
          %p366 = pneg %p91
        $region18: #{tpu_custom_call.1} parent=11 // pred_check_branch
          %368 = sbr.rel (%p366) target = $region20
        $region19: #{tpu_custom_call.1} parent=11 // pred_region
          _
        $region20: #{tpu_custom_call.1} parent=11 // pred_fallthru
          _
        // Predicated region
        $region21: #{tpu_custom_call.1} parent=11 // pred_check
          %p369 = pneg %p112
        $region22: #{tpu_custom_call.1} parent=11 // pred_check_branch
          %371 = sbr.rel (%p369) target = $region24
        $region23: #{tpu_custom_call.1} parent=11 // pred_region
          _
        $region24: #{tpu_custom_call.1} parent=11 // pred_fallthru
          _
        // Predicated region
        $region25: #{tpu_custom_call.1} parent=11 // pred_check
          %p372 = pneg %p133
        $region26: #{tpu_custom_call.1} parent=11 // pred_check_branch
          %374 = sbr.rel (%p372) target = $region28
        $region27: #{tpu_custom_call.1} parent=11 // pred_region
          _
        $region28: #{tpu_custom_call.1} parent=11 // pred_fallthru
          _
        // Predicated region
        $region29: #{tpu_custom_call.1} parent=11 // pred_check
          %p375 = pneg %p154
        $region30: #{tpu_custom_call.1} parent=11 // pred_check_branch
          %377 = sbr.rel (%p375) target = $region32
        $region31: #{tpu_custom_call.1} parent=11 // pred_region
          _
        $region32: #{tpu_custom_call.1} parent=11 // pred_fallthru
          _
        // Predicated region
        $region33: #{tpu_custom_call.1} parent=11 // pred_check
          %p378 = pneg %p175
        $region34: #{tpu_custom_call.1} parent=11 // pred_check_branch
          %380 = sbr.rel (%p378) target = $region36
        $region35: #{tpu_custom_call.1} parent=11 // pred_region
          _
        $region36: #{tpu_custom_call.1} parent=11 // pred_fallthru
          _
        // Predicated region
        $region37: #{tpu_custom_call.1} parent=11 // pred_check
          %p381 = pneg %p196
        $region38: #{tpu_custom_call.1} parent=11 // pred_check_branch
          %383 = sbr.rel (%p381) target = $region40
        $region39: #{tpu_custom_call.1} parent=11 // pred_region
          _
        $region40: #{tpu_custom_call.1} parent=11 // pred_fallthru
          _
        // Predicated region
        $region41: #{tpu_custom_call.1} parent=11 // pred_check
          %p384 = pneg %p217
        $region42: #{tpu_custom_call.1} parent=11 // pred_check_branch
          %386 = sbr.rel (%p384) target = $region44
        $region43: #{tpu_custom_call.1} parent=11 // pred_region
          _
        $region44: #{tpu_custom_call.1} parent=11 // pred_fallthru
          _
        // Predicated region
        $region45: #{tpu_custom_call.1} parent=11 // pred_check
          %p387 = pneg %p238
        $region46: #{tpu_custom_call.1} parent=11 // pred_check_branch
          %389 = sbr.rel (%p387) target = $region48
        $region47: #{tpu_custom_call.1} parent=11 // pred_region
          _
        $region48: #{tpu_custom_call.1} parent=11 // pred_fallthru
          _
        // Predicated region
        $region49: #{tpu_custom_call.1} parent=11 // pred_check
          %p390 = pneg %p259
        $region50: #{tpu_custom_call.1} parent=11 // pred_check_branch
          %392 = sbr.rel (%p390) target = $region52
        $region51: #{tpu_custom_call.1} parent=11 // pred_region
          _
        $region52: #{tpu_custom_call.1} parent=11 // pred_fallthru
          _
        // Predicated region
        $region53: #{tpu_custom_call.1} parent=11 // pred_check
          %p393 = pneg %p280
        $region54: #{tpu_custom_call.1} parent=11 // pred_check_branch
          %395 = sbr.rel (%p393) target = $region56
        $region55: #{tpu_custom_call.1} parent=11 // pred_region
          _
        $region56: #{tpu_custom_call.1} parent=11 // pred_fallthru
          _
        // Predicated region
        $region57: #{tpu_custom_call.1} parent=11 // pred_check
          %p396 = pneg %p301
        $region58: #{tpu_custom_call.1} parent=11 // pred_check_branch
          %398 = sbr.rel (%p396) target = $region60
        $region59: #{tpu_custom_call.1} parent=11 // pred_region
          _
        $region60: #{tpu_custom_call.1} parent=11 // pred_fallthru
          _
        // Predicated region
        $region61: #{tpu_custom_call.1} parent=11 // pred_check
          %p399 = pneg %p322
        $region62: #{tpu_custom_call.1} parent=11 // pred_check_branch
          %401 = sbr.rel (%p399) target = $region64
        $region63: #{tpu_custom_call.1} parent=11 // pred_region
          _
        $region64: #{tpu_custom_call.1} parent=11 // pred_fallthru
          _
      $region12: #{tpu_custom_call.1} parent=5 // pred_fallthru
        _
      %p402 = scmp.lt.s32.totalorder %s23, 2
      // Predicated region
      $region65: #{tpu_custom_call.1} parent=5 // pred_check
        %p403 = pneg %p402
      $region66: #{tpu_custom_call.1} parent=5 // pred_check_branch
        %405 = sbr.rel (%p403) target = $region68
      $region67: #{tpu_custom_call.1} parent=5 // pred_region
        // Predicated region
        $region69: #{tpu_custom_call.1} parent=67 // pred_check
          %p406 = pneg %p43
        $region70: #{tpu_custom_call.1} parent=67 // pred_check_branch
          %408 = sbr.rel (%p406) target = $region72
        $region71: #{tpu_custom_call.1} parent=67 // pred_region
          %p409 = scmp.lt.s32.totalorder %s23, 1
          %s410 = scalar_select %p409, %s23, 1
          %s411 = smul.addr %s410, 8
          %s412 = scalar_lea.vmem %s0, %s411
        $region72: #{tpu_custom_call.1} parent=67 // pred_fallthru
          _
      $region68: #{tpu_custom_call.1} parent=5 // pred_fallthru
        _
      %p413 = scmp.le.s32.totalorder 1, %s23
      %p414 = scmp.lt.s32.totalorder %s23, 3
      %p415 = pnand %p413, %p414
      %p416 = pneg %p415
      // Predicated region
      $region73: #{tpu_custom_call.1} parent=5 // pred_check
        _
      $region74: #{tpu_custom_call.1} parent=5 // pred_check_branch
        %418 = sbr.rel (%p415) target = $region76
      $region75: #{tpu_custom_call.1} parent=5 // pred_region
        %s419 = ssub.s32 %s23, 1
        %p420 = scmp.lt.s32.totalorder %s28, 1
        %s421 = scalar_select %p420, %s28, 1
        %s422 = smul.addr %s421, 8
        %s423 = scalar_lea.vmem %s0, %s422
        %p424 = pneg %p49
        %p425 = pneg %p46
        %p426 = pneg %p70
        %p427 = pneg %p67
        %p428 = pneg %p91
        %p429 = pneg %p88
        %p430 = pneg %p112
        %p431 = pneg %p109
        %p432 = pneg %p133
        %p433 = pneg %p130
        %p434 = pneg %p154
        %p435 = pneg %p151
        %p436 = pneg %p175
        %p437 = pneg %p172
        %p438 = pneg %p196
        %p439 = pneg %p193
        %p440 = pneg %p217
        %p441 = pneg %p214
        %p442 = pneg %p238
        %p443 = pneg %p235
        %p444 = pneg %p259
        %p445 = pneg %p256
        %p446 = pneg %p280
        %p447 = pneg %p277
        %p448 = pneg %p301
        %p449 = pneg %p298
        %p450 = pneg %p322
        %p451 = pneg %p319
        %p452 = pneg %p348
        %p453 = pneg %p345
        %s454 = sand.u32 %s335, 1
        %s455 = scalar_lea.sflag [#allocation3], %s454
        %s456 = sand.u32 %s335, 1
        %s457 = scalar_lea.vmem [#allocation2], %s456
        %p458 = scmp.lt.s32.totalorder %s28, 1
        %s459 = scalar_select %p458, %s28, 1
        %s460 = smul.addr %s459, 8
        %s461 = scalar_lea.vmem %s0, %s460
        %v463 = vld [vmem:[%s461] sm:$0xff]
        %v464 = vpack.c.bf16 %v463, %v463
        %v465 = vld [vmem:[%s2] sm:$0xf]
        %v466 = vld [vmem:[%s2 + $0x4] sm:$0xf]
        %v467 = vld [vmem:[%s1] sm:$0x1]
        %v468 = vlaneseq
        %v469 = vshrl.u32 %v468, 7
        %v470 = vsub.s32 0, %v469
        %v471 = vrot.slane %v467, %v470
        %v474 = vunpack.c.l.b16 %v465
        %v475 = vunpack.c.l.b16 %v466
        %v476 = vpack.c.b16 %v475, %v474
        %vm478 = vcmask 130048
        %v480 = vsel %vm478, %v464, 0
        %482 = vmatprep.subr.bf16.mxu0 0
        %483 = vmatpush1.bf16.msra.mxu0 %v476
        %484 = vmatprep.subr.bf16.mxu0 0
        %485 = vmatpush1.bf16.msra.mxu0 0
        %486 = vmatprep.subr.bf16.mxu0 0
        %487 = vmatpush1.bf16.msra.mxu0 0
        %488 = vmatprep.subr.bf16.mxu0 0
        %489 = vmatpush1.bf16.msra.mxu0 0
        %490 = vmatprep.subr.bf16.mxu0 0
        %491 = vmatpush1.bf16.msra.mxu0 0
        %492 = vmatprep.subr.bf16.mxu0 0
        %493 = vmatpush1.bf16.msra.mxu0 0
        %494 = vmatprep.subr.bf16.mxu0 0
        %495 = vmatpush1.bf16.msra.mxu0 0
        %496 = vmatprep.subr.bf16.mxu0 0
        %497 = vmatpush1.bf16.msra.mxu0 0
        %498 = vmatprep.subr.bf16.mxu0 0
        %499 = vmatpush1.bf16.msra.mxu0 0
        %500 = vmatprep.subr.bf16.mxu0 0
        %501 = vmatpush1.bf16.msra.mxu0 0
        %502 = vmatprep.subr.bf16.mxu0 0
        %503 = vmatpush1.bf16.msra.mxu0 0
        %504 = vmatprep.subr.bf16.mxu0 0
        %505 = vmatpush1.bf16.msra.mxu0 0
        %506 = vmatprep.subr.bf16.mxu0 0
        %507 = vmatpush1.bf16.msra.mxu0 0
        %508 = vmatprep.subr.bf16.mxu0 0
        %509 = vmatpush1.bf16.msra.mxu0 0
        %510 = vmatprep.subr.bf16.mxu0 0
        %511 = vmatpush1.bf16.msra.mxu0 0
        %512 = vmatprep.subr.bf16.mxu0 0
        %513 = vmatpush1.bf16.msra.mxu0 0
        %514 = vmatprep.mubr.bf16.mxu0 0
        %515 = vmatmul.mubr.bf16.gmra.mrb[0].mxu0 %v480
        %v516 = vpop.f32.mrb[0].mxu0
        %v517 = vadd.f32 %v471, %v516
        %v518 = vpop.f32.mrb[0].mxu0
        %v519 = vpop.f32.mrb[0].mxu0
        %v520 = vpop.f32.mrb[0].mxu0
        %521 = vdwg.mxu0
        %v522 = vld [vmem:[%s3] sm:$0xff]
        %v523 = vld [vmem:[%s3 + $0x8] sm:$0x3]
        %vm524 = vcmask 523264
        %v525 = vsel %vm524, %v517, 0.0
        %526 = vadd.xlane.f32.xlu0 %v525
        %v527 = vpop.xlane.xlu0 %526
        %v528 = vrcp.pop 64.0
        %v529 = vmul.f32 %v527, %v528
        %v530 = vsub.f32 %v517, %v529
        %v531 = vmul.f32 %v530, %v530
        %v532 = vsel %vm524, %v531, 0.0
        %533 = vadd.xlane.f32.xlu0 %v532
        %v534 = vpop.xlane.xlu0 %533
        %v535 = vmul.f32 %v534, %v528
        %v536 = vadd.f32 %v535, 1e-05
        %v537 = vrsqrt.pop %v536
        %v538 = vmul.f32 %v530, %v537
        %v539 = vlaneseq
        %v540 = vshrl.u32 %v539, 7
        %v541 = vsub.s32 0, %v540
        %v542 = vrot.slane %v522, %v541
        %v543 = vmul.f32 %v538, %v542
        %v544 = vlaneseq
        %v545 = vshrl.u32 %v544, 7
        %v546 = vsub.s32 1, %v545
        %v547 = vrot.slane %v522, %v546
        %v548 = vadd.f32 %v543, %v547
        %v549 = vpack.c.bf16 %v548, %v548
        %v550 = vld [vmem:[%s4] sm:$0xf]
        %v551 = vld [vmem:[%s4 + $0x4] sm:$0xf]
        %v552 = vld [vmem:[%s4 + $0x8] sm:$0xf]
        %v553 = vld [vmem:[%s4 + $0xc] sm:$0xf]
        %v554 = vld [vmem:[%s4 + $0x10] sm:$0xf]
        %v555 = vld [vmem:[%s4 + $0x14] sm:$0xf]
        %v556 = vld [vmem:[%s4 + $0x18] sm:$0xf]
        %v557 = vld [vmem:[%s4 + $0x1c] sm:$0xf]
        %v558 = vld [vmem:[%s4 + $0x20] sm:$0xf]
        %v559 = vld [vmem:[%s4 + $0x24] sm:$0xf]
        %v560 = vld [vmem:[%s4 + $0x28] sm:$0xf]
        %v561 = vld [vmem:[%s4 + $0x2c] sm:$0xf]
        %v562 = vld [vmem:[%s4 + $0x30] sm:$0xf]
        %v563 = vld [vmem:[%s4 + $0x34] sm:$0xf]
        %v564 = vld [vmem:[%s4 + $0x38] sm:$0xf]
        %v565 = vld [vmem:[%s4 + $0x3c] sm:$0xf]
        %v566 = vld [vmem:[%s4 + $0x40] sm:$0xf]
        %v567 = vld [vmem:[%s4 + $0x44] sm:$0xf]
        %v568 = vld [vmem:[%s4 + $0x48] sm:$0xf]
        %v569 = vld [vmem:[%s4 + $0x4c] sm:$0xf]
        %v570 = vld [vmem:[%s4 + $0x50] sm:$0xf]
        %v571 = vld [vmem:[%s4 + $0x54] sm:$0xf]
        %v572 = vld [vmem:[%s4 + $0x58] sm:$0xf]
        %v573 = vld [vmem:[%s4 + $0x5c] sm:$0xf]
        %v574 = vld [vmem:[%s4 + $0x60] sm:$0xf]
        %v575 = vld [vmem:[%s4 + $0x64] sm:$0xf]
        %v576 = vld [vmem:[%s4 + $0x68] sm:$0xf]
        %v577 = vld [vmem:[%s4 + $0x6c] sm:$0xf]
        %v578 = vld [vmem:[%s4 + $0x70] sm:$0xf]
        %v579 = vld [vmem:[%s4 + $0x74] sm:$0xf]
        %v580 = vld [vmem:[%s4 + $0x78] sm:$0xf]
        %v581 = vld [vmem:[%s4 + $0x7c] sm:$0xf]
        %v582 = vld [vmem:[%s4 + $0x80] sm:$0xf]
        %v583 = vld [vmem:[%s4 + $0x84] sm:$0xf]
        %v584 = vld [vmem:[%s4 + $0x88] sm:$0xf]
        %v585 = vld [vmem:[%s4 + $0x8c] sm:$0xf]
        %v586 = vld [vmem:[%s4 + $0x90] sm:$0xf]
        %v587 = vld [vmem:[%s4 + $0x94] sm:$0xf]
        %v588 = vld [vmem:[%s4 + $0x98] sm:$0xf]
        %v589 = vld [vmem:[%s4 + $0x9c] sm:$0xf]
        %v590 = vld [vmem:[%s4 + $0xa0] sm:$0xf]
        %v591 = vld [vmem:[%s4 + $0xa4] sm:$0xf]
        %v592 = vld [vmem:[%s4 + $0xa8] sm:$0xf]
        %v593 = vld [vmem:[%s4 + $0xac] sm:$0xf]
        %v594 = vld [vmem:[%s4 + $0xb0] sm:$0xf]
        %v595 = vld [vmem:[%s4 + $0xb4] sm:$0xf]
        %v596 = vld [vmem:[%s4 + $0xb8] sm:$0xf]
        %v597 = vld [vmem:[%s4 + $0xbc] sm:$0xf]
        %v598 = vld [vmem:[%s4 + $0xc0] sm:$0xf]
        %v599 = vld [vmem:[%s4 + $0xc4] sm:$0xf]
        %v600 = vld [vmem:[%s4 + $0xc8] sm:$0xf]
        %v601 = vld [vmem:[%s4 + $0xcc] sm:$0xf]
        %v602 = vld [vmem:[%s4 + $0xd0] sm:$0xf]
        %v603 = vld [vmem:[%s4 + $0xd4] sm:$0xf]
        %v604 = vld [vmem:[%s4 + $0xd8] sm:$0xf]
        %v605 = vld [vmem:[%s4 + $0xdc] sm:$0xf]
        %v606 = vld [vmem:[%s4 + $0xe0] sm:$0xf]
        %v607 = vld [vmem:[%s4 + $0xe4] sm:$0xf]
        %v608 = vld [vmem:[%s4 + $0xe8] sm:$0xf]
        %v609 = vld [vmem:[%s4 + $0xec] sm:$0xf]
        %v610 = vld [vmem:[%s4 + $0xf0] sm:$0xf]
        %v611 = vld [vmem:[%s4 + $0xf4] sm:$0xf]
        %v612 = vld [vmem:[%s4 + $0xf8] sm:$0xf]
        %v613 = vld [vmem:[%s4 + $0xfc] sm:$0xf]
        %v614 = vld [vmem:[%s7] sm:$0x1]
        %v615 = vld [vmem:[%s7 + $0x1] sm:$0x1]
        %v616 = vld [vmem:[%s7 + $0x2] sm:$0x1]
        %v617 = vld [vmem:[%s7 + $0x3] sm:$0x1]
        %v618 = vld [vmem:[%s7 + $0x4] sm:$0x1]
        %v619 = vld [vmem:[%s7 + $0x5] sm:$0x1]
        %v620 = vld [vmem:[%s7 + $0x6] sm:$0x1]
        %v621 = vld [vmem:[%s7 + $0x7] sm:$0x1]
        %v630 = vlaneseq
        %v631 = vshrl.u32 %v630, 7
        %v632 = vsub.s32 0, %v631
        %v633 = vrot.slane %v614, %v632
        %v634 = vlaneseq
        %v635 = vshrl.u32 %v634, 7
        %v636 = vsub.s32 0, %v635
        %v637 = vrot.slane %v615, %v636
        %v638 = vlaneseq
        %v639 = vshrl.u32 %v638, 7
        %v640 = vsub.s32 0, %v639
        %v641 = vrot.slane %v616, %v640
        %v642 = vlaneseq
        %v643 = vshrl.u32 %v642, 7
        %v644 = vsub.s32 0, %v643
        %v645 = vrot.slane %v617, %v644
        %v646 = vlaneseq
        %v647 = vshrl.u32 %v646, 7
        %v648 = vsub.s32 0, %v647
        %v649 = vrot.slane %v618, %v648
        %v650 = vlaneseq
        %v651 = vshrl.u32 %v650, 7
        %v652 = vsub.s32 0, %v651
        %v653 = vrot.slane %v619, %v652
        %v654 = vlaneseq
        %v655 = vshrl.u32 %v654, 7
        %v656 = vsub.s32 0, %v655
        %v657 = vrot.slane %v620, %v656
        %v658 = vlaneseq
        %v659 = vshrl.u32 %v658, 7
        %v660 = vsub.s32 0, %v659
        %v661 = vrot.slane %v621, %v660
        %v678 = vunpack.c.l.b16 %v550
        %v679 = vunpack.c.l.b16 %v551
        %v680 = vunpack.c.l.b16 %v552
        %v681 = vunpack.c.l.b16 %v553
        %v682 = vunpack.c.l.b16 %v554
        %v683 = vunpack.c.l.b16 %v555
        %v684 = vunpack.c.l.b16 %v556
        %v685 = vunpack.c.l.b16 %v557
        %v686 = vpack.c.b16 %v679, %v678
        %v687 = vpack.c.b16 %v681, %v680
        %v688 = vpack.c.b16 %v683, %v682
        %v689 = vpack.c.b16 %v685, %v684
        %v695 = vsel %vm524, %v549, 0
        %697 = vmatprep.subr.bf16.mxu0 0
        %698 = vmatpush1.bf16.msra.mxu0 %v686
        %699 = vmatprep.subr.bf16.mxu0 0
        %700 = vmatpush1.bf16.msra.mxu0 %v687
        %701 = vmatprep.subr.bf16.mxu0 0
        %702 = vmatpush1.bf16.msra.mxu0 %v688
        %703 = vmatprep.subr.bf16.mxu0 0
        %704 = vmatpush1.bf16.msra.mxu0 %v689
        %705 = vmatprep.subr.bf16.mxu0 0
        %706 = vmatpush1.bf16.msra.mxu0 0
        %707 = vmatprep.subr.bf16.mxu0 0
        %708 = vmatpush1.bf16.msra.mxu0 0
        %709 = vmatprep.subr.bf16.mxu0 0
        %710 = vmatpush1.bf16.msra.mxu0 0
        %711 = vmatprep.subr.bf16.mxu0 0
        %712 = vmatpush1.bf16.msra.mxu0 0
        %713 = vmatprep.subr.bf16.mxu0 0
        %714 = vmatpush1.bf16.msra.mxu0 0
        %715 = vmatprep.subr.bf16.mxu0 0
        %716 = vmatpush1.bf16.msra.mxu0 0
        %717 = vmatprep.subr.bf16.mxu0 0
        %718 = vmatpush1.bf16.msra.mxu0 0
        %719 = vmatprep.subr.bf16.mxu0 0
        %720 = vmatpush1.bf16.msra.mxu0 0
        %721 = vmatprep.subr.bf16.mxu0 0
        %722 = vmatpush1.bf16.msra.mxu0 0
        %723 = vmatprep.subr.bf16.mxu0 0
        %724 = vmatpush1.bf16.msra.mxu0 0
        %725 = vmatprep.subr.bf16.mxu0 0
        %726 = vmatpush1.bf16.msra.mxu0 0
        %727 = vmatprep.subr.bf16.mxu0 0
        %728 = vmatpush1.bf16.msra.mxu0 0
        %729 = vmatprep.mubr.bf16.mxu0 0
        %730 = vmatmul.mubr.bf16.gmra.mrb[0].mxu0 %v695
        %v731 = vpop.f32.mrb[0].mxu0
        %v732 = vadd.f32 %v633, %v731
        %v733 = vpop.f32.mrb[0].mxu0
        %v734 = vpop.f32.mrb[0].mxu0
        %v735 = vpop.f32.mrb[0].mxu0
        %736 = vdwg.mxu0
        %v745 = vunpack.c.l.b16 %v558
        %v746 = vunpack.c.l.b16 %v559
        %v747 = vunpack.c.l.b16 %v560
        %v748 = vunpack.c.l.b16 %v561
        %v749 = vunpack.c.l.b16 %v562
        %v750 = vunpack.c.l.b16 %v563
        %v751 = vunpack.c.l.b16 %v564
        %v752 = vunpack.c.l.b16 %v565
        %v753 = vpack.c.b16 %v746, %v745
        %v754 = vpack.c.b16 %v748, %v747
        %v755 = vpack.c.b16 %v750, %v749
        %v756 = vpack.c.b16 %v752, %v751
        %761 = vmatprep.subr.bf16.mxu0 0
        %762 = vmatpush1.bf16.msra.mxu0 %v753
        %763 = vmatprep.subr.bf16.mxu0 0
        %764 = vmatpush1.bf16.msra.mxu0 %v754
        %765 = vmatprep.subr.bf16.mxu0 0
        %766 = vmatpush1.bf16.msra.mxu0 %v755
        %767 = vmatprep.subr.bf16.mxu0 0
        %768 = vmatpush1.bf16.msra.mxu0 %v756
        %769 = vmatprep.subr.bf16.mxu0 0
        %770 = vmatpush1.bf16.msra.mxu0 0
        %771 = vmatprep.subr.bf16.mxu0 0
        %772 = vmatpush1.bf16.msra.mxu0 0
        %773 = vmatprep.subr.bf16.mxu0 0
        %774 = vmatpush1.bf16.msra.mxu0 0
        %775 = vmatprep.subr.bf16.mxu0 0
        %776 = vmatpush1.bf16.msra.mxu0 0
        %777 = vmatprep.subr.bf16.mxu0 0
        %778 = vmatpush1.bf16.msra.mxu0 0
        %779 = vmatprep.subr.bf16.mxu0 0
        %780 = vmatpush1.bf16.msra.mxu0 0
        %781 = vmatprep.subr.bf16.mxu0 0
        %782 = vmatpush1.bf16.msra.mxu0 0
        %783 = vmatprep.subr.bf16.mxu0 0
        %784 = vmatpush1.bf16.msra.mxu0 0
        %785 = vmatprep.subr.bf16.mxu0 0
        %786 = vmatpush1.bf16.msra.mxu0 0
        %787 = vmatprep.subr.bf16.mxu0 0
        %788 = vmatpush1.bf16.msra.mxu0 0
        %789 = vmatprep.subr.bf16.mxu0 0
        %790 = vmatpush1.bf16.msra.mxu0 0
        %791 = vmatprep.subr.bf16.mxu0 0
        %792 = vmatpush1.bf16.msra.mxu0 0
        %793 = vmatprep.mubr.bf16.mxu0 0
        %794 = vmatmul.mubr.bf16.gmra.mrb[0].mxu0 %v695
        %v795 = vpop.f32.mrb[0].mxu0
        %v796 = vadd.f32 %v637, %v795
        %v797 = vpop.f32.mrb[0].mxu0
        %v798 = vpop.f32.mrb[0].mxu0
        %v799 = vpop.f32.mrb[0].mxu0
        %800 = vdwg.mxu0
        %v809 = vunpack.c.l.b16 %v566
        %v810 = vunpack.c.l.b16 %v567
        %v811 = vunpack.c.l.b16 %v568
        %v812 = vunpack.c.l.b16 %v569
        %v813 = vunpack.c.l.b16 %v570
        %v814 = vunpack.c.l.b16 %v571
        %v815 = vunpack.c.l.b16 %v572
        %v816 = vunpack.c.l.b16 %v573
        %v817 = vpack.c.b16 %v810, %v809
        %v818 = vpack.c.b16 %v812, %v811
        %v819 = vpack.c.b16 %v814, %v813
        %v820 = vpack.c.b16 %v816, %v815
        %825 = vmatprep.subr.bf16.mxu0 0
        %826 = vmatpush1.bf16.msra.mxu0 %v817
        %827 = vmatprep.subr.bf16.mxu0 0
        %828 = vmatpush1.bf16.msra.mxu0 %v818
        %829 = vmatprep.subr.bf16.mxu0 0
        %830 = vmatpush1.bf16.msra.mxu0 %v819
        %831 = vmatprep.subr.bf16.mxu0 0
        %832 = vmatpush1.bf16.msra.mxu0 %v820
        %833 = vmatprep.subr.bf16.mxu0 0
        %834 = vmatpush1.bf16.msra.mxu0 0
        %835 = vmatprep.subr.bf16.mxu0 0
        %836 = vmatpush1.bf16.msra.mxu0 0
        %837 = vmatprep.subr.bf16.mxu0 0
        %838 = vmatpush1.bf16.msra.mxu0 0
        %839 = vmatprep.subr.bf16.mxu0 0
        %840 = vmatpush1.bf16.msra.mxu0 0
        %841 = vmatprep.subr.bf16.mxu0 0
        %842 = vmatpush1.bf16.msra.mxu0 0
        %843 = vmatprep.subr.bf16.mxu0 0
        %844 = vmatpush1.bf16.msra.mxu0 0
        %845 = vmatprep.subr.bf16.mxu0 0
        %846 = vmatpush1.bf16.msra.mxu0 0
        %847 = vmatprep.subr.bf16.mxu0 0
        %848 = vmatpush1.bf16.msra.mxu0 0
        %849 = vmatprep.subr.bf16.mxu0 0
        %850 = vmatpush1.bf16.msra.mxu0 0
        %851 = vmatprep.subr.bf16.mxu0 0
        %852 = vmatpush1.bf16.msra.mxu0 0
        %853 = vmatprep.subr.bf16.mxu0 0
        %854 = vmatpush1.bf16.msra.mxu0 0
        %855 = vmatprep.subr.bf16.mxu0 0
        %856 = vmatpush1.bf16.msra.mxu0 0
        %857 = vmatprep.mubr.bf16.mxu0 0
        %858 = vmatmul.mubr.bf16.gmra.mrb[0].mxu0 %v695
        %v859 = vpop.f32.mrb[0].mxu0
        %v860 = vadd.f32 %v641, %v859
        %v861 = vpop.f32.mrb[0].mxu0
        %v862 = vpop.f32.mrb[0].mxu0
        %v863 = vpop.f32.mrb[0].mxu0
        %864 = vdwg.mxu0
        %v873 = vunpack.c.l.b16 %v574
        %v874 = vunpack.c.l.b16 %v575
        %v875 = vunpack.c.l.b16 %v576
        %v876 = vunpack.c.l.b16 %v577
        %v877 = vunpack.c.l.b16 %v578
        %v878 = vunpack.c.l.b16 %v579
        %v879 = vunpack.c.l.b16 %v580
        %v880 = vunpack.c.l.b16 %v581
        %v881 = vpack.c.b16 %v874, %v873
        %v882 = vpack.c.b16 %v876, %v875
        %v883 = vpack.c.b16 %v878, %v877
        %v884 = vpack.c.b16 %v880, %v879
        %889 = vmatprep.subr.bf16.mxu0 0
        %890 = vmatpush1.bf16.msra.mxu0 %v881
        %891 = vmatprep.subr.bf16.mxu0 0
        %892 = vmatpush1.bf16.msra.mxu0 %v882
        %893 = vmatprep.subr.bf16.mxu0 0
        %894 = vmatpush1.bf16.msra.mxu0 %v883
        %895 = vmatprep.subr.bf16.mxu0 0
        %896 = vmatpush1.bf16.msra.mxu0 %v884
        %897 = vmatprep.subr.bf16.mxu0 0
        %898 = vmatpush1.bf16.msra.mxu0 0
        %899 = vmatprep.subr.bf16.mxu0 0
        %900 = vmatpush1.bf16.msra.mxu0 0
        %901 = vmatprep.subr.bf16.mxu0 0
        %902 = vmatpush1.bf16.msra.mxu0 0
        %903 = vmatprep.subr.bf16.mxu0 0
        %904 = vmatpush1.bf16.msra.mxu0 0
        %905 = vmatprep.subr.bf16.mxu0 0
        %906 = vmatpush1.bf16.msra.mxu0 0
        %907 = vmatprep.subr.bf16.mxu0 0
        %908 = vmatpush1.bf16.msra.mxu0 0
        %909 = vmatprep.subr.bf16.mxu0 0
        %910 = vmatpush1.bf16.msra.mxu0 0
        %911 = vmatprep.subr.bf16.mxu0 0
        %912 = vmatpush1.bf16.msra.mxu0 0
        %913 = vmatprep.subr.bf16.mxu0 0
        %914 = vmatpush1.bf16.msra.mxu0 0
        %915 = vmatprep.subr.bf16.mxu0 0
        %916 = vmatpush1.bf16.msra.mxu0 0
        %917 = vmatprep.subr.bf16.mxu0 0
        %918 = vmatpush1.bf16.msra.mxu0 0
        %919 = vmatprep.subr.bf16.mxu0 0
        %920 = vmatpush1.bf16.msra.mxu0 0
        %921 = vmatprep.mubr.bf16.mxu0 0
        %922 = vmatmul.mubr.bf16.gmra.mrb[0].mxu0 %v695
        %v923 = vpop.f32.mrb[0].mxu0
        %v924 = vadd.f32 %v645, %v923
        %v925 = vpop.f32.mrb[0].mxu0
        %v926 = vpop.f32.mrb[0].mxu0
        %v927 = vpop.f32.mrb[0].mxu0
        %928 = vdwg.mxu0
        %v937 = vunpack.c.l.b16 %v582
        %v938 = vunpack.c.l.b16 %v583
        %v939 = vunpack.c.l.b16 %v584
        %v940 = vunpack.c.l.b16 %v585
        %v941 = vunpack.c.l.b16 %v586
        %v942 = vunpack.c.l.b16 %v587
        %v943 = vunpack.c.l.b16 %v588
        %v944 = vunpack.c.l.b16 %v589
        %v945 = vpack.c.b16 %v938, %v937
        %v946 = vpack.c.b16 %v940, %v939
        %v947 = vpack.c.b16 %v942, %v941
        %v948 = vpack.c.b16 %v944, %v943
        %953 = vmatprep.subr.bf16.mxu0 0
        %954 = vmatpush1.bf16.msra.mxu0 %v945
        %955 = vmatprep.subr.bf16.mxu0 0
        %956 = vmatpush1.bf16.msra.mxu0 %v946
        %957 = vmatprep.subr.bf16.mxu0 0
        %958 = vmatpush1.bf16.msra.mxu0 %v947
        %959 = vmatprep.subr.bf16.mxu0 0
        %960 = vmatpush1.bf16.msra.mxu0 %v948
        %961 = vmatprep.subr.bf16.mxu0 0
        %962 = vmatpush1.bf16.msra.mxu0 0
        %963 = vmatprep.subr.bf16.mxu0 0
        %964 = vmatpush1.bf16.msra.mxu0 0
        %965 = vmatprep.subr.bf16.mxu0 0
        %966 = vmatpush1.bf16.msra.mxu0 0
        %967 = vmatprep.subr.bf16.mxu0 0
        %968 = vmatpush1.bf16.msra.mxu0 0
        %969 = vmatprep.subr.bf16.mxu0 0
        %970 = vmatpush1.bf16.msra.mxu0 0
        %971 = vmatprep.subr.bf16.mxu0 0
        %972 = vmatpush1.bf16.msra.mxu0 0
        %973 = vmatprep.subr.bf16.mxu0 0
        %974 = vmatpush1.bf16.msra.mxu0 0
        %975 = vmatprep.subr.bf16.mxu0 0
        %976 = vmatpush1.bf16.msra.mxu0 0
        %977 = vmatprep.subr.bf16.mxu0 0
        %978 = vmatpush1.bf16.msra.mxu0 0
        %979 = vmatprep.subr.bf16.mxu0 0
        %980 = vmatpush1.bf16.msra.mxu0 0
        %981 = vmatprep.subr.bf16.mxu0 0
        %982 = vmatpush1.bf16.msra.mxu0 0
        %983 = vmatprep.subr.bf16.mxu0 0
        %984 = vmatpush1.bf16.msra.mxu0 0
        %985 = vmatprep.mubr.bf16.mxu0 0
        %986 = vmatmul.mubr.bf16.gmra.mrb[0].mxu0 %v695
        %v987 = vpop.f32.mrb[0].mxu0
        %v988 = vadd.f32 %v649, %v987
        %v989 = vpop.f32.mrb[0].mxu0
        %v990 = vpop.f32.mrb[0].mxu0
        %v991 = vpop.f32.mrb[0].mxu0
        %992 = vdwg.mxu0
        %v1001 = vunpack.c.l.b16 %v590
        %v1002 = vunpack.c.l.b16 %v591
        %v1003 = vunpack.c.l.b16 %v592
        %v1004 = vunpack.c.l.b16 %v593
        %v1005 = vunpack.c.l.b16 %v594
        %v1006 = vunpack.c.l.b16 %v595
        %v1007 = vunpack.c.l.b16 %v596
        %v1008 = vunpack.c.l.b16 %v597
        %v1009 = vpack.c.b16 %v1002, %v1001
        %v1010 = vpack.c.b16 %v1004, %v1003
        %v1011 = vpack.c.b16 %v1006, %v1005
        %v1012 = vpack.c.b16 %v1008, %v1007
        %1017 = vmatprep.subr.bf16.mxu0 0
        %1018 = vmatpush1.bf16.msra.mxu0 %v1009
        %1019 = vmatprep.subr.bf16.mxu0 0
        %1020 = vmatpush1.bf16.msra.mxu0 %v1010
        %1021 = vmatprep.subr.bf16.mxu0 0
        %1022 = vmatpush1.bf16.msra.mxu0 %v1011
        %1023 = vmatprep.subr.bf16.mxu0 0
        %1024 = vmatpush1.bf16.msra.mxu0 %v1012
        %1025 = vmatprep.subr.bf16.mxu0 0
        %1026 = vmatpush1.bf16.msra.mxu0 0
        %1027 = vmatprep.subr.bf16.mxu0 0
        %1028 = vmatpush1.bf16.msra.mxu0 0
        %1029 = vmatprep.subr.bf16.mxu0 0
        %1030 = vmatpush1.bf16.msra.mxu0 0
        %1031 = vmatprep.subr.bf16.mxu0 0
        %1032 = vmatpush1.bf16.msra.mxu0 0
        %1033 = vmatprep.subr.bf16.mxu0 0
        %1034 = vmatpush1.bf16.msra.mxu0 0
        %1035 = vmatprep.subr.bf16.mxu0 0
        %1036 = vmatpush1.bf16.msra.mxu0 0
        %1037 = vmatprep.subr.bf16.mxu0 0
        %1038 = vmatpush1.bf16.msra.mxu0 0
        %1039 = vmatprep.subr.bf16.mxu0 0
        %1040 = vmatpush1.bf16.msra.mxu0 0
        %1041 = vmatprep.subr.bf16.mxu0 0
        %1042 = vmatpush1.bf16.msra.mxu0 0
        %1043 = vmatprep.subr.bf16.mxu0 0
        %1044 = vmatpush1.bf16.msra.mxu0 0
        %1045 = vmatprep.subr.bf16.mxu0 0
        %1046 = vmatpush1.bf16.msra.mxu0 0
        %1047 = vmatprep.subr.bf16.mxu0 0
        %1048 = vmatpush1.bf16.msra.mxu0 0
        %1049 = vmatprep.mubr.bf16.mxu0 0
        %1050 = vmatmul.mubr.bf16.gmra.mrb[0].mxu0 %v695
        %v1051 = vpop.f32.mrb[0].mxu0
        %v1052 = vadd.f32 %v653, %v1051
        %v1053 = vpop.f32.mrb[0].mxu0
        %v1054 = vpop.f32.mrb[0].mxu0
        %v1055 = vpop.f32.mrb[0].mxu0
        %1056 = vdwg.mxu0
        %v1065 = vunpack.c.l.b16 %v598
        %v1066 = vunpack.c.l.b16 %v599
        %v1067 = vunpack.c.l.b16 %v600
        %v1068 = vunpack.c.l.b16 %v601
        %v1069 = vunpack.c.l.b16 %v602
        %v1070 = vunpack.c.l.b16 %v603
        %v1071 = vunpack.c.l.b16 %v604
        %v1072 = vunpack.c.l.b16 %v605
        %v1073 = vpack.c.b16 %v1066, %v1065
        %v1074 = vpack.c.b16 %v1068, %v1067
        %v1075 = vpack.c.b16 %v1070, %v1069
        %v1076 = vpack.c.b16 %v1072, %v1071
        %1081 = vmatprep.subr.bf16.mxu0 0
        %1082 = vmatpush1.bf16.msra.mxu0 %v1073
        %1083 = vmatprep.subr.bf16.mxu0 0
        %1084 = vmatpush1.bf16.msra.mxu0 %v1074
        %1085 = vmatprep.subr.bf16.mxu0 0
        %1086 = vmatpush1.bf16.msra.mxu0 %v1075
        %1087 = vmatprep.subr.bf16.mxu0 0
        %1088 = vmatpush1.bf16.msra.mxu0 %v1076
        %1089 = vmatprep.subr.bf16.mxu0 0
        %1090 = vmatpush1.bf16.msra.mxu0 0
        %1091 = vmatprep.subr.bf16.mxu0 0
        %1092 = vmatpush1.bf16.msra.mxu0 0
        %1093 = vmatprep.subr.bf16.mxu0 0
        %1094 = vmatpush1.bf16.msra.mxu0 0
        %1095 = vmatprep.subr.bf16.mxu0 0
        %1096 = vmatpush1.bf16.msra.mxu0 0
        %1097 = vmatprep.subr.bf16.mxu0 0
        %1098 = vmatpush1.bf16.msra.mxu0 0
        %1099 = vmatprep.subr.bf16.mxu0 0
        %1100 = vmatpush1.bf16.msra.mxu0 0
        %1101 = vmatprep.subr.bf16.mxu0 0
        %1102 = vmatpush1.bf16.msra.mxu0 0
        %1103 = vmatprep.subr.bf16.mxu0 0
        %1104 = vmatpush1.bf16.msra.mxu0 0
        %1105 = vmatprep.subr.bf16.mxu0 0
        %1106 = vmatpush1.bf16.msra.mxu0 0
        %1107 = vmatprep.subr.bf16.mxu0 0
        %1108 = vmatpush1.bf16.msra.mxu0 0
        %1109 = vmatprep.subr.bf16.mxu0 0
        %1110 = vmatpush1.bf16.msra.mxu0 0
        %1111 = vmatprep.subr.bf16.mxu0 0
        %1112 = vmatpush1.bf16.msra.mxu0 0
        %1113 = vmatprep.mubr.bf16.mxu0 0
        %1114 = vmatmul.mubr.bf16.gmra.mrb[0].mxu0 %v695
        %v1115 = vpop.f32.mrb[0].mxu0
        %v1116 = vadd.f32 %v657, %v1115
        %v1117 = vpop.f32.mrb[0].mxu0
        %v1118 = vpop.f32.mrb[0].mxu0
        %v1119 = vpop.f32.mrb[0].mxu0
        %1120 = vdwg.mxu0
        %v1129 = vunpack.c.l.b16 %v606
        %v1130 = vunpack.c.l.b16 %v607
        %v1131 = vunpack.c.l.b16 %v608
        %v1132 = vunpack.c.l.b16 %v609
        %v1133 = vunpack.c.l.b16 %v610
        %v1134 = vunpack.c.l.b16 %v611
        %v1135 = vunpack.c.l.b16 %v612
        %v1136 = vunpack.c.l.b16 %v613
        %v1137 = vpack.c.b16 %v1130, %v1129
        %v1138 = vpack.c.b16 %v1132, %v1131
        %v1139 = vpack.c.b16 %v1134, %v1133
        %v1140 = vpack.c.b16 %v1136, %v1135
        %1145 = vmatprep.subr.bf16.mxu0 0
        %1146 = vmatpush1.bf16.msra.mxu0 %v1137
        %1147 = vmatprep.subr.bf16.mxu0 0
        %1148 = vmatpush1.bf16.msra.mxu0 %v1138
        %1149 = vmatprep.subr.bf16.mxu0 0
        %1150 = vmatpush1.bf16.msra.mxu0 %v1139
        %1151 = vmatprep.subr.bf16.mxu0 0
        %1152 = vmatpush1.bf16.msra.mxu0 %v1140
        %1153 = vmatprep.subr.bf16.mxu0 0
        %1154 = vmatpush1.bf16.msra.mxu0 0
        %1155 = vmatprep.subr.bf16.mxu0 0
        %1156 = vmatpush1.bf16.msra.mxu0 0
        %1157 = vmatprep.subr.bf16.mxu0 0
        %1158 = vmatpush1.bf16.msra.mxu0 0
        %1159 = vmatprep.subr.bf16.mxu0 0
        %1160 = vmatpush1.bf16.msra.mxu0 0
        %1161 = vmatprep.subr.bf16.mxu0 0
        %1162 = vmatpush1.bf16.msra.mxu0 0
        %1163 = vmatprep.subr.bf16.mxu0 0
        %1164 = vmatpush1.bf16.msra.mxu0 0
        %1165 = vmatprep.subr.bf16.mxu0 0
        %1166 = vmatpush1.bf16.msra.mxu0 0
        %1167 = vmatprep.subr.bf16.mxu0 0
        %1168 = vmatpush1.bf16.msra.mxu0 0
        %1169 = vmatprep.subr.bf16.mxu0 0
        %1170 = vmatpush1.bf16.msra.mxu0 0
        %1171 = vmatprep.subr.bf16.mxu0 0
        %1172 = vmatpush1.bf16.msra.mxu0 0
        %1173 = vmatprep.subr.bf16.mxu0 0
        %1174 = vmatpush1.bf16.msra.mxu0 0
        %1175 = vmatprep.subr.bf16.mxu0 0
        %1176 = vmatpush1.bf16.msra.mxu0 0
        %1177 = vmatprep.mubr.bf16.mxu0 0
        %1178 = vmatmul.mubr.bf16.gmra.mrb[0].mxu0 %v695
        %v1179 = vpop.f32.mrb[0].mxu0
        %v1180 = vadd.f32 %v661, %v1179
        %v1181 = vpop.f32.mrb[0].mxu0
        %v1182 = vpop.f32.mrb[0].mxu0
        %v1183 = vpop.f32.mrb[0].mxu0
        %1184 = vdwg.mxu0
        %v1185 = vld [vmem:[%s5] sm:$0xf]
        %v1186 = vld [vmem:[%s5 + $0x4] sm:$0xf]
        %v1187 = vld [vmem:[%s5 + $0x8] sm:$0xf]
        %v1188 = vld [vmem:[%s5 + $0xc] sm:$0xf]
        %v1189 = vld [vmem:[%s5 + $0x10] sm:$0xf]
        %v1190 = vld [vmem:[%s5 + $0x14] sm:$0xf]
        %v1191 = vld [vmem:[%s5 + $0x18] sm:$0xf]
        %v1192 = vld [vmem:[%s5 + $0x1c] sm:$0xf]
        %v1193 = vld [vmem:[%s5 + $0x20] sm:$0xf]
        %v1194 = vld [vmem:[%s5 + $0x24] sm:$0xf]
        %v1195 = vld [vmem:[%s5 + $0x28] sm:$0xf]
        %v1196 = vld [vmem:[%s5 + $0x2c] sm:$0xf]
        %v1197 = vld [vmem:[%s5 + $0x30] sm:$0xf]
        %v1198 = vld [vmem:[%s5 + $0x34] sm:$0xf]
        %v1199 = vld [vmem:[%s5 + $0x38] sm:$0xf]
        %v1200 = vld [vmem:[%s5 + $0x3c] sm:$0xf]
        %v1201 = vld [vmem:[%s5 + $0x40] sm:$0xf]
        %v1202 = vld [vmem:[%s5 + $0x44] sm:$0xf]
        %v1203 = vld [vmem:[%s5 + $0x48] sm:$0xf]
        %v1204 = vld [vmem:[%s5 + $0x4c] sm:$0xf]
        %v1205 = vld [vmem:[%s5 + $0x50] sm:$0xf]
        %v1206 = vld [vmem:[%s5 + $0x54] sm:$0xf]
        %v1207 = vld [vmem:[%s5 + $0x58] sm:$0xf]
        %v1208 = vld [vmem:[%s5 + $0x5c] sm:$0xf]
        %v1209 = vld [vmem:[%s5 + $0x60] sm:$0xf]
        %v1210 = vld [vmem:[%s5 + $0x64] sm:$0xf]
        %v1211 = vld [vmem:[%s5 + $0x68] sm:$0xf]
        %v1212 = vld [vmem:[%s5 + $0x6c] sm:$0xf]
        %v1213 = vld [vmem:[%s5 + $0x70] sm:$0xf]
        %v1214 = vld [vmem:[%s5 + $0x74] sm:$0xf]
        %v1215 = vld [vmem:[%s5 + $0x78] sm:$0xf]
        %v1216 = vld [vmem:[%s5 + $0x7c] sm:$0xf]
        %v1217 = vld [vmem:[%s5 + $0x80] sm:$0xf]
        %v1218 = vld [vmem:[%s5 + $0x84] sm:$0xf]
        %v1219 = vld [vmem:[%s5 + $0x88] sm:$0xf]
        %v1220 = vld [vmem:[%s5 + $0x8c] sm:$0xf]
        %v1221 = vld [vmem:[%s5 + $0x90] sm:$0xf]
        %v1222 = vld [vmem:[%s5 + $0x94] sm:$0xf]
        %v1223 = vld [vmem:[%s5 + $0x98] sm:$0xf]
        %v1224 = vld [vmem:[%s5 + $0x9c] sm:$0xf]
        %v1225 = vld [vmem:[%s5 + $0xa0] sm:$0xf]
        %v1226 = vld [vmem:[%s5 + $0xa4] sm:$0xf]
        %v1227 = vld [vmem:[%s5 + $0xa8] sm:$0xf]
        %v1228 = vld [vmem:[%s5 + $0xac] sm:$0xf]
        %v1229 = vld [vmem:[%s5 + $0xb0] sm:$0xf]
        %v1230 = vld [vmem:[%s5 + $0xb4] sm:$0xf]
        %v1231 = vld [vmem:[%s5 + $0xb8] sm:$0xf]
        %v1232 = vld [vmem:[%s5 + $0xbc] sm:$0xf]
        %v1233 = vld [vmem:[%s5 + $0xc0] sm:$0xf]
        %v1234 = vld [vmem:[%s5 + $0xc4] sm:$0xf]
        %v1235 = vld [vmem:[%s5 + $0xc8] sm:$0xf]
        %v1236 = vld [vmem:[%s5 + $0xcc] sm:$0xf]
        %v1237 = vld [vmem:[%s5 + $0xd0] sm:$0xf]
        %v1238 = vld [vmem:[%s5 + $0xd4] sm:$0xf]
        %v1239 = vld [vmem:[%s5 + $0xd8] sm:$0xf]
        %v1240 = vld [vmem:[%s5 + $0xdc] sm:$0xf]
        %v1241 = vld [vmem:[%s5 + $0xe0] sm:$0xf]
        %v1242 = vld [vmem:[%s5 + $0xe4] sm:$0xf]
        %v1243 = vld [vmem:[%s5 + $0xe8] sm:$0xf]
        %v1244 = vld [vmem:[%s5 + $0xec] sm:$0xf]
        %v1245 = vld [vmem:[%s5 + $0xf0] sm:$0xf]
        %v1246 = vld [vmem:[%s5 + $0xf4] sm:$0xf]
        %v1247 = vld [vmem:[%s5 + $0xf8] sm:$0xf]
        %v1248 = vld [vmem:[%s5 + $0xfc] sm:$0xf]
        %v1249 = vld [vmem:[%s8] sm:$0x1]
        %v1250 = vld [vmem:[%s8 + $0x1] sm:$0x1]
        %v1251 = vld [vmem:[%s8 + $0x2] sm:$0x1]
        %v1252 = vld [vmem:[%s8 + $0x3] sm:$0x1]
        %v1253 = vld [vmem:[%s8 + $0x4] sm:$0x1]
        %v1254 = vld [vmem:[%s8 + $0x5] sm:$0x1]
        %v1255 = vld [vmem:[%s8 + $0x6] sm:$0x1]
        %v1256 = vld [vmem:[%s8 + $0x7] sm:$0x1]
        %v1265 = vlaneseq
        %v1266 = vshrl.u32 %v1265, 7
        %v1267 = vsub.s32 0, %v1266
        %v1268 = vrot.slane %v1249, %v1267
        %v1269 = vlaneseq
        %v1270 = vshrl.u32 %v1269, 7
        %v1271 = vsub.s32 0, %v1270
        %v1272 = vrot.slane %v1250, %v1271
        %v1273 = vlaneseq
        %v1274 = vshrl.u32 %v1273, 7
        %v1275 = vsub.s32 0, %v1274
        %v1276 = vrot.slane %v1251, %v1275
        %v1277 = vlaneseq
        %v1278 = vshrl.u32 %v1277, 7
        %v1279 = vsub.s32 0, %v1278
        %v1280 = vrot.slane %v1252, %v1279
        %v1281 = vlaneseq
        %v1282 = vshrl.u32 %v1281, 7
        %v1283 = vsub.s32 0, %v1282
        %v1284 = vrot.slane %v1253, %v1283
        %v1285 = vlaneseq
        %v1286 = vshrl.u32 %v1285, 7
        %v1287 = vsub.s32 0, %v1286
        %v1288 = vrot.slane %v1254, %v1287
        %v1289 = vlaneseq
        %v1290 = vshrl.u32 %v1289, 7
        %v1291 = vsub.s32 0, %v1290
        %v1292 = vrot.slane %v1255, %v1291
        %v1293 = vlaneseq
        %v1294 = vshrl.u32 %v1293, 7
        %v1295 = vsub.s32 0, %v1294
        %v1296 = vrot.slane %v1256, %v1295
        %v1313 = vunpack.c.l.b16 %v1185
        %v1314 = vunpack.c.l.b16 %v1186
        %v1315 = vunpack.c.l.b16 %v1187
        %v1316 = vunpack.c.l.b16 %v1188
        %v1317 = vunpack.c.l.b16 %v1189
        %v1318 = vunpack.c.l.b16 %v1190
        %v1319 = vunpack.c.l.b16 %v1191
        %v1320 = vunpack.c.l.b16 %v1192
        %v1321 = vpack.c.b16 %v1314, %v1313
        %v1322 = vpack.c.b16 %v1316, %v1315
        %v1323 = vpack.c.b16 %v1318, %v1317
        %v1324 = vpack.c.b16 %v1320, %v1319
        %1329 = vmatprep.subr.bf16.mxu0 0
        %1330 = vmatpush1.bf16.msra.mxu0 %v1321
        %1331 = vmatprep.subr.bf16.mxu0 0
        %1332 = vmatpush1.bf16.msra.mxu0 %v1322
        %1333 = vmatprep.subr.bf16.mxu0 0
        %1334 = vmatpush1.bf16.msra.mxu0 %v1323
        %1335 = vmatprep.subr.bf16.mxu0 0
        %1336 = vmatpush1.bf16.msra.mxu0 %v1324
        %1337 = vmatprep.subr.bf16.mxu0 0
        %1338 = vmatpush1.bf16.msra.mxu0 0
        %1339 = vmatprep.subr.bf16.mxu0 0
        %1340 = vmatpush1.bf16.msra.mxu0 0
        %1341 = vmatprep.subr.bf16.mxu0 0
        %1342 = vmatpush1.bf16.msra.mxu0 0
        %1343 = vmatprep.subr.bf16.mxu0 0
        %1344 = vmatpush1.bf16.msra.mxu0 0
        %1345 = vmatprep.subr.bf16.mxu0 0
        %1346 = vmatpush1.bf16.msra.mxu0 0
        %1347 = vmatprep.subr.bf16.mxu0 0
        %1348 = vmatpush1.bf16.msra.mxu0 0
        %1349 = vmatprep.subr.bf16.mxu0 0
        %1350 = vmatpush1.bf16.msra.mxu0 0
        %1351 = vmatprep.subr.bf16.mxu0 0
        %1352 = vmatpush1.bf16.msra.mxu0 0
        %1353 = vmatprep.subr.bf16.mxu0 0
        %1354 = vmatpush1.bf16.msra.mxu0 0
        %1355 = vmatprep.subr.bf16.mxu0 0
        %1356 = vmatpush1.bf16.msra.mxu0 0
        %1357 = vmatprep.subr.bf16.mxu0 0
        %1358 = vmatpush1.bf16.msra.mxu0 0
        %1359 = vmatprep.subr.bf16.mxu0 0
        %1360 = vmatpush1.bf16.msra.mxu0 0
        %1361 = vmatprep.mubr.bf16.mxu0 0
        %1362 = vmatmul.mubr.bf16.gmra.mrb[0].mxu0 %v695
        %v1363 = vpop.f32.mrb[0].mxu0
        %v1364 = vadd.f32 %v1268, %v1363
        %v1365 = vpop.f32.mrb[0].mxu0
        %v1366 = vpop.f32.mrb[0].mxu0
        %v1367 = vpop.f32.mrb[0].mxu0
        %1368 = vdwg.mxu0
        %v1377 = vunpack.c.l.b16 %v1193
        %v1378 = vunpack.c.l.b16 %v1194
        %v1379 = vunpack.c.l.b16 %v1195
        %v1380 = vunpack.c.l.b16 %v1196
        %v1381 = vunpack.c.l.b16 %v1197
        %v1382 = vunpack.c.l.b16 %v1198
        %v1383 = vunpack.c.l.b16 %v1199
        %v1384 = vunpack.c.l.b16 %v1200
        %v1385 = vpack.c.b16 %v1378, %v1377
        %v1386 = vpack.c.b16 %v1380, %v1379
        %v1387 = vpack.c.b16 %v1382, %v1381
        %v1388 = vpack.c.b16 %v1384, %v1383
        %1393 = vmatprep.subr.bf16.mxu0 0
        %1394 = vmatpush1.bf16.msra.mxu0 %v1385
        %1395 = vmatprep.subr.bf16.mxu0 0
        %1396 = vmatpush1.bf16.msra.mxu0 %v1386
        %1397 = vmatprep.subr.bf16.mxu0 0
        %1398 = vmatpush1.bf16.msra.mxu0 %v1387
        %1399 = vmatprep.subr.bf16.mxu0 0
        %1400 = vmatpush1.bf16.msra.mxu0 %v1388
        %1401 = vmatprep.subr.bf16.mxu0 0
        %1402 = vmatpush1.bf16.msra.mxu0 0
        %1403 = vmatprep.subr.bf16.mxu0 0
        %1404 = vmatpush1.bf16.msra.mxu0 0
        %1405 = vmatprep.subr.bf16.mxu0 0
        %1406 = vmatpush1.bf16.msra.mxu0 0
        %1407 = vmatprep.subr.bf16.mxu0 0
        %1408 = vmatpush1.bf16.msra.mxu0 0
        %1409 = vmatprep.subr.bf16.mxu0 0
        %1410 = vmatpush1.bf16.msra.mxu0 0
        %1411 = vmatprep.subr.bf16.mxu0 0
        %1412 = vmatpush1.bf16.msra.mxu0 0
        %1413 = vmatprep.subr.bf16.mxu0 0
        %1414 = vmatpush1.bf16.msra.mxu0 0
        %1415 = vmatprep.subr.bf16.mxu0 0
        %1416 = vmatpush1.bf16.msra.mxu0 0
        %1417 = vmatprep.subr.bf16.mxu0 0
        %1418 = vmatpush1.bf16.msra.mxu0 0
        %1419 = vmatprep.subr.bf16.mxu0 0
        %1420 = vmatpush1.bf16.msra.mxu0 0
        %1421 = vmatprep.subr.bf16.mxu0 0
        %1422 = vmatpush1.bf16.msra.mxu0 0
        %1423 = vmatprep.subr.bf16.mxu0 0
        %1424 = vmatpush1.bf16.msra.mxu0 0
        %1425 = vmatprep.mubr.bf16.mxu0 0
        %1426 = vmatmul.mubr.bf16.gmra.mrb[0].mxu0 %v695
        %v1427 = vpop.f32.mrb[0].mxu0
        %v1428 = vadd.f32 %v1272, %v1427
        %v1429 = vpop.f32.mrb[0].mxu0
        %v1430 = vpop.f32.mrb[0].mxu0
        %v1431 = vpop.f32.mrb[0].mxu0
        %1432 = vdwg.mxu0
        %v1441 = vunpack.c.l.b16 %v1201
        %v1442 = vunpack.c.l.b16 %v1202
        %v1443 = vunpack.c.l.b16 %v1203
        %v1444 = vunpack.c.l.b16 %v1204
        %v1445 = vunpack.c.l.b16 %v1205
        %v1446 = vunpack.c.l.b16 %v1206
        %v1447 = vunpack.c.l.b16 %v1207
        %v1448 = vunpack.c.l.b16 %v1208
        %v1449 = vpack.c.b16 %v1442, %v1441
        %v1450 = vpack.c.b16 %v1444, %v1443
        %v1451 = vpack.c.b16 %v1446, %v1445
        %v1452 = vpack.c.b16 %v1448, %v1447
        %1457 = vmatprep.subr.bf16.mxu0 0
        %1458 = vmatpush1.bf16.msra.mxu0 %v1449
        %1459 = vmatprep.subr.bf16.mxu0 0
        %1460 = vmatpush1.bf16.msra.mxu0 %v1450
        %1461 = vmatprep.subr.bf16.mxu0 0
        %1462 = vmatpush1.bf16.msra.mxu0 %v1451
        %1463 = vmatprep.subr.bf16.mxu0 0
        %1464 = vmatpush1.bf16.msra.mxu0 %v1452
        %1465 = vmatprep.subr.bf16.mxu0 0
        %1466 = vmatpush1.bf16.msra.mxu0 0
        %1467 = vmatprep.subr.bf16.mxu0 0
        %1468 = vmatpush1.bf16.msra.mxu0 0
        %1469 = vmatprep.subr.bf16.mxu0 0
        %1470 = vmatpush1.bf16.msra.mxu0 0
        %1471 = vmatprep.subr.bf16.mxu0 0
        %1472 = vmatpush1.bf16.msra.mxu0 0
        %1473 = vmatprep.subr.bf16.mxu0 0
        %1474 = vmatpush1.bf16.msra.mxu0 0
        %1475 = vmatprep.subr.bf16.mxu0 0
        %1476 = vmatpush1.bf16.msra.mxu0 0
        %1477 = vmatprep.subr.bf16.mxu0 0
        %1478 = vmatpush1.bf16.msra.mxu0 0
        %1479 = vmatprep.subr.bf16.mxu0 0
        %1480 = vmatpush1.bf16.msra.mxu0 0
        %1481 = vmatprep.subr.bf16.mxu0 0
        %1482 = vmatpush1.bf16.msra.mxu0 0
        %1483 = vmatprep.subr.bf16.mxu0 0
        %1484 = vmatpush1.bf16.msra.mxu0 0
        %1485 = vmatprep.subr.bf16.mxu0 0
        %1486 = vmatpush1.bf16.msra.mxu0 0
        %1487 = vmatprep.subr.bf16.mxu0 0
        %1488 = vmatpush1.bf16.msra.mxu0 0
        %1489 = vmatprep.mubr.bf16.mxu0 0
        %1490 = vmatmul.mubr.bf16.gmra.mrb[0].mxu0 %v695
        %v1491 = vpop.f32.mrb[0].mxu0
        %v1492 = vadd.f32 %v1276, %v1491
        %v1493 = vpop.f32.mrb[0].mxu0
        %v1494 = vpop.f32.mrb[0].mxu0
        %v1495 = vpop.f32.mrb[0].mxu0
        %1496 = vdwg.mxu0
        %v1505 = vunpack.c.l.b16 %v1209
        %v1506 = vunpack.c.l.b16 %v1210
        %v1507 = vunpack.c.l.b16 %v1211
        %v1508 = vunpack.c.l.b16 %v1212
        %v1509 = vunpack.c.l.b16 %v1213
        %v1510 = vunpack.c.l.b16 %v1214
        %v1511 = vunpack.c.l.b16 %v1215
        %v1512 = vunpack.c.l.b16 %v1216
        %v1513 = vpack.c.b16 %v1506, %v1505
        %v1514 = vpack.c.b16 %v1508, %v1507
        %v1515 = vpack.c.b16 %v1510, %v1509
        %v1516 = vpack.c.b16 %v1512, %v1511
        %1521 = vmatprep.subr.bf16.mxu0 0
        %1522 = vmatpush1.bf16.msra.mxu0 %v1513
        %1523 = vmatprep.subr.bf16.mxu0 0
        %1524 = vmatpush1.bf16.msra.mxu0 %v1514
        %1525 = vmatprep.subr.bf16.mxu0 0
        %1526 = vmatpush1.bf16.msra.mxu0 %v1515
        %1527 = vmatprep.subr.bf16.mxu0 0
        %1528 = vmatpush1.bf16.msra.mxu0 %v1516
        %1529 = vmatprep.subr.bf16.mxu0 0
        %1530 = vmatpush1.bf16.msra.mxu0 0
        %1531 = vmatprep.subr.bf16.mxu0 0
        %1532 = vmatpush1.bf16.msra.mxu0 0
        %1533 = vmatprep.subr.bf16.mxu0 0
        %1534 = vmatpush1.bf16.msra.mxu0 0
        %1535 = vmatprep.subr.bf16.mxu0 0
        %1536 = vmatpush1.bf16.msra.mxu0 0
        %1537 = vmatprep.subr.bf16.mxu0 0
        %1538 = vmatpush1.bf16.msra.mxu0 0
        %1539 = vmatprep.subr.bf16.mxu0 0
        %1540 = vmatpush1.bf16.msra.mxu0 0
        %1541 = vmatprep.subr.bf16.mxu0 0
        %1542 = vmatpush1.bf16.msra.mxu0 0
        %1543 = vmatprep.subr.bf16.mxu0 0
        %1544 = vmatpush1.bf16.msra.mxu0 0
        %1545 = vmatprep.subr.bf16.mxu0 0
        %1546 = vmatpush1.bf16.msra.mxu0 0
        %1547 = vmatprep.subr.bf16.mxu0 0
        %1548 = vmatpush1.bf16.msra.mxu0 0
        %1549 = vmatprep.subr.bf16.mxu0 0
        %1550 = vmatpush1.bf16.msra.mxu0 0
        %1551 = vmatprep.subr.bf16.mxu0 0
        %1552 = vmatpush1.bf16.msra.mxu0 0
        %1553 = vmatprep.mubr.bf16.mxu0 0
        %1554 = vmatmul.mubr.bf16.gmra.mrb[0].mxu0 %v695
        %v1555 = vpop.f32.mrb[0].mxu0
        %v1556 = vadd.f32 %v1280, %v1555
        %v1557 = vpop.f32.mrb[0].mxu0
        %v1558 = vpop.f32.mrb[0].mxu0
        %v1559 = vpop.f32.mrb[0].mxu0
        %1560 = vdwg.mxu0
        %v1569 = vunpack.c.l.b16 %v1217
        %v1570 = vunpack.c.l.b16 %v1218
        %v1571 = vunpack.c.l.b16 %v1219
        %v1572 = vunpack.c.l.b16 %v1220
        %v1573 = vunpack.c.l.b16 %v1221
        %v1574 = vunpack.c.l.b16 %v1222
        %v1575 = vunpack.c.l.b16 %v1223
        %v1576 = vunpack.c.l.b16 %v1224
        %v1577 = vpack.c.b16 %v1570, %v1569
        %v1578 = vpack.c.b16 %v1572, %v1571
        %v1579 = vpack.c.b16 %v1574, %v1573
        %v1580 = vpack.c.b16 %v1576, %v1575
        %1585 = vmatprep.subr.bf16.mxu0 0
        %1586 = vmatpush1.bf16.msra.mxu0 %v1577
        %1587 = vmatprep.subr.bf16.mxu0 0
        %1588 = vmatpush1.bf16.msra.mxu0 %v1578
        %1589 = vmatprep.subr.bf16.mxu0 0
        %1590 = vmatpush1.bf16.msra.mxu0 %v1579
        %1591 = vmatprep.subr.bf16.mxu0 0
        %1592 = vmatpush1.bf16.msra.mxu0 %v1580
        %1593 = vmatprep.subr.bf16.mxu0 0
        %1594 = vmatpush1.bf16.msra.mxu0 0
        %1595 = vmatprep.subr.bf16.mxu0 0
        %1596 = vmatpush1.bf16.msra.mxu0 0
        %1597 = vmatprep.subr.bf16.mxu0 0
        %1598 = vmatpush1.bf16.msra.mxu0 0
        %1599 = vmatprep.subr.bf16.mxu0 0
        %1600 = vmatpush1.bf16.msra.mxu0 0
        %1601 = vmatprep.subr.bf16.mxu0 0
        %1602 = vmatpush1.bf16.msra.mxu0 0
        %1603 = vmatprep.subr.bf16.mxu0 0
        %1604 = vmatpush1.bf16.msra.mxu0 0
        %1605 = vmatprep.subr.bf16.mxu0 0
        %1606 = vmatpush1.bf16.msra.mxu0 0
        %1607 = vmatprep.subr.bf16.mxu0 0
        %1608 = vmatpush1.bf16.msra.mxu0 0
        %1609 = vmatprep.subr.bf16.mxu0 0
        %1610 = vmatpush1.bf16.msra.mxu0 0
        %1611 = vmatprep.subr.bf16.mxu0 0
        %1612 = vmatpush1.bf16.msra.mxu0 0
        %1613 = vmatprep.subr.bf16.mxu0 0
        %1614 = vmatpush1.bf16.msra.mxu0 0
        %1615 = vmatprep.subr.bf16.mxu0 0
        %1616 = vmatpush1.bf16.msra.mxu0 0
        %1617 = vmatprep.mubr.bf16.mxu0 0
        %1618 = vmatmul.mubr.bf16.gmra.mrb[0].mxu0 %v695
        %v1619 = vpop.f32.mrb[0].mxu0
        %v1620 = vadd.f32 %v1284, %v1619
        %v1621 = vpop.f32.mrb[0].mxu0
        %v1622 = vpop.f32.mrb[0].mxu0
        %v1623 = vpop.f32.mrb[0].mxu0
        %1624 = vdwg.mxu0
        %v1633 = vunpack.c.l.b16 %v1225
        %v1634 = vunpack.c.l.b16 %v1226
        %v1635 = vunpack.c.l.b16 %v1227
        %v1636 = vunpack.c.l.b16 %v1228
        %v1637 = vunpack.c.l.b16 %v1229
        %v1638 = vunpack.c.l.b16 %v1230
        %v1639 = vunpack.c.l.b16 %v1231
        %v1640 = vunpack.c.l.b16 %v1232
        %v1641 = vpack.c.b16 %v1634, %v1633
        %v1642 = vpack.c.b16 %v1636, %v1635
        %v1643 = vpack.c.b16 %v1638, %v1637
        %v1644 = vpack.c.b16 %v1640, %v1639
        %1649 = vmatprep.subr.bf16.mxu0 0
        %1650 = vmatpush1.bf16.msra.mxu0 %v1641
        %1651 = vmatprep.subr.bf16.mxu0 0
        %1652 = vmatpush1.bf16.msra.mxu0 %v1642
        %1653 = vmatprep.subr.bf16.mxu0 0
        %1654 = vmatpush1.bf16.msra.mxu0 %v1643
        %1655 = vmatprep.subr.bf16.mxu0 0
        %1656 = vmatpush1.bf16.msra.mxu0 %v1644
        %1657 = vmatprep.subr.bf16.mxu0 0
        %1658 = vmatpush1.bf16.msra.mxu0 0
        %1659 = vmatprep.subr.bf16.mxu0 0
        %1660 = vmatpush1.bf16.msra.mxu0 0
        %1661 = vmatprep.subr.bf16.mxu0 0
        %1662 = vmatpush1.bf16.msra.mxu0 0
        %1663 = vmatprep.subr.bf16.mxu0 0
        %1664 = vmatpush1.bf16.msra.mxu0 0
        %1665 = vmatprep.subr.bf16.mxu0 0
        %1666 = vmatpush1.bf16.msra.mxu0 0
        %1667 = vmatprep.subr.bf16.mxu0 0
        %1668 = vmatpush1.bf16.msra.mxu0 0
        %1669 = vmatprep.subr.bf16.mxu0 0
        %1670 = vmatpush1.bf16.msra.mxu0 0
        %1671 = vmatprep.subr.bf16.mxu0 0
        %1672 = vmatpush1.bf16.msra.mxu0 0
        %1673 = vmatprep.subr.bf16.mxu0 0
        %1674 = vmatpush1.bf16.msra.mxu0 0
        %1675 = vmatprep.subr.bf16.mxu0 0
        %1676 = vmatpush1.bf16.msra.mxu0 0
        %1677 = vmatprep.subr.bf16.mxu0 0
        %1678 = vmatpush1.bf16.msra.mxu0 0
        %1679 = vmatprep.subr.bf16.mxu0 0
        %1680 = vmatpush1.bf16.msra.mxu0 0
        %1681 = vmatprep.mubr.bf16.mxu0 0
        %1682 = vmatmul.mubr.bf16.gmra.mrb[0].mxu0 %v695
        %v1683 = vpop.f32.mrb[0].mxu0
        %v1684 = vadd.f32 %v1288, %v1683
        %v1685 = vpop.f32.mrb[0].mxu0
        %v1686 = vpop.f32.mrb[0].mxu0
        %v1687 = vpop.f32.mrb[0].mxu0
        %1688 = vdwg.mxu0
        %v1697 = vunpack.c.l.b16 %v1233
        %v1698 = vunpack.c.l.b16 %v1234
        %v1699 = vunpack.c.l.b16 %v1235
        %v1700 = vunpack.c.l.b16 %v1236
        %v1701 = vunpack.c.l.b16 %v1237
        %v1702 = vunpack.c.l.b16 %v1238
        %v1703 = vunpack.c.l.b16 %v1239
        %v1704 = vunpack.c.l.b16 %v1240
        %v1705 = vpack.c.b16 %v1698, %v1697
        %v1706 = vpack.c.b16 %v1700, %v1699
        %v1707 = vpack.c.b16 %v1702, %v1701
        %v1708 = vpack.c.b16 %v1704, %v1703
        %1713 = vmatprep.subr.bf16.mxu0 0
        %1714 = vmatpush1.bf16.msra.mxu0 %v1705
        %1715 = vmatprep.subr.bf16.mxu0 0
        %1716 = vmatpush1.bf16.msra.mxu0 %v1706
        %1717 = vmatprep.subr.bf16.mxu0 0
        %1718 = vmatpush1.bf16.msra.mxu0 %v1707
        %1719 = vmatprep.subr.bf16.mxu0 0
        %1720 = vmatpush1.bf16.msra.mxu0 %v1708
        %1721 = vmatprep.subr.bf16.mxu0 0
        %1722 = vmatpush1.bf16.msra.mxu0 0
        %1723 = vmatprep.subr.bf16.mxu0 0
        %1724 = vmatpush1.bf16.msra.mxu0 0
        %1725 = vmatprep.subr.bf16.mxu0 0
        %1726 = vmatpush1.bf16.msra.mxu0 0
        %1727 = vmatprep.subr.bf16.mxu0 0
        %1728 = vmatpush1.bf16.msra.mxu0 0
        %1729 = vmatprep.subr.bf16.mxu0 0
        %1730 = vmatpush1.bf16.msra.mxu0 0
        %1731 = vmatprep.subr.bf16.mxu0 0
        %1732 = vmatpush1.bf16.msra.mxu0 0
        %1733 = vmatprep.subr.bf16.mxu0 0
        %1734 = vmatpush1.bf16.msra.mxu0 0
        %1735 = vmatprep.subr.bf16.mxu0 0
        %1736 = vmatpush1.bf16.msra.mxu0 0
        %1737 = vmatprep.subr.bf16.mxu0 0
        %1738 = vmatpush1.bf16.msra.mxu0 0
        %1739 = vmatprep.subr.bf16.mxu0 0
        %1740 = vmatpush1.bf16.msra.mxu0 0
        %1741 = vmatprep.subr.bf16.mxu0 0
        %1742 = vmatpush1.bf16.msra.mxu0 0
        %1743 = vmatprep.subr.bf16.mxu0 0
        %1744 = vmatpush1.bf16.msra.mxu0 0
        %1745 = vmatprep.mubr.bf16.mxu0 0
        %1746 = vmatmul.mubr.bf16.gmra.mrb[0].mxu0 %v695
        %v1747 = vpop.f32.mrb[0].mxu0
        %v1748 = vadd.f32 %v1292, %v1747
        %v1749 = vpop.f32.mrb[0].mxu0
        %v1750 = vpop.f32.mrb[0].mxu0
        %v1751 = vpop.f32.mrb[0].mxu0
        %1752 = vdwg.mxu0
        %v1761 = vunpack.c.l.b16 %v1241
        %v1762 = vunpack.c.l.b16 %v1242
        %v1763 = vunpack.c.l.b16 %v1243
        %v1764 = vunpack.c.l.b16 %v1244
        %v1765 = vunpack.c.l.b16 %v1245
        %v1766 = vunpack.c.l.b16 %v1246
        %v1767 = vunpack.c.l.b16 %v1247
        %v1768 = vunpack.c.l.b16 %v1248
        %v1769 = vpack.c.b16 %v1762, %v1761
        %v1770 = vpack.c.b16 %v1764, %v1763
        %v1771 = vpack.c.b16 %v1766, %v1765
        %v1772 = vpack.c.b16 %v1768, %v1767
        %1777 = vmatprep.subr.bf16.mxu0 0
        %1778 = vmatpush1.bf16.msra.mxu0 %v1769
        %1779 = vmatprep.subr.bf16.mxu0 0
        %1780 = vmatpush1.bf16.msra.mxu0 %v1770
        %1781 = vmatprep.subr.bf16.mxu0 0
        %1782 = vmatpush1.bf16.msra.mxu0 %v1771
        %1783 = vmatprep.subr.bf16.mxu0 0
        %1784 = vmatpush1.bf16.msra.mxu0 %v1772
        %1785 = vmatprep.subr.bf16.mxu0 0
        %1786 = vmatpush1.bf16.msra.mxu0 0
        %1787 = vmatprep.subr.bf16.mxu0 0
        %1788 = vmatpush1.bf16.msra.mxu0 0
        %1789 = vmatprep.subr.bf16.mxu0 0
        %1790 = vmatpush1.bf16.msra.mxu0 0
        %1791 = vmatprep.subr.bf16.mxu0 0
        %1792 = vmatpush1.bf16.msra.mxu0 0
        %1793 = vmatprep.subr.bf16.mxu0 0
        %1794 = vmatpush1.bf16.msra.mxu0 0
        %1795 = vmatprep.subr.bf16.mxu0 0
        %1796 = vmatpush1.bf16.msra.mxu0 0
        %1797 = vmatprep.subr.bf16.mxu0 0
        %1798 = vmatpush1.bf16.msra.mxu0 0
        %1799 = vmatprep.subr.bf16.mxu0 0
        %1800 = vmatpush1.bf16.msra.mxu0 0
        %1801 = vmatprep.subr.bf16.mxu0 0
        %1802 = vmatpush1.bf16.msra.mxu0 0
        %1803 = vmatprep.subr.bf16.mxu0 0
        %1804 = vmatpush1.bf16.msra.mxu0 0
        %1805 = vmatprep.subr.bf16.mxu0 0
        %1806 = vmatpush1.bf16.msra.mxu0 0
        %1807 = vmatprep.subr.bf16.mxu0 0
        %1808 = vmatpush1.bf16.msra.mxu0 0
        %1809 = vmatprep.mubr.bf16.mxu0 0
        %1810 = vmatmul.mubr.bf16.gmra.mrb[0].mxu0 %v695
        %v1811 = vpop.f32.mrb[0].mxu0
        %v1812 = vadd.f32 %v1296, %v1811
        %v1813 = vpop.f32.mrb[0].mxu0
        %v1814 = vpop.f32.mrb[0].mxu0
        %v1815 = vpop.f32.mrb[0].mxu0
        %1816 = vdwg.mxu0
        %v1817 = vld [vmem:[%s6] sm:$0xf]
        %v1818 = vld [vmem:[%s6 + $0x4] sm:$0xf]
        %v1819 = vld [vmem:[%s6 + $0x8] sm:$0xf]
        %v1820 = vld [vmem:[%s6 + $0xc] sm:$0xf]
        %v1821 = vld [vmem:[%s6 + $0x10] sm:$0xf]
        %v1822 = vld [vmem:[%s6 + $0x14] sm:$0xf]
        %v1823 = vld [vmem:[%s6 + $0x18] sm:$0xf]
        %v1824 = vld [vmem:[%s6 + $0x1c] sm:$0xf]
        %v1825 = vld [vmem:[%s6 + $0x20] sm:$0xf]
        %v1826 = vld [vmem:[%s6 + $0x24] sm:$0xf]
        %v1827 = vld [vmem:[%s6 + $0x28] sm:$0xf]
        %v1828 = vld [vmem:[%s6 + $0x2c] sm:$0xf]
        %v1829 = vld [vmem:[%s6 + $0x30] sm:$0xf]
        %v1830 = vld [vmem:[%s6 + $0x34] sm:$0xf]
        %v1831 = vld [vmem:[%s6 + $0x38] sm:$0xf]
        %v1832 = vld [vmem:[%s6 + $0x3c] sm:$0xf]
        %v1833 = vld [vmem:[%s6 + $0x40] sm:$0xf]
        %v1834 = vld [vmem:[%s6 + $0x44] sm:$0xf]
        %v1835 = vld [vmem:[%s6 + $0x48] sm:$0xf]
        %v1836 = vld [vmem:[%s6 + $0x4c] sm:$0xf]
        %v1837 = vld [vmem:[%s6 + $0x50] sm:$0xf]
        %v1838 = vld [vmem:[%s6 + $0x54] sm:$0xf]
        %v1839 = vld [vmem:[%s6 + $0x58] sm:$0xf]
        %v1840 = vld [vmem:[%s6 + $0x5c] sm:$0xf]
        %v1841 = vld [vmem:[%s6 + $0x60] sm:$0xf]
        %v1842 = vld [vmem:[%s6 + $0x64] sm:$0xf]
        %v1843 = vld [vmem:[%s6 + $0x68] sm:$0xf]
        %v1844 = vld [vmem:[%s6 + $0x6c] sm:$0xf]
        %v1845 = vld [vmem:[%s6 + $0x70] sm:$0xf]
        %v1846 = vld [vmem:[%s6 + $0x74] sm:$0xf]
        %v1847 = vld [vmem:[%s6 + $0x78] sm:$0xf]
        %v1848 = vld [vmem:[%s6 + $0x7c] sm:$0xf]
        %v1849 = vld [vmem:[%s6 + $0x80] sm:$0xf]
        %v1850 = vld [vmem:[%s6 + $0x84] sm:$0xf]
        %v1851 = vld [vmem:[%s6 + $0x88] sm:$0xf]
        %v1852 = vld [vmem:[%s6 + $0x8c] sm:$0xf]
        %v1853 = vld [vmem:[%s6 + $0x90] sm:$0xf]
        %v1854 = vld [vmem:[%s6 + $0x94] sm:$0xf]
        %v1855 = vld [vmem:[%s6 + $0x98] sm:$0xf]
        %v1856 = vld [vmem:[%s6 + $0x9c] sm:$0xf]
        %v1857 = vld [vmem:[%s6 + $0xa0] sm:$0xf]
        %v1858 = vld [vmem:[%s6 + $0xa4] sm:$0xf]
        %v1859 = vld [vmem:[%s6 + $0xa8] sm:$0xf]
        %v1860 = vld [vmem:[%s6 + $0xac] sm:$0xf]
        %v1861 = vld [vmem:[%s6 + $0xb0] sm:$0xf]
        %v1862 = vld [vmem:[%s6 + $0xb4] sm:$0xf]
        %v1863 = vld [vmem:[%s6 + $0xb8] sm:$0xf]
        %v1864 = vld [vmem:[%s6 + $0xbc] sm:$0xf]
        %v1865 = vld [vmem:[%s6 + $0xc0] sm:$0xf]
        %v1866 = vld [vmem:[%s6 + $0xc4] sm:$0xf]
        %v1867 = vld [vmem:[%s6 + $0xc8] sm:$0xf]
        %v1868 = vld [vmem:[%s6 + $0xcc] sm:$0xf]
        %v1869 = vld [vmem:[%s6 + $0xd0] sm:$0xf]
        %v1870 = vld [vmem:[%s6 + $0xd4] sm:$0xf]
        %v1871 = vld [vmem:[%s6 + $0xd8] sm:$0xf]
        %v1872 = vld [vmem:[%s6 + $0xdc] sm:$0xf]
        %v1873 = vld [vmem:[%s6 + $0xe0] sm:$0xf]
        %v1874 = vld [vmem:[%s6 + $0xe4] sm:$0xf]
        %v1875 = vld [vmem:[%s6 + $0xe8] sm:$0xf]
        %v1876 = vld [vmem:[%s6 + $0xec] sm:$0xf]
        %v1877 = vld [vmem:[%s6 + $0xf0] sm:$0xf]
        %v1878 = vld [vmem:[%s6 + $0xf4] sm:$0xf]
        %v1879 = vld [vmem:[%s6 + $0xf8] sm:$0xf]
        %v1880 = vld [vmem:[%s6 + $0xfc] sm:$0xf]
        %v1881 = vld [vmem:[%s9] sm:$0x1]
        %v1882 = vld [vmem:[%s9 + $0x1] sm:$0x1]
        %v1883 = vld [vmem:[%s9 + $0x2] sm:$0x1]
        %v1884 = vld [vmem:[%s9 + $0x3] sm:$0x1]
        %v1885 = vld [vmem:[%s9 + $0x4] sm:$0x1]
        %v1886 = vld [vmem:[%s9 + $0x5] sm:$0x1]
        %v1887 = vld [vmem:[%s9 + $0x6] sm:$0x1]
        %v1888 = vld [vmem:[%s9 + $0x7] sm:$0x1]
        %v1897 = vlaneseq
        %v1898 = vshrl.u32 %v1897, 7
        %v1899 = vsub.s32 0, %v1898
        %v1900 = vrot.slane %v1881, %v1899
        %v1901 = vlaneseq
        %v1902 = vshrl.u32 %v1901, 7
        %v1903 = vsub.s32 0, %v1902
        %v1904 = vrot.slane %v1882, %v1903
        %v1905 = vlaneseq
        %v1906 = vshrl.u32 %v1905, 7
        %v1907 = vsub.s32 0, %v1906
        %v1908 = vrot.slane %v1883, %v1907
        %v1909 = vlaneseq
        %v1910 = vshrl.u32 %v1909, 7
        %v1911 = vsub.s32 0, %v1910
        %v1912 = vrot.slane %v1884, %v1911
        %v1913 = vlaneseq
        %v1914 = vshrl.u32 %v1913, 7
        %v1915 = vsub.s32 0, %v1914
        %v1916 = vrot.slane %v1885, %v1915
        %v1917 = vlaneseq
        %v1918 = vshrl.u32 %v1917, 7
        %v1919 = vsub.s32 0, %v1918
        %v1920 = vrot.slane %v1886, %v1919
        %v1921 = vlaneseq
        %v1922 = vshrl.u32 %v1921, 7
        %v1923 = vsub.s32 0, %v1922
        %v1924 = vrot.slane %v1887, %v1923
        %v1925 = vlaneseq
        %v1926 = vshrl.u32 %v1925, 7
        %v1927 = vsub.s32 0, %v1926
        %v1928 = vrot.slane %v1888, %v1927
        %v1945 = vunpack.c.l.b16 %v1817
        %v1946 = vunpack.c.l.b16 %v1818
        %v1947 = vunpack.c.l.b16 %v1819
        %v1948 = vunpack.c.l.b16 %v1820
        %v1949 = vunpack.c.l.b16 %v1821
        %v1950 = vunpack.c.l.b16 %v1822
        %v1951 = vunpack.c.l.b16 %v1823
        %v1952 = vunpack.c.l.b16 %v1824
        %v1953 = vpack.c.b16 %v1946, %v1945
        %v1954 = vpack.c.b16 %v1948, %v1947
        %v1955 = vpack.c.b16 %v1950, %v1949
        %v1956 = vpack.c.b16 %v1952, %v1951
        %1961 = vmatprep.subr.bf16.mxu0 0
        %1962 = vmatpush1.bf16.msra.mxu0 %v1953
        %1963 = vmatprep.subr.bf16.mxu0 0
        %1964 = vmatpush1.bf16.msra.mxu0 %v1954
        %1965 = vmatprep.subr.bf16.mxu0 0
        %1966 = vmatpush1.bf16.msra.mxu0 %v1955
        %1967 = vmatprep.subr.bf16.mxu0 0
        %1968 = vmatpush1.bf16.msra.mxu0 %v1956
        %1969 = vmatprep.subr.bf16.mxu0 0
        %1970 = vmatpush1.bf16.msra.mxu0 0
        %1971 = vmatprep.subr.bf16.mxu0 0
        %1972 = vmatpush1.bf16.msra.mxu0 0
        %1973 = vmatprep.subr.bf16.mxu0 0
        %1974 = vmatpush1.bf16.msra.mxu0 0
        %1975 = vmatprep.subr.bf16.mxu0 0
        %1976 = vmatpush1.bf16.msra.mxu0 0
        %1977 = vmatprep.subr.bf16.mxu0 0
        %1978 = vmatpush1.bf16.msra.mxu0 0
        %1979 = vmatprep.subr.bf16.mxu0 0
        %1980 = vmatpush1.bf16.msra.mxu0 0
        %1981 = vmatprep.subr.bf16.mxu0 0
        %1982 = vmatpush1.bf16.msra.mxu0 0
        %1983 = vmatprep.subr.bf16.mxu0 0
        %1984 = vmatpush1.bf16.msra.mxu0 0
        %1985 = vmatprep.subr.bf16.mxu0 0
        %1986 = vmatpush1.bf16.msra.mxu0 0
        %1987 = vmatprep.subr.bf16.mxu0 0
        %1988 = vmatpush1.bf16.msra.mxu0 0
        %1989 = vmatprep.subr.bf16.mxu0 0
        %1990 = vmatpush1.bf16.msra.mxu0 0
        %1991 = vmatprep.subr.bf16.mxu0 0
        %1992 = vmatpush1.bf16.msra.mxu0 0
        %1993 = vmatprep.mubr.bf16.mxu0 0
        %1994 = vmatmul.mubr.bf16.gmra.mrb[0].mxu0 %v695
        %v1995 = vpop.f32.mrb[0].mxu0
        %v1996 = vadd.f32 %v1900, %v1995
        %v1997 = vpop.f32.mrb[0].mxu0
        %v1998 = vpop.f32.mrb[0].mxu0
        %v1999 = vpop.f32.mrb[0].mxu0
        %2000 = vdwg.mxu0
        %v2009 = vunpack.c.l.b16 %v1825
        %v2010 = vunpack.c.l.b16 %v1826
        %v2011 = vunpack.c.l.b16 %v1827
        %v2012 = vunpack.c.l.b16 %v1828
        %v2013 = vunpack.c.l.b16 %v1829
        %v2014 = vunpack.c.l.b16 %v1830
        %v2015 = vunpack.c.l.b16 %v1831
        %v2016 = vunpack.c.l.b16 %v1832
        %v2017 = vpack.c.b16 %v2010, %v2009
        %v2018 = vpack.c.b16 %v2012, %v2011
        %v2019 = vpack.c.b16 %v2014, %v2013
        %v2020 = vpack.c.b16 %v2016, %v2015
        %2025 = vmatprep.subr.bf16.mxu0 0
        %2026 = vmatpush1.bf16.msra.mxu0 %v2017
        %2027 = vmatprep.subr.bf16.mxu0 0
        %2028 = vmatpush1.bf16.msra.mxu0 %v2018
        %2029 = vmatprep.subr.bf16.mxu0 0
        %2030 = vmatpush1.bf16.msra.mxu0 %v2019
        %2031 = vmatprep.subr.bf16.mxu0 0
        %2032 = vmatpush1.bf16.msra.mxu0 %v2020
        %2033 = vmatprep.subr.bf16.mxu0 0
        %2034 = vmatpush1.bf16.msra.mxu0 0
        %2035 = vmatprep.subr.bf16.mxu0 0
        %2036 = vmatpush1.bf16.msra.mxu0 0
        %2037 = vmatprep.subr.bf16.mxu0 0
        %2038 = vmatpush1.bf16.msra.mxu0 0
        %2039 = vmatprep.subr.bf16.mxu0 0
        %2040 = vmatpush1.bf16.msra.mxu0 0
        %2041 = vmatprep.subr.bf16.mxu0 0
        %2042 = vmatpush1.bf16.msra.mxu0 0
        %2043 = vmatprep.subr.bf16.mxu0 0
        %2044 = vmatpush1.bf16.msra.mxu0 0
        %2045 = vmatprep.subr.bf16.mxu0 0
        %2046 = vmatpush1.bf16.msra.mxu0 0
        %2047 = vmatprep.subr.bf16.mxu0 0
        %2048 = vmatpush1.bf16.msra.mxu0 0
        %2049 = vmatprep.subr.bf16.mxu0 0
        %2050 = vmatpush1.bf16.msra.mxu0 0
        %2051 = vmatprep.subr.bf16.mxu0 0
        %2052 = vmatpush1.bf16.msra.mxu0 0
        %2053 = vmatprep.subr.bf16.mxu0 0
        %2054 = vmatpush1.bf16.msra.mxu0 0
        %2055 = vmatprep.subr.bf16.mxu0 0
        %2056 = vmatpush1.bf16.msra.mxu0 0
        %2057 = vmatprep.mubr.bf16.mxu0 0
        %2058 = vmatmul.mubr.bf16.gmra.mrb[0].mxu0 %v695
        %v2059 = vpop.f32.mrb[0].mxu0
        %v2060 = vadd.f32 %v1904, %v2059
        %v2061 = vpop.f32.mrb[0].mxu0
        %v2062 = vpop.f32.mrb[0].mxu0
        %v2063 = vpop.f32.mrb[0].mxu0
        %2064 = vdwg.mxu0
        %v2073 = vunpack.c.l.b16 %v1833
        %v2074 = vunpack.c.l.b16 %v1834
        %v2075 = vunpack.c.l.b16 %v1835
        %v2076 = vunpack.c.l.b16 %v1836
        %v2077 = vunpack.c.l.b16 %v1837
        %v2078 = vunpack.c.l.b16 %v1838
        %v2079 = vunpack.c.l.b16 %v1839
        %v2080 = vunpack.c.l.b16 %v1840
        %v2081 = vpack.c.b16 %v2074, %v2073
        %v2082 = vpack.c.b16 %v2076, %v2075
        %v2083 = vpack.c.b16 %v2078, %v2077
        %v2084 = vpack.c.b16 %v2080, %v2079
        %2089 = vmatprep.subr.bf16.mxu0 0
        %2090 = vmatpush1.bf16.msra.mxu0 %v2081
        %2091 = vmatprep.subr.bf16.mxu0 0
        %2092 = vmatpush1.bf16.msra.mxu0 %v2082
        %2093 = vmatprep.subr.bf16.mxu0 0
        %2094 = vmatpush1.bf16.msra.mxu0 %v2083
        %2095 = vmatprep.subr.bf16.mxu0 0
        %2096 = vmatpush1.bf16.msra.mxu0 %v2084
        %2097 = vmatprep.subr.bf16.mxu0 0
        %2098 = vmatpush1.bf16.msra.mxu0 0
        %2099 = vmatprep.subr.bf16.mxu0 0
        %2100 = vmatpush1.bf16.msra.mxu0 0
        %2101 = vmatprep.subr.bf16.mxu0 0
        %2102 = vmatpush1.bf16.msra.mxu0 0
        %2103 = vmatprep.subr.bf16.mxu0 0
        %2104 = vmatpush1.bf16.msra.mxu0 0
        %2105 = vmatprep.subr.bf16.mxu0 0
        %2106 = vmatpush1.bf16.msra.mxu0 0
        %2107 = vmatprep.subr.bf16.mxu0 0
        %2108 = vmatpush1.bf16.msra.mxu0 0
        %2109 = vmatprep.subr.bf16.mxu0 0
        %2110 = vmatpush1.bf16.msra.mxu0 0
        %2111 = vmatprep.subr.bf16.mxu0 0
        %2112 = vmatpush1.bf16.msra.mxu0 0
        %2113 = vmatprep.subr.bf16.mxu0 0
        %2114 = vmatpush1.bf16.msra.mxu0 0
        %2115 = vmatprep.subr.bf16.mxu0 0
        %2116 = vmatpush1.bf16.msra.mxu0 0
        %2117 = vmatprep.subr.bf16.mxu0 0
        %2118 = vmatpush1.bf16.msra.mxu0 0
        %2119 = vmatprep.subr.bf16.mxu0 0
        %2120 = vmatpush1.bf16.msra.mxu0 0
        %2121 = vmatprep.mubr.bf16.mxu0 0
        %2122 = vmatmul.mubr.bf16.gmra.mrb[0].mxu0 %v695
        %v2123 = vpop.f32.mrb[0].mxu0
        %v2124 = vadd.f32 %v1908, %v2123
        %v2125 = vpop.f32.mrb[0].mxu0
        %v2126 = vpop.f32.mrb[0].mxu0
        %v2127 = vpop.f32.mrb[0].mxu0
        %2128 = vdwg.mxu0
        %v2137 = vunpack.c.l.b16 %v1841
        %v2138 = vunpack.c.l.b16 %v1842
        %v2139 = vunpack.c.l.b16 %v1843
        %v2140 = vunpack.c.l.b16 %v1844
        %v2141 = vunpack.c.l.b16 %v1845
        %v2142 = vunpack.c.l.b16 %v1846
        %v2143 = vunpack.c.l.b16 %v1847
        %v2144 = vunpack.c.l.b16 %v1848
        %v2145 = vpack.c.b16 %v2138, %v2137
        %v2146 = vpack.c.b16 %v2140, %v2139
        %v2147 = vpack.c.b16 %v2142, %v2141
        %v2148 = vpack.c.b16 %v2144, %v2143
        %2153 = vmatprep.subr.bf16.mxu0 0
        %2154 = vmatpush1.bf16.msra.mxu0 %v2145
        %2155 = vmatprep.subr.bf16.mxu0 0
        %2156 = vmatpush1.bf16.msra.mxu0 %v2146
        %2157 = vmatprep.subr.bf16.mxu0 0
        %2158 = vmatpush1.bf16.msra.mxu0 %v2147
        %2159 = vmatprep.subr.bf16.mxu0 0
        %2160 = vmatpush1.bf16.msra.mxu0 %v2148
        %2161 = vmatprep.subr.bf16.mxu0 0
        %2162 = vmatpush1.bf16.msra.mxu0 0
        %2163 = vmatprep.subr.bf16.mxu0 0
        %2164 = vmatpush1.bf16.msra.mxu0 0
        %2165 = vmatprep.subr.bf16.mxu0 0
        %2166 = vmatpush1.bf16.msra.mxu0 0
        %2167 = vmatprep.subr.bf16.mxu0 0
        %2168 = vmatpush1.bf16.msra.mxu0 0
        %2169 = vmatprep.subr.bf16.mxu0 0
        %2170 = vmatpush1.bf16.msra.mxu0 0
        %2171 = vmatprep.subr.bf16.mxu0 0
        %2172 = vmatpush1.bf16.msra.mxu0 0
        %2173 = vmatprep.subr.bf16.mxu0 0
        %2174 = vmatpush1.bf16.msra.mxu0 0
        %2175 = vmatprep.subr.bf16.mxu0 0
        %2176 = vmatpush1.bf16.msra.mxu0 0
        %2177 = vmatprep.subr.bf16.mxu0 0
        %2178 = vmatpush1.bf16.msra.mxu0 0
        %2179 = vmatprep.subr.bf16.mxu0 0
        %2180 = vmatpush1.bf16.msra.mxu0 0
        %2181 = vmatprep.subr.bf16.mxu0 0
        %2182 = vmatpush1.bf16.msra.mxu0 0
        %2183 = vmatprep.subr.bf16.mxu0 0
        %2184 = vmatpush1.bf16.msra.mxu0 0
        %2185 = vmatprep.mubr.bf16.mxu0 0
        %2186 = vmatmul.mubr.bf16.gmra.mrb[0].mxu0 %v695
        %v2187 = vpop.f32.mrb[0].mxu0
        %v2188 = vadd.f32 %v1912, %v2187
        %v2189 = vpop.f32.mrb[0].mxu0
        %v2190 = vpop.f32.mrb[0].mxu0
        %v2191 = vpop.f32.mrb[0].mxu0
        %2192 = vdwg.mxu0
        %v2201 = vunpack.c.l.b16 %v1849
        %v2202 = vunpack.c.l.b16 %v1850
        %v2203 = vunpack.c.l.b16 %v1851
        %v2204 = vunpack.c.l.b16 %v1852
        %v2205 = vunpack.c.l.b16 %v1853
        %v2206 = vunpack.c.l.b16 %v1854
        %v2207 = vunpack.c.l.b16 %v1855
        %v2208 = vunpack.c.l.b16 %v1856
        %v2209 = vpack.c.b16 %v2202, %v2201
        %v2210 = vpack.c.b16 %v2204, %v2203
        %v2211 = vpack.c.b16 %v2206, %v2205
        %v2212 = vpack.c.b16 %v2208, %v2207
        %2217 = vmatprep.subr.bf16.mxu0 0
        %2218 = vmatpush1.bf16.msra.mxu0 %v2209
        %2219 = vmatprep.subr.bf16.mxu0 0
        %2220 = vmatpush1.bf16.msra.mxu0 %v2210
        %2221 = vmatprep.subr.bf16.mxu0 0
        %2222 = vmatpush1.bf16.msra.mxu0 %v2211
        %2223 = vmatprep.subr.bf16.mxu0 0
        %2224 = vmatpush1.bf16.msra.mxu0 %v2212
        %2225 = vmatprep.subr.bf16.mxu0 0
        %2226 = vmatpush1.bf16.msra.mxu0 0
        %2227 = vmatprep.subr.bf16.mxu0 0
        %2228 = vmatpush1.bf16.msra.mxu0 0
        %2229 = vmatprep.subr.bf16.mxu0 0
        %2230 = vmatpush1.bf16.msra.mxu0 0
        %2231 = vmatprep.subr.bf16.mxu0 0
        %2232 = vmatpush1.bf16.msra.mxu0 0
        %2233 = vmatprep.subr.bf16.mxu0 0
        %2234 = vmatpush1.bf16.msra.mxu0 0
        %2235 = vmatprep.subr.bf16.mxu0 0
        %2236 = vmatpush1.bf16.msra.mxu0 0
        %2237 = vmatprep.subr.bf16.mxu0 0
        %2238 = vmatpush1.bf16.msra.mxu0 0
        %2239 = vmatprep.subr.bf16.mxu0 0
        %2240 = vmatpush1.bf16.msra.mxu0 0
        %2241 = vmatprep.subr.bf16.mxu0 0
        %2242 = vmatpush1.bf16.msra.mxu0 0
        %2243 = vmatprep.subr.bf16.mxu0 0
        %2244 = vmatpush1.bf16.msra.mxu0 0
        %2245 = vmatprep.subr.bf16.mxu0 0
        %2246 = vmatpush1.bf16.msra.mxu0 0
        %2247 = vmatprep.subr.bf16.mxu0 0
        %2248 = vmatpush1.bf16.msra.mxu0 0
        %2249 = vmatprep.mubr.bf16.mxu0 0
        %2250 = vmatmul.mubr.bf16.gmra.mrb[0].mxu0 %v695
        %v2251 = vpop.f32.mrb[0].mxu0
        %v2252 = vadd.f32 %v1916, %v2251
        %v2253 = vpop.f32.mrb[0].mxu0
        %v2254 = vpop.f32.mrb[0].mxu0
        %v2255 = vpop.f32.mrb[0].mxu0
        %2256 = vdwg.mxu0
        %v2265 = vunpack.c.l.b16 %v1857
        %v2266 = vunpack.c.l.b16 %v1858
        %v2267 = vunpack.c.l.b16 %v1859
        %v2268 = vunpack.c.l.b16 %v1860
        %v2269 = vunpack.c.l.b16 %v1861
        %v2270 = vunpack.c.l.b16 %v1862
        %v2271 = vunpack.c.l.b16 %v1863
        %v2272 = vunpack.c.l.b16 %v1864
        %v2273 = vpack.c.b16 %v2266, %v2265
        %v2274 = vpack.c.b16 %v2268, %v2267
        %v2275 = vpack.c.b16 %v2270, %v2269
        %v2276 = vpack.c.b16 %v2272, %v2271
        %2281 = vmatprep.subr.bf16.mxu0 0
        %2282 = vmatpush1.bf16.msra.mxu0 %v2273
        %2283 = vmatprep.subr.bf16.mxu0 0
        %2284 = vmatpush1.bf16.msra.mxu0 %v2274
        %2285 = vmatprep.subr.bf16.mxu0 0
        %2286 = vmatpush1.bf16.msra.mxu0 %v2275
        %2287 = vmatprep.subr.bf16.mxu0 0
        %2288 = vmatpush1.bf16.msra.mxu0 %v2276
        %2289 = vmatprep.subr.bf16.mxu0 0
        %2290 = vmatpush1.bf16.msra.mxu0 0
        %2291 = vmatprep.subr.bf16.mxu0 0
        %2292 = vmatpush1.bf16.msra.mxu0 0
        %2293 = vmatprep.subr.bf16.mxu0 0
        %2294 = vmatpush1.bf16.msra.mxu0 0
        %2295 = vmatprep.subr.bf16.mxu0 0
        %2296 = vmatpush1.bf16.msra.mxu0 0
        %2297 = vmatprep.subr.bf16.mxu0 0
        %2298 = vmatpush1.bf16.msra.mxu0 0
        %2299 = vmatprep.subr.bf16.mxu0 0
        %2300 = vmatpush1.bf16.msra.mxu0 0
        %2301 = vmatprep.subr.bf16.mxu0 0
        %2302 = vmatpush1.bf16.msra.mxu0 0
        %2303 = vmatprep.subr.bf16.mxu0 0
        %2304 = vmatpush1.bf16.msra.mxu0 0
        %2305 = vmatprep.subr.bf16.mxu0 0
        %2306 = vmatpush1.bf16.msra.mxu0 0
        %2307 = vmatprep.subr.bf16.mxu0 0
        %2308 = vmatpush1.bf16.msra.mxu0 0
        %2309 = vmatprep.subr.bf16.mxu0 0
        %2310 = vmatpush1.bf16.msra.mxu0 0
        %2311 = vmatprep.subr.bf16.mxu0 0
        %2312 = vmatpush1.bf16.msra.mxu0 0
        %2313 = vmatprep.mubr.bf16.mxu0 0
        %2314 = vmatmul.mubr.bf16.gmra.mrb[0].mxu0 %v695
        %v2315 = vpop.f32.mrb[0].mxu0
        %v2316 = vadd.f32 %v1920, %v2315
        %v2317 = vpop.f32.mrb[0].mxu0
        %v2318 = vpop.f32.mrb[0].mxu0
        %v2319 = vpop.f32.mrb[0].mxu0
        %2320 = vdwg.mxu0
        %v2329 = vunpack.c.l.b16 %v1865
        %v2330 = vunpack.c.l.b16 %v1866
        %v2331 = vunpack.c.l.b16 %v1867
        %v2332 = vunpack.c.l.b16 %v1868
        %v2333 = vunpack.c.l.b16 %v1869
        %v2334 = vunpack.c.l.b16 %v1870
        %v2335 = vunpack.c.l.b16 %v1871
        %v2336 = vunpack.c.l.b16 %v1872
        %v2337 = vpack.c.b16 %v2330, %v2329
        %v2338 = vpack.c.b16 %v2332, %v2331
        %v2339 = vpack.c.b16 %v2334, %v2333
        %v2340 = vpack.c.b16 %v2336, %v2335
        %2345 = vmatprep.subr.bf16.mxu0 0
        %2346 = vmatpush1.bf16.msra.mxu0 %v2337
        %2347 = vmatprep.subr.bf16.mxu0 0
        %2348 = vmatpush1.bf16.msra.mxu0 %v2338
        %2349 = vmatprep.subr.bf16.mxu0 0
        %2350 = vmatpush1.bf16.msra.mxu0 %v2339
        %2351 = vmatprep.subr.bf16.mxu0 0
        %2352 = vmatpush1.bf16.msra.mxu0 %v2340
        %2353 = vmatprep.subr.bf16.mxu0 0
        %2354 = vmatpush1.bf16.msra.mxu0 0
        %2355 = vmatprep.subr.bf16.mxu0 0
        %2356 = vmatpush1.bf16.msra.mxu0 0
        %2357 = vmatprep.subr.bf16.mxu0 0
        %2358 = vmatpush1.bf16.msra.mxu0 0
        %2359 = vmatprep.subr.bf16.mxu0 0
        %2360 = vmatpush1.bf16.msra.mxu0 0
        %2361 = vmatprep.subr.bf16.mxu0 0
        %2362 = vmatpush1.bf16.msra.mxu0 0
        %2363 = vmatprep.subr.bf16.mxu0 0
        %2364 = vmatpush1.bf16.msra.mxu0 0
        %2365 = vmatprep.subr.bf16.mxu0 0
        %2366 = vmatpush1.bf16.msra.mxu0 0
        %2367 = vmatprep.subr.bf16.mxu0 0
        %2368 = vmatpush1.bf16.msra.mxu0 0
        %2369 = vmatprep.subr.bf16.mxu0 0
        %2370 = vmatpush1.bf16.msra.mxu0 0
        %2371 = vmatprep.subr.bf16.mxu0 0
        %2372 = vmatpush1.bf16.msra.mxu0 0
        %2373 = vmatprep.subr.bf16.mxu0 0
        %2374 = vmatpush1.bf16.msra.mxu0 0
        %2375 = vmatprep.subr.bf16.mxu0 0
        %2376 = vmatpush1.bf16.msra.mxu0 0
        %2377 = vmatprep.mubr.bf16.mxu0 0
        %2378 = vmatmul.mubr.bf16.gmra.mrb[0].mxu0 %v695
        %v2379 = vpop.f32.mrb[0].mxu0
        %v2380 = vadd.f32 %v1924, %v2379
        %v2381 = vpop.f32.mrb[0].mxu0
        %v2382 = vpop.f32.mrb[0].mxu0
        %v2383 = vpop.f32.mrb[0].mxu0
        %2384 = vdwg.mxu0
        %v2393 = vunpack.c.l.b16 %v1873
        %v2394 = vunpack.c.l.b16 %v1874
        %v2395 = vunpack.c.l.b16 %v1875
        %v2396 = vunpack.c.l.b16 %v1876
        %v2397 = vunpack.c.l.b16 %v1877
        %v2398 = vunpack.c.l.b16 %v1878
        %v2399 = vunpack.c.l.b16 %v1879
        %v2400 = vunpack.c.l.b16 %v1880
        %v2401 = vpack.c.b16 %v2394, %v2393
        %v2402 = vpack.c.b16 %v2396, %v2395
        %v2403 = vpack.c.b16 %v2398, %v2397
        %v2404 = vpack.c.b16 %v2400, %v2399
        %2409 = vmatprep.subr.bf16.mxu0 0
        %2410 = vmatpush1.bf16.msra.mxu0 %v2401
        %2411 = vmatprep.subr.bf16.mxu0 0
        %2412 = vmatpush1.bf16.msra.mxu0 %v2402
        %2413 = vmatprep.subr.bf16.mxu0 0
        %2414 = vmatpush1.bf16.msra.mxu0 %v2403
        %2415 = vmatprep.subr.bf16.mxu0 0
        %2416 = vmatpush1.bf16.msra.mxu0 %v2404
        %2417 = vmatprep.subr.bf16.mxu0 0
        %2418 = vmatpush1.bf16.msra.mxu0 0
        %2419 = vmatprep.subr.bf16.mxu0 0
        %2420 = vmatpush1.bf16.msra.mxu0 0
        %2421 = vmatprep.subr.bf16.mxu0 0
        %2422 = vmatpush1.bf16.msra.mxu0 0
        %2423 = vmatprep.subr.bf16.mxu0 0
        %2424 = vmatpush1.bf16.msra.mxu0 0
        %2425 = vmatprep.subr.bf16.mxu0 0
        %2426 = vmatpush1.bf16.msra.mxu0 0
        %2427 = vmatprep.subr.bf16.mxu0 0
        %2428 = vmatpush1.bf16.msra.mxu0 0
        %2429 = vmatprep.subr.bf16.mxu0 0
        %2430 = vmatpush1.bf16.msra.mxu0 0
        %2431 = vmatprep.subr.bf16.mxu0 0
        %2432 = vmatpush1.bf16.msra.mxu0 0
        %2433 = vmatprep.subr.bf16.mxu0 0
        %2434 = vmatpush1.bf16.msra.mxu0 0
        %2435 = vmatprep.subr.bf16.mxu0 0
        %2436 = vmatpush1.bf16.msra.mxu0 0
        %2437 = vmatprep.subr.bf16.mxu0 0
        %2438 = vmatpush1.bf16.msra.mxu0 0
        %2439 = vmatprep.subr.bf16.mxu0 0
        %2440 = vmatpush1.bf16.msra.mxu0 0
        %2441 = vmatprep.mubr.bf16.mxu0 0
        %2442 = vmatmul.mubr.bf16.gmra.mrb[0].mxu0 %v695
        %v2443 = vpop.f32.mrb[0].mxu0
        %v2444 = vadd.f32 %v1928, %v2443
        %v2445 = vpop.f32.mrb[0].mxu0
        %v2446 = vpop.f32.mrb[0].mxu0
        %v2447 = vpop.f32.mrb[0].mxu0
        %2448 = vdwg.mxu0
        %v2449 = vpack.c.bf16 %v732, %v732
        %v2450 = vpack.c.bf16 %v796, %v796
        %v2451 = vpack.c.bf16 %v860, %v860
        %v2452 = vpack.c.bf16 %v924, %v924
        %v2453 = vpack.c.bf16 %v988, %v988
        %v2454 = vpack.c.bf16 %v1052, %v1052
        %v2455 = vpack.c.bf16 %v1116, %v1116
        %v2456 = vpack.c.bf16 %v1180, %v1180
        %v2457 = vpack.c.bf16 %v1364, %v1364
        %v2458 = vpack.c.bf16 %v1428, %v1428
        %v2459 = vpack.c.bf16 %v1492, %v1492
        %v2460 = vpack.c.bf16 %v1556, %v1556
        %v2461 = vpack.c.bf16 %v1620, %v1620
        %v2462 = vpack.c.bf16 %v1684, %v1684
        %v2463 = vpack.c.bf16 %v1748, %v1748
        %v2464 = vpack.c.bf16 %v1812, %v1812
        %vm2465 = vcmask 64512
        %v2467 = vsel %vm2465, %v2449, 0
        %v2470 = vsel %vm2465, %v2457, 0
        %2472 = vmatprep.subr.bf16.mxu0 0
        %2473 = vmatpush1.bf16.xpose.msra.mxu0 %v2470
        %2474 = vmatprep.subr.bf16.mxu0 0
        %2475 = vmatpush1.bf16.xpose.msra.mxu0 0
        %2476 = vmatprep.subr.bf16.mxu0 0
        %2477 = vmatpush1.bf16.xpose.msra.mxu0 0
        %2478 = vmatprep.subr.bf16.mxu0 0
        %2479 = vmatpush1.bf16.xpose.msra.mxu0 0
        %2480 = vmatprep.subr.bf16.mxu0 0
        %2481 = vmatpush1.bf16.xpose.msra.mxu0 0
        %2482 = vmatprep.subr.bf16.mxu0 0
        %2483 = vmatpush1.bf16.xpose.msra.mxu0 0
        %2484 = vmatprep.subr.bf16.mxu0 0
        %2485 = vmatpush1.bf16.xpose.msra.mxu0 0
        %2486 = vmatprep.subr.bf16.mxu0 0
        %2487 = vmatpush1.bf16.xpose.msra.mxu0 0
        %2488 = vmatprep.subr.bf16.mxu0 0
        %2489 = vmatpush1.bf16.xpose.msra.mxu0 0
        %2490 = vmatprep.subr.bf16.mxu0 0
        %2491 = vmatpush1.bf16.xpose.msra.mxu0 0
        %2492 = vmatprep.subr.bf16.mxu0 0
        %2493 = vmatpush1.bf16.xpose.msra.mxu0 0
        %2494 = vmatprep.subr.bf16.mxu0 0
        %2495 = vmatpush1.bf16.xpose.msra.mxu0 0
        %2496 = vmatprep.subr.bf16.mxu0 0
        %2497 = vmatpush1.bf16.xpose.msra.mxu0 0
        %2498 = vmatprep.subr.bf16.mxu0 0
        %2499 = vmatpush1.bf16.xpose.msra.mxu0 0
        %2500 = vmatprep.subr.bf16.mxu0 0
        %2501 = vmatpush1.bf16.xpose.msra.mxu0 0
        %2502 = vmatprep.subr.bf16.mxu0 0
        %2503 = vmatpush1.bf16.xpose.msra.mxu0 0
        %2504 = vmatprep.mubr.bf16.mxu0 0
        %2505 = vmatmul.mubr.bf16.gmra.mrb[0].mxu0 %v2467
        %v2506 = vpop.f32.mrb[0].mxu0
        %v2507 = vadd.f32 0.0, %v2506
        %v2508 = vpop.f32.mrb[0].mxu0
        %v2509 = vpop.f32.mrb[0].mxu0
        %v2510 = vpop.f32.mrb[0].mxu0
        %2511 = vdwg.mxu0
        %v2513 = vsel %vm2465, %v2450, 0
        %v2516 = vsel %vm2465, %v2458, 0
        %2518 = vmatprep.subr.bf16.mxu0 0
        %2519 = vmatpush1.bf16.xpose.msra.mxu0 %v2516
        %2520 = vmatprep.subr.bf16.mxu0 0
        %2521 = vmatpush1.bf16.xpose.msra.mxu0 0
        %2522 = vmatprep.subr.bf16.mxu0 0
        %2523 = vmatpush1.bf16.xpose.msra.mxu0 0
        %2524 = vmatprep.subr.bf16.mxu0 0
        %2525 = vmatpush1.bf16.xpose.msra.mxu0 0
        %2526 = vmatprep.subr.bf16.mxu0 0
        %2527 = vmatpush1.bf16.xpose.msra.mxu0 0
        %2528 = vmatprep.subr.bf16.mxu0 0
        %2529 = vmatpush1.bf16.xpose.msra.mxu0 0
        %2530 = vmatprep.subr.bf16.mxu0 0
        %2531 = vmatpush1.bf16.xpose.msra.mxu0 0
        %2532 = vmatprep.subr.bf16.mxu0 0
        %2533 = vmatpush1.bf16.xpose.msra.mxu0 0
        %2534 = vmatprep.subr.bf16.mxu0 0
        %2535 = vmatpush1.bf16.xpose.msra.mxu0 0
        %2536 = vmatprep.subr.bf16.mxu0 0
        %2537 = vmatpush1.bf16.xpose.msra.mxu0 0
        %2538 = vmatprep.subr.bf16.mxu0 0
        %2539 = vmatpush1.bf16.xpose.msra.mxu0 0
        %2540 = vmatprep.subr.bf16.mxu0 0
        %2541 = vmatpush1.bf16.xpose.msra.mxu0 0
        %2542 = vmatprep.subr.bf16.mxu0 0
        %2543 = vmatpush1.bf16.xpose.msra.mxu0 0
        %2544 = vmatprep.subr.bf16.mxu0 0
        %2545 = vmatpush1.bf16.xpose.msra.mxu0 0
        %2546 = vmatprep.subr.bf16.mxu0 0
        %2547 = vmatpush1.bf16.xpose.msra.mxu0 0
        %2548 = vmatprep.subr.bf16.mxu0 0
        %2549 = vmatpush1.bf16.xpose.msra.mxu0 0
        %2550 = vmatprep.mubr.bf16.mxu0 0
        %2551 = vmatmul.mubr.bf16.gmra.mrb[0].mxu0 %v2513
        %v2552 = vpop.f32.mrb[0].mxu0
        %v2553 = vadd.f32 0.0, %v2552
        %v2554 = vpop.f32.mrb[0].mxu0
        %v2555 = vpop.f32.mrb[0].mxu0
        %v2556 = vpop.f32.mrb[0].mxu0
        %2557 = vdwg.mxu0
        %v2559 = vsel %vm2465, %v2451, 0
        %v2562 = vsel %vm2465, %v2459, 0
        %2564 = vmatprep.subr.bf16.mxu0 0
        %2565 = vmatpush1.bf16.xpose.msra.mxu0 %v2562
        %2566 = vmatprep.subr.bf16.mxu0 0
        %2567 = vmatpush1.bf16.xpose.msra.mxu0 0
        %2568 = vmatprep.subr.bf16.mxu0 0
        %2569 = vmatpush1.bf16.xpose.msra.mxu0 0
        %2570 = vmatprep.subr.bf16.mxu0 0
        %2571 = vmatpush1.bf16.xpose.msra.mxu0 0
        %2572 = vmatprep.subr.bf16.mxu0 0
        %2573 = vmatpush1.bf16.xpose.msra.mxu0 0
        %2574 = vmatprep.subr.bf16.mxu0 0
        %2575 = vmatpush1.bf16.xpose.msra.mxu0 0
        %2576 = vmatprep.subr.bf16.mxu0 0
        %2577 = vmatpush1.bf16.xpose.msra.mxu0 0
        %2578 = vmatprep.subr.bf16.mxu0 0
        %2579 = vmatpush1.bf16.xpose.msra.mxu0 0
        %2580 = vmatprep.subr.bf16.mxu0 0
        %2581 = vmatpush1.bf16.xpose.msra.mxu0 0
        %2582 = vmatprep.subr.bf16.mxu0 0
        %2583 = vmatpush1.bf16.xpose.msra.mxu0 0
        %2584 = vmatprep.subr.bf16.mxu0 0
        %2585 = vmatpush1.bf16.xpose.msra.mxu0 0
        %2586 = vmatprep.subr.bf16.mxu0 0
        %2587 = vmatpush1.bf16.xpose.msra.mxu0 0
        %2588 = vmatprep.subr.bf16.mxu0 0
        %2589 = vmatpush1.bf16.xpose.msra.mxu0 0
        %2590 = vmatprep.subr.bf16.mxu0 0
        %2591 = vmatpush1.bf16.xpose.msra.mxu0 0
        %2592 = vmatprep.subr.bf16.mxu0 0
        %2593 = vmatpush1.bf16.xpose.msra.mxu0 0
        %2594 = vmatprep.subr.bf16.mxu0 0
        %2595 = vmatpush1.bf16.xpose.msra.mxu0 0
        %2596 = vmatprep.mubr.bf16.mxu0 0
        %2597 = vmatmul.mubr.bf16.gmra.mrb[0].mxu0 %v2559
        %v2598 = vpop.f32.mrb[0].mxu0
        %v2599 = vadd.f32 0.0, %v2598
        %v2600 = vpop.f32.mrb[0].mxu0
        %v2601 = vpop.f32.mrb[0].mxu0
        %v2602 = vpop.f32.mrb[0].mxu0
        %2603 = vdwg.mxu0
        %v2605 = vsel %vm2465, %v2452, 0
        %v2608 = vsel %vm2465, %v2460, 0
        %2610 = vmatprep.subr.bf16.mxu0 0
        %2611 = vmatpush1.bf16.xpose.msra.mxu0 %v2608
        %2612 = vmatprep.subr.bf16.mxu0 0
        %2613 = vmatpush1.bf16.xpose.msra.mxu0 0
        %2614 = vmatprep.subr.bf16.mxu0 0
        %2615 = vmatpush1.bf16.xpose.msra.mxu0 0
        %2616 = vmatprep.subr.bf16.mxu0 0
        %2617 = vmatpush1.bf16.xpose.msra.mxu0 0
        %2618 = vmatprep.subr.bf16.mxu0 0
        %2619 = vmatpush1.bf16.xpose.msra.mxu0 0
        %2620 = vmatprep.subr.bf16.mxu0 0
        %2621 = vmatpush1.bf16.xpose.msra.mxu0 0
        %2622 = vmatprep.subr.bf16.mxu0 0
        %2623 = vmatpush1.bf16.xpose.msra.mxu0 0
        %2624 = vmatprep.subr.bf16.mxu0 0
        %2625 = vmatpush1.bf16.xpose.msra.mxu0 0
        %2626 = vmatprep.subr.bf16.mxu0 0
        %2627 = vmatpush1.bf16.xpose.msra.mxu0 0
        %2628 = vmatprep.subr.bf16.mxu0 0
        %2629 = vmatpush1.bf16.xpose.msra.mxu0 0
        %2630 = vmatprep.subr.bf16.mxu0 0
        %2631 = vmatpush1.bf16.xpose.msra.mxu0 0
        %2632 = vmatprep.subr.bf16.mxu0 0
        %2633 = vmatpush1.bf16.xpose.msra.mxu0 0
        %2634 = vmatprep.subr.bf16.mxu0 0
        %2635 = vmatpush1.bf16.xpose.msra.mxu0 0
        %2636 = vmatprep.subr.bf16.mxu0 0
        %2637 = vmatpush1.bf16.xpose.msra.mxu0 0
        %2638 = vmatprep.subr.bf16.mxu0 0
        %2639 = vmatpush1.bf16.xpose.msra.mxu0 0
        %2640 = vmatprep.subr.bf16.mxu0 0
        %2641 = vmatpush1.bf16.xpose.msra.mxu0 0
        %2642 = vmatprep.mubr.bf16.mxu0 0
        %2643 = vmatmul.mubr.bf16.gmra.mrb[0].mxu0 %v2605
        %v2644 = vpop.f32.mrb[0].mxu0
        %v2645 = vadd.f32 0.0, %v2644
        %v2646 = vpop.f32.mrb[0].mxu0
        %v2647 = vpop.f32.mrb[0].mxu0
        %v2648 = vpop.f32.mrb[0].mxu0
        %2649 = vdwg.mxu0
        %v2651 = vsel %vm2465, %v2453, 0
        %v2654 = vsel %vm2465, %v2461, 0
        %2656 = vmatprep.subr.bf16.mxu0 0
        %2657 = vmatpush1.bf16.xpose.msra.mxu0 %v2654
        %2658 = vmatprep.subr.bf16.mxu0 0
        %2659 = vmatpush1.bf16.xpose.msra.mxu0 0
        %2660 = vmatprep.subr.bf16.mxu0 0
        %2661 = vmatpush1.bf16.xpose.msra.mxu0 0
        %2662 = vmatprep.subr.bf16.mxu0 0
        %2663 = vmatpush1.bf16.xpose.msra.mxu0 0
        %2664 = vmatprep.subr.bf16.mxu0 0
        %2665 = vmatpush1.bf16.xpose.msra.mxu0 0
        %2666 = vmatprep.subr.bf16.mxu0 0
        %2667 = vmatpush1.bf16.xpose.msra.mxu0 0
        %2668 = vmatprep.subr.bf16.mxu0 0
        %2669 = vmatpush1.bf16.xpose.msra.mxu0 0
        %2670 = vmatprep.subr.bf16.mxu0 0
        %2671 = vmatpush1.bf16.xpose.msra.mxu0 0
        %2672 = vmatprep.subr.bf16.mxu0 0
        %2673 = vmatpush1.bf16.xpose.msra.mxu0 0
        %2674 = vmatprep.subr.bf16.mxu0 0
        %2675 = vmatpush1.bf16.xpose.msra.mxu0 0
        %2676 = vmatprep.subr.bf16.mxu0 0
        %2677 = vmatpush1.bf16.xpose.msra.mxu0 0
        %2678 = vmatprep.subr.bf16.mxu0 0
        %2679 = vmatpush1.bf16.xpose.msra.mxu0 0
        %2680 = vmatprep.subr.bf16.mxu0 0
        %2681 = vmatpush1.bf16.xpose.msra.mxu0 0
        %2682 = vmatprep.subr.bf16.mxu0 0
        %2683 = vmatpush1.bf16.xpose.msra.mxu0 0
        %2684 = vmatprep.subr.bf16.mxu0 0
        %2685 = vmatpush1.bf16.xpose.msra.mxu0 0
        %2686 = vmatprep.subr.bf16.mxu0 0
        %2687 = vmatpush1.bf16.xpose.msra.mxu0 0
        %2688 = vmatprep.mubr.bf16.mxu0 0
        %2689 = vmatmul.mubr.bf16.gmra.mrb[0].mxu0 %v2651
        %v2690 = vpop.f32.mrb[0].mxu0
        %v2691 = vadd.f32 0.0, %v2690
        %v2692 = vpop.f32.mrb[0].mxu0
        %v2693 = vpop.f32.mrb[0].mxu0
        %v2694 = vpop.f32.mrb[0].mxu0
        %2695 = vdwg.mxu0
        %v2697 = vsel %vm2465, %v2454, 0
        %v2700 = vsel %vm2465, %v2462, 0
        %2702 = vmatprep.subr.bf16.mxu0 0
        %2703 = vmatpush1.bf16.xpose.msra.mxu0 %v2700
        %2704 = vmatprep.subr.bf16.mxu0 0
        %2705 = vmatpush1.bf16.xpose.msra.mxu0 0
        %2706 = vmatprep.subr.bf16.mxu0 0
        %2707 = vmatpush1.bf16.xpose.msra.mxu0 0
        %2708 = vmatprep.subr.bf16.mxu0 0
        %2709 = vmatpush1.bf16.xpose.msra.mxu0 0
        %2710 = vmatprep.subr.bf16.mxu0 0
        %2711 = vmatpush1.bf16.xpose.msra.mxu0 0
        %2712 = vmatprep.subr.bf16.mxu0 0
        %2713 = vmatpush1.bf16.xpose.msra.mxu0 0
        %2714 = vmatprep.subr.bf16.mxu0 0
        %2715 = vmatpush1.bf16.xpose.msra.mxu0 0
        %2716 = vmatprep.subr.bf16.mxu0 0
        %2717 = vmatpush1.bf16.xpose.msra.mxu0 0
        %2718 = vmatprep.subr.bf16.mxu0 0
        %2719 = vmatpush1.bf16.xpose.msra.mxu0 0
        %2720 = vmatprep.subr.bf16.mxu0 0
        %2721 = vmatpush1.bf16.xpose.msra.mxu0 0
        %2722 = vmatprep.subr.bf16.mxu0 0
        %2723 = vmatpush1.bf16.xpose.msra.mxu0 0
        %2724 = vmatprep.subr.bf16.mxu0 0
        %2725 = vmatpush1.bf16.xpose.msra.mxu0 0
        %2726 = vmatprep.subr.bf16.mxu0 0
        %2727 = vmatpush1.bf16.xpose.msra.mxu0 0
        %2728 = vmatprep.subr.bf16.mxu0 0
        %2729 = vmatpush1.bf16.xpose.msra.mxu0 0
        %2730 = vmatprep.subr.bf16.mxu0 0
        %2731 = vmatpush1.bf16.xpose.msra.mxu0 0
        %2732 = vmatprep.subr.bf16.mxu0 0
        %2733 = vmatpush1.bf16.xpose.msra.mxu0 0
        %2734 = vmatprep.mubr.bf16.mxu0 0
        %2735 = vmatmul.mubr.bf16.gmra.mrb[0].mxu0 %v2697
        %v2736 = vpop.f32.mrb[0].mxu0
        %v2737 = vadd.f32 0.0, %v2736
        %v2738 = vpop.f32.mrb[0].mxu0
        %v2739 = vpop.f32.mrb[0].mxu0
        %v2740 = vpop.f32.mrb[0].mxu0
        %2741 = vdwg.mxu0
        %v2743 = vsel %vm2465, %v2455, 0
        %v2746 = vsel %vm2465, %v2463, 0
        %2748 = vmatprep.subr.bf16.mxu0 0
        %2749 = vmatpush1.bf16.xpose.msra.mxu0 %v2746
        %2750 = vmatprep.subr.bf16.mxu0 0
        %2751 = vmatpush1.bf16.xpose.msra.mxu0 0
        %2752 = vmatprep.subr.bf16.mxu0 0
        %2753 = vmatpush1.bf16.xpose.msra.mxu0 0
        %2754 = vmatprep.subr.bf16.mxu0 0
        %2755 = vmatpush1.bf16.xpose.msra.mxu0 0
        %2756 = vmatprep.subr.bf16.mxu0 0
        %2757 = vmatpush1.bf16.xpose.msra.mxu0 0
        %2758 = vmatprep.subr.bf16.mxu0 0
        %2759 = vmatpush1.bf16.xpose.msra.mxu0 0
        %2760 = vmatprep.subr.bf16.mxu0 0
        %2761 = vmatpush1.bf16.xpose.msra.mxu0 0
        %2762 = vmatprep.subr.bf16.mxu0 0
        %2763 = vmatpush1.bf16.xpose.msra.mxu0 0
        %2764 = vmatprep.subr.bf16.mxu0 0
        %2765 = vmatpush1.bf16.xpose.msra.mxu0 0
        %2766 = vmatprep.subr.bf16.mxu0 0
        %2767 = vmatpush1.bf16.xpose.msra.mxu0 0
        %2768 = vmatprep.subr.bf16.mxu0 0
        %2769 = vmatpush1.bf16.xpose.msra.mxu0 0
        %2770 = vmatprep.subr.bf16.mxu0 0
        %2771 = vmatpush1.bf16.xpose.msra.mxu0 0
        %2772 = vmatprep.subr.bf16.mxu0 0
        %2773 = vmatpush1.bf16.xpose.msra.mxu0 0
        %2774 = vmatprep.subr.bf16.mxu0 0
        %2775 = vmatpush1.bf16.xpose.msra.mxu0 0
        %2776 = vmatprep.subr.bf16.mxu0 0
        %2777 = vmatpush1.bf16.xpose.msra.mxu0 0
        %2778 = vmatprep.subr.bf16.mxu0 0
        %2779 = vmatpush1.bf16.xpose.msra.mxu0 0
        %2780 = vmatprep.mubr.bf16.mxu0 0
        %2781 = vmatmul.mubr.bf16.gmra.mrb[0].mxu0 %v2743
        %v2782 = vpop.f32.mrb[0].mxu0
        %v2783 = vadd.f32 0.0, %v2782
        %v2784 = vpop.f32.mrb[0].mxu0
        %v2785 = vpop.f32.mrb[0].mxu0
        %v2786 = vpop.f32.mrb[0].mxu0
        %2787 = vdwg.mxu0
        %v2789 = vsel %vm2465, %v2456, 0
        %v2792 = vsel %vm2465, %v2464, 0
        %2794 = vmatprep.subr.bf16.mxu0 0
        %2795 = vmatpush1.bf16.xpose.msra.mxu0 %v2792
        %2796 = vmatprep.subr.bf16.mxu0 0
        %2797 = vmatpush1.bf16.xpose.msra.mxu0 0
        %2798 = vmatprep.subr.bf16.mxu0 0
        %2799 = vmatpush1.bf16.xpose.msra.mxu0 0
        %2800 = vmatprep.subr.bf16.mxu0 0
        %2801 = vmatpush1.bf16.xpose.msra.mxu0 0
        %2802 = vmatprep.subr.bf16.mxu0 0
        %2803 = vmatpush1.bf16.xpose.msra.mxu0 0
        %2804 = vmatprep.subr.bf16.mxu0 0
        %2805 = vmatpush1.bf16.xpose.msra.mxu0 0
        %2806 = vmatprep.subr.bf16.mxu0 0
        %2807 = vmatpush1.bf16.xpose.msra.mxu0 0
        %2808 = vmatprep.subr.bf16.mxu0 0
        %2809 = vmatpush1.bf16.xpose.msra.mxu0 0
        %2810 = vmatprep.subr.bf16.mxu0 0
        %2811 = vmatpush1.bf16.xpose.msra.mxu0 0
        %2812 = vmatprep.subr.bf16.mxu0 0
        %2813 = vmatpush1.bf16.xpose.msra.mxu0 0
        %2814 = vmatprep.subr.bf16.mxu0 0
        %2815 = vmatpush1.bf16.xpose.msra.mxu0 0
        %2816 = vmatprep.subr.bf16.mxu0 0
        %2817 = vmatpush1.bf16.xpose.msra.mxu0 0
        %2818 = vmatprep.subr.bf16.mxu0 0
        %2819 = vmatpush1.bf16.xpose.msra.mxu0 0
        %2820 = vmatprep.subr.bf16.mxu0 0
        %2821 = vmatpush1.bf16.xpose.msra.mxu0 0
        %2822 = vmatprep.subr.bf16.mxu0 0
        %2823 = vmatpush1.bf16.xpose.msra.mxu0 0
        %2824 = vmatprep.subr.bf16.mxu0 0
        %2825 = vmatpush1.bf16.xpose.msra.mxu0 0
        %2826 = vmatprep.mubr.bf16.mxu0 0
        %2827 = vmatmul.mubr.bf16.gmra.mrb[0].mxu0 %v2789
        %v2828 = vpop.f32.mrb[0].mxu0
        %v2829 = vadd.f32 0.0, %v2828
        %v2830 = vpop.f32.mrb[0].mxu0
        %v2831 = vpop.f32.mrb[0].mxu0
        %v2832 = vpop.f32.mrb[0].mxu0
        %2833 = vdwg.mxu0
        %v2834 = vsel %vm2465, %v2507, -inf
        %2835 = vmax.xlane.f32.xlu0 %v2834
        %v2836 = vpop.xlane.xlu0 %2835
        %v2837 = vsel %vm2465, %v2553, -inf
        %2838 = vmax.xlane.f32.xlu0 %v2837
        %v2839 = vpop.xlane.xlu0 %2838
        %v2840 = vsel %vm2465, %v2599, -inf
        %2841 = vmax.xlane.f32.xlu0 %v2840
        %v2842 = vpop.xlane.xlu0 %2841
        %v2843 = vsel %vm2465, %v2645, -inf
        %2844 = vmax.xlane.f32.xlu0 %v2843
        %v2845 = vpop.xlane.xlu0 %2844
        %v2846 = vsel %vm2465, %v2691, -inf
        %2847 = vmax.xlane.f32.xlu0 %v2846
        %v2848 = vpop.xlane.xlu0 %2847
        %v2849 = vsel %vm2465, %v2737, -inf
        %2850 = vmax.xlane.f32.xlu0 %v2849
        %v2851 = vpop.xlane.xlu0 %2850
        %v2852 = vsel %vm2465, %v2783, -inf
        %2853 = vmax.xlane.f32.xlu0 %v2852
        %v2854 = vpop.xlane.xlu0 %2853
        %v2855 = vsel %vm2465, %v2829, -inf
        %2856 = vmax.xlane.f32.xlu0 %v2855
        %v2857 = vpop.xlane.xlu0 %2856
        %v2858 = vsub.f32 %v2507, %v2836
        %v2859 = vsub.f32 %v2553, %v2839
        %v2860 = vsub.f32 %v2599, %v2842
        %v2861 = vsub.f32 %v2645, %v2845
        %v2862 = vsub.f32 %v2691, %v2848
        %v2863 = vsub.f32 %v2737, %v2851
        %v2864 = vsub.f32 %v2783, %v2854
        %v2865 = vsub.f32 %v2829, %v2857
        %v2866 = vmul.f32 %v2858, 1.442695
        %v2867 = vpow.pop %v2866
        %v2868 = vmul.f32 %v2859, 1.442695
        %v2869 = vpow.pop %v2868
        %v2870 = vmul.f32 %v2860, 1.442695
        %v2871 = vpow.pop %v2870
        %v2872 = vmul.f32 %v2861, 1.442695
        %v2873 = vpow.pop %v2872
        %v2874 = vmul.f32 %v2862, 1.442695
        %v2875 = vpow.pop %v2874
        %v2876 = vmul.f32 %v2863, 1.442695
        %v2877 = vpow.pop %v2876
        %v2878 = vmul.f32 %v2864, 1.442695
        %v2879 = vpow.pop %v2878
        %v2880 = vmul.f32 %v2865, 1.442695
        %v2881 = vpow.pop %v2880
        %v2882 = vsel %vm2465, %v2867, 0.0
        %2883 = vadd.xlane.f32.xlu0 %v2882
        %v2884 = vpop.xlane.xlu0 %2883
        %v2885 = vsel %vm2465, %v2869, 0.0
        %2886 = vadd.xlane.f32.xlu0 %v2885
        %v2887 = vpop.xlane.xlu0 %2886
        %v2888 = vsel %vm2465, %v2871, 0.0
        %2889 = vadd.xlane.f32.xlu0 %v2888
        %v2890 = vpop.xlane.xlu0 %2889
        %v2891 = vsel %vm2465, %v2873, 0.0
        %2892 = vadd.xlane.f32.xlu0 %v2891
        %v2893 = vpop.xlane.xlu0 %2892
        %v2894 = vsel %vm2465, %v2875, 0.0
        %2895 = vadd.xlane.f32.xlu0 %v2894
        %v2896 = vpop.xlane.xlu0 %2895
        %v2897 = vsel %vm2465, %v2877, 0.0
        %2898 = vadd.xlane.f32.xlu0 %v2897
        %v2899 = vpop.xlane.xlu0 %2898
        %v2900 = vsel %vm2465, %v2879, 0.0
        %2901 = vadd.xlane.f32.xlu0 %v2900
        %v2902 = vpop.xlane.xlu0 %2901
        %v2903 = vsel %vm2465, %v2881, 0.0
        %2904 = vadd.xlane.f32.xlu0 %v2903
        %v2905 = vpop.xlane.xlu0 %2904
        %v2906 = vrcp.pop %v2884
        %v2907 = vrcp.pop %v2887
        %v2908 = vrcp.pop %v2890
        %v2909 = vrcp.pop %v2893
        %v2910 = vrcp.pop %v2896
        %v2911 = vrcp.pop %v2899
        %v2912 = vrcp.pop %v2902
        %v2913 = vrcp.pop %v2905
        %v2914 = vmul.f32 %v2867, %v2906
        %v2915 = vmul.f32 %v2869, %v2907
        %v2916 = vmul.f32 %v2871, %v2908
        %v2917 = vmul.f32 %v2873, %v2909
        %v2918 = vmul.f32 %v2875, %v2910
        %v2919 = vmul.f32 %v2877, %v2911
        %v2920 = vmul.f32 %v2879, %v2912
        %v2921 = vmul.f32 %v2881, %v2913
        %v2922 = vpack.c.bf16 %v2914, %v2914
        %v2923 = vpack.c.bf16 %v2915, %v2915
        %v2924 = vpack.c.bf16 %v2916, %v2916
        %v2925 = vpack.c.bf16 %v2917, %v2917
        %v2926 = vpack.c.bf16 %v2918, %v2918
        %v2927 = vpack.c.bf16 %v2919, %v2919
        %v2928 = vpack.c.bf16 %v2920, %v2920
        %v2929 = vpack.c.bf16 %v2921, %v2921
        %v2930 = vpack.c.bf16 %v1996, %v1996
        %v2931 = vpack.c.bf16 %v2060, %v2060
        %v2932 = vpack.c.bf16 %v2124, %v2124
        %v2933 = vpack.c.bf16 %v2188, %v2188
        %v2934 = vpack.c.bf16 %v2252, %v2252
        %v2935 = vpack.c.bf16 %v2316, %v2316
        %v2936 = vpack.c.bf16 %v2380, %v2380
        %v2937 = vpack.c.bf16 %v2444, %v2444
        %v2939 = vsel %vm2465, %v2922, 0
        %vm2941 = vcmask 1043456
        %v2943 = vsel %vm2941, %v2930, 0
        %2945 = vmatprep.subr.bf16.mxu0 0
        %2946 = vmatpush1.bf16.msra.mxu0 %v2943
        %2947 = vmatprep.subr.bf16.mxu0 0
        %2948 = vmatpush1.bf16.msra.mxu0 0
        %2949 = vmatprep.subr.bf16.mxu0 0
        %2950 = vmatpush1.bf16.msra.mxu0 0
        %2951 = vmatprep.subr.bf16.mxu0 0
        %2952 = vmatpush1.bf16.msra.mxu0 0
        %2953 = vmatprep.subr.bf16.mxu0 0
        %2954 = vmatpush1.bf16.msra.mxu0 0
        %2955 = vmatprep.subr.bf16.mxu0 0
        %2956 = vmatpush1.bf16.msra.mxu0 0
        %2957 = vmatprep.subr.bf16.mxu0 0
        %2958 = vmatpush1.bf16.msra.mxu0 0
        %2959 = vmatprep.subr.bf16.mxu0 0
        %2960 = vmatpush1.bf16.msra.mxu0 0
        %2961 = vmatprep.subr.bf16.mxu0 0
        %2962 = vmatpush1.bf16.msra.mxu0 0
        %2963 = vmatprep.subr.bf16.mxu0 0
        %2964 = vmatpush1.bf16.msra.mxu0 0
        %2965 = vmatprep.subr.bf16.mxu0 0
        %2966 = vmatpush1.bf16.msra.mxu0 0
        %2967 = vmatprep.subr.bf16.mxu0 0
        %2968 = vmatpush1.bf16.msra.mxu0 0
        %2969 = vmatprep.subr.bf16.mxu0 0
        %2970 = vmatpush1.bf16.msra.mxu0 0
        %2971 = vmatprep.subr.bf16.mxu0 0
        %2972 = vmatpush1.bf16.msra.mxu0 0
        %2973 = vmatprep.subr.bf16.mxu0 0
        %2974 = vmatpush1.bf16.msra.mxu0 0
        %2975 = vmatprep.subr.bf16.mxu0 0
        %2976 = vmatpush1.bf16.msra.mxu0 0
        %2977 = vmatprep.mubr.bf16.mxu0 0
        %2978 = vmatmul.mubr.bf16.gmra.mrb[0].mxu0 %v2939
        %v2979 = vpop.f32.mrb[0].mxu0
        %v2980 = vadd.f32 0.0, %v2979
        %v2981 = vpop.f32.mrb[0].mxu0
        %v2982 = vpop.f32.mrb[0].mxu0
        %v2983 = vpop.f32.mrb[0].mxu0
        %2984 = vdwg.mxu0
        %v2986 = vsel %vm2465, %v2923, 0
        %v2989 = vsel %vm2941, %v2931, 0
        %2991 = vmatprep.subr.bf16.mxu0 0
        %2992 = vmatpush1.bf16.msra.mxu0 %v2989
        %2993 = vmatprep.subr.bf16.mxu0 0
        %2994 = vmatpush1.bf16.msra.mxu0 0
        %2995 = vmatprep.subr.bf16.mxu0 0
        %2996 = vmatpush1.bf16.msra.mxu0 0
        %2997 = vmatprep.subr.bf16.mxu0 0
        %2998 = vmatpush1.bf16.msra.mxu0 0
        %2999 = vmatprep.subr.bf16.mxu0 0
        %3000 = vmatpush1.bf16.msra.mxu0 0
        %3001 = vmatprep.subr.bf16.mxu0 0
        %3002 = vmatpush1.bf16.msra.mxu0 0
        %3003 = vmatprep.subr.bf16.mxu0 0
        %3004 = vmatpush1.bf16.msra.mxu0 0
        %3005 = vmatprep.subr.bf16.mxu0 0
        %3006 = vmatpush1.bf16.msra.mxu0 0
        %3007 = vmatprep.subr.bf16.mxu0 0
        %3008 = vmatpush1.bf16.msra.mxu0 0
        %3009 = vmatprep.subr.bf16.mxu0 0
        %3010 = vmatpush1.bf16.msra.mxu0 0
        %3011 = vmatprep.subr.bf16.mxu0 0
        %3012 = vmatpush1.bf16.msra.mxu0 0
        %3013 = vmatprep.subr.bf16.mxu0 0
        %3014 = vmatpush1.bf16.msra.mxu0 0
        %3015 = vmatprep.subr.bf16.mxu0 0
        %3016 = vmatpush1.bf16.msra.mxu0 0
        %3017 = vmatprep.subr.bf16.mxu0 0
        %3018 = vmatpush1.bf16.msra.mxu0 0
        %3019 = vmatprep.subr.bf16.mxu0 0
        %3020 = vmatpush1.bf16.msra.mxu0 0
        %3021 = vmatprep.subr.bf16.mxu0 0
        %3022 = vmatpush1.bf16.msra.mxu0 0
        %3023 = vmatprep.mubr.bf16.mxu0 0
        %3024 = vmatmul.mubr.bf16.gmra.mrb[0].mxu0 %v2986
        %v3025 = vpop.f32.mrb[0].mxu0
        %v3026 = vadd.f32 0.0, %v3025
        %v3027 = vpop.f32.mrb[0].mxu0
        %v3028 = vpop.f32.mrb[0].mxu0
        %v3029 = vpop.f32.mrb[0].mxu0
        %3030 = vdwg.mxu0
        %v3032 = vsel %vm2465, %v2924, 0
        %v3035 = vsel %vm2941, %v2932, 0
        %3037 = vmatprep.subr.bf16.mxu0 0
        %3038 = vmatpush1.bf16.msra.mxu0 %v3035
        %3039 = vmatprep.subr.bf16.mxu0 0
        %3040 = vmatpush1.bf16.msra.mxu0 0
        %3041 = vmatprep.subr.bf16.mxu0 0
        %3042 = vmatpush1.bf16.msra.mxu0 0
        %3043 = vmatprep.subr.bf16.mxu0 0
        %3044 = vmatpush1.bf16.msra.mxu0 0
        %3045 = vmatprep.subr.bf16.mxu0 0
        %3046 = vmatpush1.bf16.msra.mxu0 0
        %3047 = vmatprep.subr.bf16.mxu0 0
        %3048 = vmatpush1.bf16.msra.mxu0 0
        %3049 = vmatprep.subr.bf16.mxu0 0
        %3050 = vmatpush1.bf16.msra.mxu0 0
        %3051 = vmatprep.subr.bf16.mxu0 0
        %3052 = vmatpush1.bf16.msra.mxu0 0
        %3053 = vmatprep.subr.bf16.mxu0 0
        %3054 = vmatpush1.bf16.msra.mxu0 0
        %3055 = vmatprep.subr.bf16.mxu0 0
        %3056 = vmatpush1.bf16.msra.mxu0 0
        %3057 = vmatprep.subr.bf16.mxu0 0
        %3058 = vmatpush1.bf16.msra.mxu0 0
        %3059 = vmatprep.subr.bf16.mxu0 0
        %3060 = vmatpush1.bf16.msra.mxu0 0
        %3061 = vmatprep.subr.bf16.mxu0 0
        %3062 = vmatpush1.bf16.msra.mxu0 0
        %3063 = vmatprep.subr.bf16.mxu0 0
        %3064 = vmatpush1.bf16.msra.mxu0 0
        %3065 = vmatprep.subr.bf16.mxu0 0
        %3066 = vmatpush1.bf16.msra.mxu0 0
        %3067 = vmatprep.subr.bf16.mxu0 0
        %3068 = vmatpush1.bf16.msra.mxu0 0
        %3069 = vmatprep.mubr.bf16.mxu0 0
        %3070 = vmatmul.mubr.bf16.gmra.mrb[0].mxu0 %v3032
        %v3071 = vpop.f32.mrb[0].mxu0
        %v3072 = vadd.f32 0.0, %v3071
        %v3073 = vpop.f32.mrb[0].mxu0
        %v3074 = vpop.f32.mrb[0].mxu0
        %v3075 = vpop.f32.mrb[0].mxu0
        %3076 = vdwg.mxu0
        %v3078 = vsel %vm2465, %v2925, 0
        %v3081 = vsel %vm2941, %v2933, 0
        %3083 = vmatprep.subr.bf16.mxu0 0
        %3084 = vmatpush1.bf16.msra.mxu0 %v3081
        %3085 = vmatprep.subr.bf16.mxu0 0
        %3086 = vmatpush1.bf16.msra.mxu0 0
        %3087 = vmatprep.subr.bf16.mxu0 0
        %3088 = vmatpush1.bf16.msra.mxu0 0
        %3089 = vmatprep.subr.bf16.mxu0 0
        %3090 = vmatpush1.bf16.msra.mxu0 0
        %3091 = vmatprep.subr.bf16.mxu0 0
        %3092 = vmatpush1.bf16.msra.mxu0 0
        %3093 = vmatprep.subr.bf16.mxu0 0
        %3094 = vmatpush1.bf16.msra.mxu0 0
        %3095 = vmatprep.subr.bf16.mxu0 0
        %3096 = vmatpush1.bf16.msra.mxu0 0
        %3097 = vmatprep.subr.bf16.mxu0 0
        %3098 = vmatpush1.bf16.msra.mxu0 0
        %3099 = vmatprep.subr.bf16.mxu0 0
        %3100 = vmatpush1.bf16.msra.mxu0 0
        %3101 = vmatprep.subr.bf16.mxu0 0
        %3102 = vmatpush1.bf16.msra.mxu0 0
        %3103 = vmatprep.subr.bf16.mxu0 0
        %3104 = vmatpush1.bf16.msra.mxu0 0
        %3105 = vmatprep.subr.bf16.mxu0 0
        %3106 = vmatpush1.bf16.msra.mxu0 0
        %3107 = vmatprep.subr.bf16.mxu0 0
        %3108 = vmatpush1.bf16.msra.mxu0 0
        %3109 = vmatprep.subr.bf16.mxu0 0
        %3110 = vmatpush1.bf16.msra.mxu0 0
        %3111 = vmatprep.subr.bf16.mxu0 0
        %3112 = vmatpush1.bf16.msra.mxu0 0
        %3113 = vmatprep.subr.bf16.mxu0 0
        %3114 = vmatpush1.bf16.msra.mxu0 0
        %3115 = vmatprep.mubr.bf16.mxu0 0
        %3116 = vmatmul.mubr.bf16.gmra.mrb[0].mxu0 %v3078
        %v3117 = vpop.f32.mrb[0].mxu0
        %v3118 = vadd.f32 0.0, %v3117
        %v3119 = vpop.f32.mrb[0].mxu0
        %v3120 = vpop.f32.mrb[0].mxu0
        %v3121 = vpop.f32.mrb[0].mxu0
        %3122 = vdwg.mxu0
        %v3124 = vsel %vm2465, %v2926, 0
        %v3127 = vsel %vm2941, %v2934, 0
        %3129 = vmatprep.subr.bf16.mxu0 0
        %3130 = vmatpush1.bf16.msra.mxu0 %v3127
        %3131 = vmatprep.subr.bf16.mxu0 0
        %3132 = vmatpush1.bf16.msra.mxu0 0
        %3133 = vmatprep.subr.bf16.mxu0 0
        %3134 = vmatpush1.bf16.msra.mxu0 0
        %3135 = vmatprep.subr.bf16.mxu0 0
        %3136 = vmatpush1.bf16.msra.mxu0 0
        %3137 = vmatprep.subr.bf16.mxu0 0
        %3138 = vmatpush1.bf16.msra.mxu0 0
        %3139 = vmatprep.subr.bf16.mxu0 0
        %3140 = vmatpush1.bf16.msra.mxu0 0
        %3141 = vmatprep.subr.bf16.mxu0 0
        %3142 = vmatpush1.bf16.msra.mxu0 0
        %3143 = vmatprep.subr.bf16.mxu0 0
        %3144 = vmatpush1.bf16.msra.mxu0 0
        %3145 = vmatprep.subr.bf16.mxu0 0
        %3146 = vmatpush1.bf16.msra.mxu0 0
        %3147 = vmatprep.subr.bf16.mxu0 0
        %3148 = vmatpush1.bf16.msra.mxu0 0
        %3149 = vmatprep.subr.bf16.mxu0 0
        %3150 = vmatpush1.bf16.msra.mxu0 0
        %3151 = vmatprep.subr.bf16.mxu0 0
        %3152 = vmatpush1.bf16.msra.mxu0 0
        %3153 = vmatprep.subr.bf16.mxu0 0
        %3154 = vmatpush1.bf16.msra.mxu0 0
        %3155 = vmatprep.subr.bf16.mxu0 0
        %3156 = vmatpush1.bf16.msra.mxu0 0
        %3157 = vmatprep.subr.bf16.mxu0 0
        %3158 = vmatpush1.bf16.msra.mxu0 0
        %3159 = vmatprep.subr.bf16.mxu0 0
        %3160 = vmatpush1.bf16.msra.mxu0 0
        %3161 = vmatprep.mubr.bf16.mxu0 0
        %3162 = vmatmul.mubr.bf16.gmra.mrb[0].mxu0 %v3124
        %v3163 = vpop.f32.mrb[0].mxu0
        %v3164 = vadd.f32 0.0, %v3163
        %v3165 = vpop.f32.mrb[0].mxu0
        %v3166 = vpop.f32.mrb[0].mxu0
        %v3167 = vpop.f32.mrb[0].mxu0
        %3168 = vdwg.mxu0
        %v3170 = vsel %vm2465, %v2927, 0
        %v3173 = vsel %vm2941, %v2935, 0
        %3175 = vmatprep.subr.bf16.mxu0 0
        %3176 = vmatpush1.bf16.msra.mxu0 %v3173
        %3177 = vmatprep.subr.bf16.mxu0 0
        %3178 = vmatpush1.bf16.msra.mxu0 0
        %3179 = vmatprep.subr.bf16.mxu0 0
        %3180 = vmatpush1.bf16.msra.mxu0 0
        %3181 = vmatprep.subr.bf16.mxu0 0
        %3182 = vmatpush1.bf16.msra.mxu0 0
        %3183 = vmatprep.subr.bf16.mxu0 0
        %3184 = vmatpush1.bf16.msra.mxu0 0
        %3185 = vmatprep.subr.bf16.mxu0 0
        %3186 = vmatpush1.bf16.msra.mxu0 0
        %3187 = vmatprep.subr.bf16.mxu0 0
        %3188 = vmatpush1.bf16.msra.mxu0 0
        %3189 = vmatprep.subr.bf16.mxu0 0
        %3190 = vmatpush1.bf16.msra.mxu0 0
        %3191 = vmatprep.subr.bf16.mxu0 0
        %3192 = vmatpush1.bf16.msra.mxu0 0
        %3193 = vmatprep.subr.bf16.mxu0 0
        %3194 = vmatpush1.bf16.msra.mxu0 0
        %3195 = vmatprep.subr.bf16.mxu0 0
        %3196 = vmatpush1.bf16.msra.mxu0 0
        %3197 = vmatprep.subr.bf16.mxu0 0
        %3198 = vmatpush1.bf16.msra.mxu0 0
        %3199 = vmatprep.subr.bf16.mxu0 0
        %3200 = vmatpush1.bf16.msra.mxu0 0
        %3201 = vmatprep.subr.bf16.mxu0 0
        %3202 = vmatpush1.bf16.msra.mxu0 0
        %3203 = vmatprep.subr.bf16.mxu0 0
        %3204 = vmatpush1.bf16.msra.mxu0 0
        %3205 = vmatprep.subr.bf16.mxu0 0
        %3206 = vmatpush1.bf16.msra.mxu0 0
        %3207 = vmatprep.mubr.bf16.mxu0 0
        %3208 = vmatmul.mubr.bf16.gmra.mrb[0].mxu0 %v3170
        %v3209 = vpop.f32.mrb[0].mxu0
        %v3210 = vadd.f32 0.0, %v3209
        %v3211 = vpop.f32.mrb[0].mxu0
        %v3212 = vpop.f32.mrb[0].mxu0
        %v3213 = vpop.f32.mrb[0].mxu0
        %3214 = vdwg.mxu0
        %v3216 = vsel %vm2465, %v2928, 0
        %v3219 = vsel %vm2941, %v2936, 0
        %3221 = vmatprep.subr.bf16.mxu0 0
        %3222 = vmatpush1.bf16.msra.mxu0 %v3219
        %3223 = vmatprep.subr.bf16.mxu0 0
        %3224 = vmatpush1.bf16.msra.mxu0 0
        %3225 = vmatprep.subr.bf16.mxu0 0
        %3226 = vmatpush1.bf16.msra.mxu0 0
        %3227 = vmatprep.subr.bf16.mxu0 0
        %3228 = vmatpush1.bf16.msra.mxu0 0
        %3229 = vmatprep.subr.bf16.mxu0 0
        %3230 = vmatpush1.bf16.msra.mxu0 0
        %3231 = vmatprep.subr.bf16.mxu0 0
        %3232 = vmatpush1.bf16.msra.mxu0 0
        %3233 = vmatprep.subr.bf16.mxu0 0
        %3234 = vmatpush1.bf16.msra.mxu0 0
        %3235 = vmatprep.subr.bf16.mxu0 0
        %3236 = vmatpush1.bf16.msra.mxu0 0
        %3237 = vmatprep.subr.bf16.mxu0 0
        %3238 = vmatpush1.bf16.msra.mxu0 0
        %3239 = vmatprep.subr.bf16.mxu0 0
        %3240 = vmatpush1.bf16.msra.mxu0 0
        %3241 = vmatprep.subr.bf16.mxu0 0
        %3242 = vmatpush1.bf16.msra.mxu0 0
        %3243 = vmatprep.subr.bf16.mxu0 0
        %3244 = vmatpush1.bf16.msra.mxu0 0
        %3245 = vmatprep.subr.bf16.mxu0 0
        %3246 = vmatpush1.bf16.msra.mxu0 0
        %3247 = vmatprep.subr.bf16.mxu0 0
        %3248 = vmatpush1.bf16.msra.mxu0 0
        %3249 = vmatprep.subr.bf16.mxu0 0
        %3250 = vmatpush1.bf16.msra.mxu0 0
        %3251 = vmatprep.subr.bf16.mxu0 0
        %3252 = vmatpush1.bf16.msra.mxu0 0
        %3253 = vmatprep.mubr.bf16.mxu0 0
        %3254 = vmatmul.mubr.bf16.gmra.mrb[0].mxu0 %v3216
        %v3255 = vpop.f32.mrb[0].mxu0
        %v3256 = vadd.f32 0.0, %v3255
        %v3257 = vpop.f32.mrb[0].mxu0
        %v3258 = vpop.f32.mrb[0].mxu0
        %v3259 = vpop.f32.mrb[0].mxu0
        %3260 = vdwg.mxu0
        %v3262 = vsel %vm2465, %v2929, 0
        %v3265 = vsel %vm2941, %v2937, 0
        %3267 = vmatprep.subr.bf16.mxu0 0
        %3268 = vmatpush1.bf16.msra.mxu0 %v3265
        %3269 = vmatprep.subr.bf16.mxu0 0
        %3270 = vmatpush1.bf16.msra.mxu0 0
        %3271 = vmatprep.subr.bf16.mxu0 0
        %3272 = vmatpush1.bf16.msra.mxu0 0
        %3273 = vmatprep.subr.bf16.mxu0 0
        %3274 = vmatpush1.bf16.msra.mxu0 0
        %3275 = vmatprep.subr.bf16.mxu0 0
        %3276 = vmatpush1.bf16.msra.mxu0 0
        %3277 = vmatprep.subr.bf16.mxu0 0
        %3278 = vmatpush1.bf16.msra.mxu0 0
        %3279 = vmatprep.subr.bf16.mxu0 0
        %3280 = vmatpush1.bf16.msra.mxu0 0
        %3281 = vmatprep.subr.bf16.mxu0 0
        %3282 = vmatpush1.bf16.msra.mxu0 0
        %3283 = vmatprep.subr.bf16.mxu0 0
        %3284 = vmatpush1.bf16.msra.mxu0 0
        %3285 = vmatprep.subr.bf16.mxu0 0
        %3286 = vmatpush1.bf16.msra.mxu0 0
        %3287 = vmatprep.subr.bf16.mxu0 0
        %3288 = vmatpush1.bf16.msra.mxu0 0
        %3289 = vmatprep.subr.bf16.mxu0 0
        %3290 = vmatpush1.bf16.msra.mxu0 0
        %3291 = vmatprep.subr.bf16.mxu0 0
        %3292 = vmatpush1.bf16.msra.mxu0 0
        %3293 = vmatprep.subr.bf16.mxu0 0
        %3294 = vmatpush1.bf16.msra.mxu0 0
        %3295 = vmatprep.subr.bf16.mxu0 0
        %3296 = vmatpush1.bf16.msra.mxu0 0
        %3297 = vmatprep.subr.bf16.mxu0 0
        %3298 = vmatpush1.bf16.msra.mxu0 0
        %3299 = vmatprep.mubr.bf16.mxu0 0
        %3300 = vmatmul.mubr.bf16.gmra.mrb[0].mxu0 %v3262
        %v3301 = vpop.f32.mrb[0].mxu0
        %v3302 = vadd.f32 0.0, %v3301
        %v3303 = vpop.f32.mrb[0].mxu0
        %v3304 = vpop.f32.mrb[0].mxu0
        %v3305 = vpop.f32.mrb[0].mxu0
        %3306 = vdwg.mxu0
        %v3307 = vpack.c.bf16 %v2980, %v2980
        %v3308 = vpack.c.bf16 %v3026, %v3026
        %v3309 = vpack.c.bf16 %v3072, %v3072
        %v3310 = vpack.c.bf16 %v3118, %v3118
        %v3311 = vpack.c.bf16 %v3164, %v3164
        %v3312 = vpack.c.bf16 %v3210, %v3210
        %v3313 = vpack.c.bf16 %v3256, %v3256
        %v3314 = vpack.c.bf16 %v3302, %v3302
        %v3315 = vld [vmem:[%s10] sm:$0xf]
        %v3316 = vld [vmem:[%s10 + $0x4] sm:$0xf]
        %v3317 = vld [vmem:[%s10 + $0x8] sm:$0xf]
        %v3318 = vld [vmem:[%s10 + $0xc] sm:$0xf]
        %v3319 = vld [vmem:[%s10 + $0x10] sm:$0xf]
        %v3320 = vld [vmem:[%s10 + $0x14] sm:$0xf]
        %v3321 = vld [vmem:[%s10 + $0x18] sm:$0xf]
        %v3322 = vld [vmem:[%s10 + $0x1c] sm:$0xf]
        %v3324 = vsel %vm2465, %v3307, 0
        %v3327 = vsel %vm2941, %v3315, 0
        %3329 = vmatprep.subr.bf16.mxu0 0
        %3330 = vmatpush1.bf16.msra.mxu0 %v3327
        %3331 = vmatprep.subr.bf16.mxu0 0
        %3332 = vmatpush1.bf16.msra.mxu0 0
        %3333 = vmatprep.subr.bf16.mxu0 0
        %3334 = vmatpush1.bf16.msra.mxu0 0
        %3335 = vmatprep.subr.bf16.mxu0 0
        %3336 = vmatpush1.bf16.msra.mxu0 0
        %3337 = vmatprep.subr.bf16.mxu0 0
        %3338 = vmatpush1.bf16.msra.mxu0 0
        %3339 = vmatprep.subr.bf16.mxu0 0
        %3340 = vmatpush1.bf16.msra.mxu0 0
        %3341 = vmatprep.subr.bf16.mxu0 0
        %3342 = vmatpush1.bf16.msra.mxu0 0
        %3343 = vmatprep.subr.bf16.mxu0 0
        %3344 = vmatpush1.bf16.msra.mxu0 0
        %3345 = vmatprep.subr.bf16.mxu0 0
        %3346 = vmatpush1.bf16.msra.mxu0 0
        %3347 = vmatprep.subr.bf16.mxu0 0
        %3348 = vmatpush1.bf16.msra.mxu0 0
        %3349 = vmatprep.subr.bf16.mxu0 0
        %3350 = vmatpush1.bf16.msra.mxu0 0
        %3351 = vmatprep.subr.bf16.mxu0 0
        %3352 = vmatpush1.bf16.msra.mxu0 0
        %3353 = vmatprep.subr.bf16.mxu0 0
        %3354 = vmatpush1.bf16.msra.mxu0 0
        %3355 = vmatprep.subr.bf16.mxu0 0
        %3356 = vmatpush1.bf16.msra.mxu0 0
        %3357 = vmatprep.subr.bf16.mxu0 0
        %3358 = vmatpush1.bf16.msra.mxu0 0
        %3359 = vmatprep.subr.bf16.mxu0 0
        %3360 = vmatpush1.bf16.msra.mxu0 0
        %3361 = vmatprep.mubr.bf16.mxu0 0
        %3362 = vmatmul.mubr.bf16.gmra.mrb[0].mxu0 %v3324
        %v3363 = vpop.f32.mrb[0].mxu0
        %v3364 = vadd.f32 0.0, %v3363
        %v3365 = vpop.f32.mrb[0].mxu0
        %v3366 = vpop.f32.mrb[0].mxu0
        %v3367 = vpop.f32.mrb[0].mxu0
        %3368 = vdwg.mxu0
        %v3370 = vsel %vm2465, %v3308, 0
        %v3373 = vsel %vm2941, %v3316, 0
        %3375 = vmatprep.subr.bf16.mxu0 0
        %3376 = vmatpush1.bf16.msra.mxu0 %v3373
        %3377 = vmatprep.subr.bf16.mxu0 0
        %3378 = vmatpush1.bf16.msra.mxu0 0
        %3379 = vmatprep.subr.bf16.mxu0 0
        %3380 = vmatpush1.bf16.msra.mxu0 0
        %3381 = vmatprep.subr.bf16.mxu0 0
        %3382 = vmatpush1.bf16.msra.mxu0 0
        %3383 = vmatprep.subr.bf16.mxu0 0
        %3384 = vmatpush1.bf16.msra.mxu0 0
        %3385 = vmatprep.subr.bf16.mxu0 0
        %3386 = vmatpush1.bf16.msra.mxu0 0
        %3387 = vmatprep.subr.bf16.mxu0 0
        %3388 = vmatpush1.bf16.msra.mxu0 0
        %3389 = vmatprep.subr.bf16.mxu0 0
        %3390 = vmatpush1.bf16.msra.mxu0 0
        %3391 = vmatprep.subr.bf16.mxu0 0
        %3392 = vmatpush1.bf16.msra.mxu0 0
        %3393 = vmatprep.subr.bf16.mxu0 0
        %3394 = vmatpush1.bf16.msra.mxu0 0
        %3395 = vmatprep.subr.bf16.mxu0 0
        %3396 = vmatpush1.bf16.msra.mxu0 0
        %3397 = vmatprep.subr.bf16.mxu0 0
        %3398 = vmatpush1.bf16.msra.mxu0 0
        %3399 = vmatprep.subr.bf16.mxu0 0
        %3400 = vmatpush1.bf16.msra.mxu0 0
        %3401 = vmatprep.subr.bf16.mxu0 0
        %3402 = vmatpush1.bf16.msra.mxu0 0
        %3403 = vmatprep.subr.bf16.mxu0 0
        %3404 = vmatpush1.bf16.msra.mxu0 0
        %3405 = vmatprep.subr.bf16.mxu0 0
        %3406 = vmatpush1.bf16.msra.mxu0 0
        %3407 = vmatprep.mubr.bf16.mxu0 0
        %3408 = vmatmul.mubr.bf16.gmra.mrb[0].mxu0 %v3370
        %v3409 = vpop.f32.mrb[0].mxu0
        %v3410 = vadd.f32 0.0, %v3409
        %v3411 = vpop.f32.mrb[0].mxu0
        %v3412 = vpop.f32.mrb[0].mxu0
        %v3413 = vpop.f32.mrb[0].mxu0
        %3414 = vdwg.mxu0
        %v3416 = vsel %vm2465, %v3309, 0
        %v3419 = vsel %vm2941, %v3317, 0
        %3421 = vmatprep.subr.bf16.mxu0 0
        %3422 = vmatpush1.bf16.msra.mxu0 %v3419
        %3423 = vmatprep.subr.bf16.mxu0 0
        %3424 = vmatpush1.bf16.msra.mxu0 0
        %3425 = vmatprep.subr.bf16.mxu0 0
        %3426 = vmatpush1.bf16.msra.mxu0 0
        %3427 = vmatprep.subr.bf16.mxu0 0
        %3428 = vmatpush1.bf16.msra.mxu0 0
        %3429 = vmatprep.subr.bf16.mxu0 0
        %3430 = vmatpush1.bf16.msra.mxu0 0
        %3431 = vmatprep.subr.bf16.mxu0 0
        %3432 = vmatpush1.bf16.msra.mxu0 0
        %3433 = vmatprep.subr.bf16.mxu0 0
        %3434 = vmatpush1.bf16.msra.mxu0 0
        %3435 = vmatprep.subr.bf16.mxu0 0
        %3436 = vmatpush1.bf16.msra.mxu0 0
        %3437 = vmatprep.subr.bf16.mxu0 0
        %3438 = vmatpush1.bf16.msra.mxu0 0
        %3439 = vmatprep.subr.bf16.mxu0 0
        %3440 = vmatpush1.bf16.msra.mxu0 0
        %3441 = vmatprep.subr.bf16.mxu0 0
        %3442 = vmatpush1.bf16.msra.mxu0 0
        %3443 = vmatprep.subr.bf16.mxu0 0
        %3444 = vmatpush1.bf16.msra.mxu0 0
        %3445 = vmatprep.subr.bf16.mxu0 0
        %3446 = vmatpush1.bf16.msra.mxu0 0
        %3447 = vmatprep.subr.bf16.mxu0 0
        %3448 = vmatpush1.bf16.msra.mxu0 0
        %3449 = vmatprep.subr.bf16.mxu0 0
        %3450 = vmatpush1.bf16.msra.mxu0 0
        %3451 = vmatprep.subr.bf16.mxu0 0
        %3452 = vmatpush1.bf16.msra.mxu0 0
        %3453 = vmatprep.mubr.bf16.mxu0 0
        %3454 = vmatmul.mubr.bf16.gmra.mrb[0].mxu0 %v3416
        %v3455 = vpop.f32.mrb[0].mxu0
        %v3456 = vadd.f32 0.0, %v3455
        %v3457 = vpop.f32.mrb[0].mxu0
        %v3458 = vpop.f32.mrb[0].mxu0
        %v3459 = vpop.f32.mrb[0].mxu0
        %3460 = vdwg.mxu0
        %v3462 = vsel %vm2465, %v3310, 0
        %v3465 = vsel %vm2941, %v3318, 0
        %3467 = vmatprep.subr.bf16.mxu0 0
        %3468 = vmatpush1.bf16.msra.mxu0 %v3465
        %3469 = vmatprep.subr.bf16.mxu0 0
        %3470 = vmatpush1.bf16.msra.mxu0 0
        %3471 = vmatprep.subr.bf16.mxu0 0
        %3472 = vmatpush1.bf16.msra.mxu0 0
        %3473 = vmatprep.subr.bf16.mxu0 0
        %3474 = vmatpush1.bf16.msra.mxu0 0
        %3475 = vmatprep.subr.bf16.mxu0 0
        %3476 = vmatpush1.bf16.msra.mxu0 0
        %3477 = vmatprep.subr.bf16.mxu0 0
        %3478 = vmatpush1.bf16.msra.mxu0 0
        %3479 = vmatprep.subr.bf16.mxu0 0
        %3480 = vmatpush1.bf16.msra.mxu0 0
        %3481 = vmatprep.subr.bf16.mxu0 0
        %3482 = vmatpush1.bf16.msra.mxu0 0
        %3483 = vmatprep.subr.bf16.mxu0 0
        %3484 = vmatpush1.bf16.msra.mxu0 0
        %3485 = vmatprep.subr.bf16.mxu0 0
        %3486 = vmatpush1.bf16.msra.mxu0 0
        %3487 = vmatprep.subr.bf16.mxu0 0
        %3488 = vmatpush1.bf16.msra.mxu0 0
        %3489 = vmatprep.subr.bf16.mxu0 0
        %3490 = vmatpush1.bf16.msra.mxu0 0
        %3491 = vmatprep.subr.bf16.mxu0 0
        %3492 = vmatpush1.bf16.msra.mxu0 0
        %3493 = vmatprep.subr.bf16.mxu0 0
        %3494 = vmatpush1.bf16.msra.mxu0 0
        %3495 = vmatprep.subr.bf16.mxu0 0
        %3496 = vmatpush1.bf16.msra.mxu0 0
        %3497 = vmatprep.subr.bf16.mxu0 0
        %3498 = vmatpush1.bf16.msra.mxu0 0
        %3499 = vmatprep.mubr.bf16.mxu0 0
        %3500 = vmatmul.mubr.bf16.gmra.mrb[0].mxu0 %v3462
        %v3501 = vpop.f32.mrb[0].mxu0
        %v3502 = vadd.f32 0.0, %v3501
        %v3503 = vpop.f32.mrb[0].mxu0
        %v3504 = vpop.f32.mrb[0].mxu0
        %v3505 = vpop.f32.mrb[0].mxu0
        %3506 = vdwg.mxu0
        %v3508 = vsel %vm2465, %v3311, 0
        %v3511 = vsel %vm2941, %v3319, 0
        %3513 = vmatprep.subr.bf16.mxu0 0
        %3514 = vmatpush1.bf16.msra.mxu0 %v3511
        %3515 = vmatprep.subr.bf16.mxu0 0
        %3516 = vmatpush1.bf16.msra.mxu0 0
        %3517 = vmatprep.subr.bf16.mxu0 0
        %3518 = vmatpush1.bf16.msra.mxu0 0
        %3519 = vmatprep.subr.bf16.mxu0 0
        %3520 = vmatpush1.bf16.msra.mxu0 0
        %3521 = vmatprep.subr.bf16.mxu0 0
        %3522 = vmatpush1.bf16.msra.mxu0 0
        %3523 = vmatprep.subr.bf16.mxu0 0
        %3524 = vmatpush1.bf16.msra.mxu0 0
        %3525 = vmatprep.subr.bf16.mxu0 0
        %3526 = vmatpush1.bf16.msra.mxu0 0
        %3527 = vmatprep.subr.bf16.mxu0 0
        %3528 = vmatpush1.bf16.msra.mxu0 0
        %3529 = vmatprep.subr.bf16.mxu0 0
        %3530 = vmatpush1.bf16.msra.mxu0 0
        %3531 = vmatprep.subr.bf16.mxu0 0
        %3532 = vmatpush1.bf16.msra.mxu0 0
        %3533 = vmatprep.subr.bf16.mxu0 0
        %3534 = vmatpush1.bf16.msra.mxu0 0
        %3535 = vmatprep.subr.bf16.mxu0 0
        %3536 = vmatpush1.bf16.msra.mxu0 0
        %3537 = vmatprep.subr.bf16.mxu0 0
        %3538 = vmatpush1.bf16.msra.mxu0 0
        %3539 = vmatprep.subr.bf16.mxu0 0
        %3540 = vmatpush1.bf16.msra.mxu0 0
        %3541 = vmatprep.subr.bf16.mxu0 0
        %3542 = vmatpush1.bf16.msra.mxu0 0
        %3543 = vmatprep.subr.bf16.mxu0 0
        %3544 = vmatpush1.bf16.msra.mxu0 0
        %3545 = vmatprep.mubr.bf16.mxu0 0
        %3546 = vmatmul.mubr.bf16.gmra.mrb[0].mxu0 %v3508
        %v3547 = vpop.f32.mrb[0].mxu0
        %v3548 = vadd.f32 0.0, %v3547
        %v3549 = vpop.f32.mrb[0].mxu0
        %v3550 = vpop.f32.mrb[0].mxu0
        %v3551 = vpop.f32.mrb[0].mxu0
        %3552 = vdwg.mxu0
        %v3554 = vsel %vm2465, %v3312, 0
        %v3557 = vsel %vm2941, %v3320, 0
        %3559 = vmatprep.subr.bf16.mxu0 0
        %3560 = vmatpush1.bf16.msra.mxu0 %v3557
        %3561 = vmatprep.subr.bf16.mxu0 0
        %3562 = vmatpush1.bf16.msra.mxu0 0
        %3563 = vmatprep.subr.bf16.mxu0 0
        %3564 = vmatpush1.bf16.msra.mxu0 0
        %3565 = vmatprep.subr.bf16.mxu0 0
        %3566 = vmatpush1.bf16.msra.mxu0 0
        %3567 = vmatprep.subr.bf16.mxu0 0
        %3568 = vmatpush1.bf16.msra.mxu0 0
        %3569 = vmatprep.subr.bf16.mxu0 0
        %3570 = vmatpush1.bf16.msra.mxu0 0
        %3571 = vmatprep.subr.bf16.mxu0 0
        %3572 = vmatpush1.bf16.msra.mxu0 0
        %3573 = vmatprep.subr.bf16.mxu0 0
        %3574 = vmatpush1.bf16.msra.mxu0 0
        %3575 = vmatprep.subr.bf16.mxu0 0
        %3576 = vmatpush1.bf16.msra.mxu0 0
        %3577 = vmatprep.subr.bf16.mxu0 0
        %3578 = vmatpush1.bf16.msra.mxu0 0
        %3579 = vmatprep.subr.bf16.mxu0 0
        %3580 = vmatpush1.bf16.msra.mxu0 0
        %3581 = vmatprep.subr.bf16.mxu0 0
        %3582 = vmatpush1.bf16.msra.mxu0 0
        %3583 = vmatprep.subr.bf16.mxu0 0
        %3584 = vmatpush1.bf16.msra.mxu0 0
        %3585 = vmatprep.subr.bf16.mxu0 0
        %3586 = vmatpush1.bf16.msra.mxu0 0
        %3587 = vmatprep.subr.bf16.mxu0 0
        %3588 = vmatpush1.bf16.msra.mxu0 0
        %3589 = vmatprep.subr.bf16.mxu0 0
        %3590 = vmatpush1.bf16.msra.mxu0 0
        %3591 = vmatprep.mubr.bf16.mxu0 0
        %3592 = vmatmul.mubr.bf16.gmra.mrb[0].mxu0 %v3554
        %v3593 = vpop.f32.mrb[0].mxu0
        %v3594 = vadd.f32 0.0, %v3593
        %v3595 = vpop.f32.mrb[0].mxu0
        %v3596 = vpop.f32.mrb[0].mxu0
        %v3597 = vpop.f32.mrb[0].mxu0
        %3598 = vdwg.mxu0
        %v3600 = vsel %vm2465, %v3313, 0
        %v3603 = vsel %vm2941, %v3321, 0
        %3605 = vmatprep.subr.bf16.mxu0 0
        %3606 = vmatpush1.bf16.msra.mxu0 %v3603
        %3607 = vmatprep.subr.bf16.mxu0 0
        %3608 = vmatpush1.bf16.msra.mxu0 0
        %3609 = vmatprep.subr.bf16.mxu0 0
        %3610 = vmatpush1.bf16.msra.mxu0 0
        %3611 = vmatprep.subr.bf16.mxu0 0
        %3612 = vmatpush1.bf16.msra.mxu0 0
        %3613 = vmatprep.subr.bf16.mxu0 0
        %3614 = vmatpush1.bf16.msra.mxu0 0
        %3615 = vmatprep.subr.bf16.mxu0 0
        %3616 = vmatpush1.bf16.msra.mxu0 0
        %3617 = vmatprep.subr.bf16.mxu0 0
        %3618 = vmatpush1.bf16.msra.mxu0 0
        %3619 = vmatprep.subr.bf16.mxu0 0
        %3620 = vmatpush1.bf16.msra.mxu0 0
        %3621 = vmatprep.subr.bf16.mxu0 0
        %3622 = vmatpush1.bf16.msra.mxu0 0
        %3623 = vmatprep.subr.bf16.mxu0 0
        %3624 = vmatpush1.bf16.msra.mxu0 0
        %3625 = vmatprep.subr.bf16.mxu0 0
        %3626 = vmatpush1.bf16.msra.mxu0 0
        %3627 = vmatprep.subr.bf16.mxu0 0
        %3628 = vmatpush1.bf16.msra.mxu0 0
        %3629 = vmatprep.subr.bf16.mxu0 0
        %3630 = vmatpush1.bf16.msra.mxu0 0
        %3631 = vmatprep.subr.bf16.mxu0 0
        %3632 = vmatpush1.bf16.msra.mxu0 0
        %3633 = vmatprep.subr.bf16.mxu0 0
        %3634 = vmatpush1.bf16.msra.mxu0 0
        %3635 = vmatprep.subr.bf16.mxu0 0
        %3636 = vmatpush1.bf16.msra.mxu0 0
        %3637 = vmatprep.mubr.bf16.mxu0 0
        %3638 = vmatmul.mubr.bf16.gmra.mrb[0].mxu0 %v3600
        %v3639 = vpop.f32.mrb[0].mxu0
        %v3640 = vadd.f32 0.0, %v3639
        %v3641 = vpop.f32.mrb[0].mxu0
        %v3642 = vpop.f32.mrb[0].mxu0
        %v3643 = vpop.f32.mrb[0].mxu0
        %3644 = vdwg.mxu0
        %v3646 = vsel %vm2465, %v3314, 0
        %v3649 = vsel %vm2941, %v3322, 0
        %3651 = vmatprep.subr.bf16.mxu0 0
        %3652 = vmatpush1.bf16.msra.mxu0 %v3649
        %3653 = vmatprep.subr.bf16.mxu0 0
        %3654 = vmatpush1.bf16.msra.mxu0 0
        %3655 = vmatprep.subr.bf16.mxu0 0
        %3656 = vmatpush1.bf16.msra.mxu0 0
        %3657 = vmatprep.subr.bf16.mxu0 0
        %3658 = vmatpush1.bf16.msra.mxu0 0
        %3659 = vmatprep.subr.bf16.mxu0 0
        %3660 = vmatpush1.bf16.msra.mxu0 0
        %3661 = vmatprep.subr.bf16.mxu0 0
        %3662 = vmatpush1.bf16.msra.mxu0 0
        %3663 = vmatprep.subr.bf16.mxu0 0
        %3664 = vmatpush1.bf16.msra.mxu0 0
        %3665 = vmatprep.subr.bf16.mxu0 0
        %3666 = vmatpush1.bf16.msra.mxu0 0
        %3667 = vmatprep.subr.bf16.mxu0 0
        %3668 = vmatpush1.bf16.msra.mxu0 0
        %3669 = vmatprep.subr.bf16.mxu0 0
        %3670 = vmatpush1.bf16.msra.mxu0 0
        %3671 = vmatprep.subr.bf16.mxu0 0
        %3672 = vmatpush1.bf16.msra.mxu0 0
        %3673 = vmatprep.subr.bf16.mxu0 0
        %3674 = vmatpush1.bf16.msra.mxu0 0
        %3675 = vmatprep.subr.bf16.mxu0 0
        %3676 = vmatpush1.bf16.msra.mxu0 0
        %3677 = vmatprep.subr.bf16.mxu0 0
        %3678 = vmatpush1.bf16.msra.mxu0 0
        %3679 = vmatprep.subr.bf16.mxu0 0
        %3680 = vmatpush1.bf16.msra.mxu0 0
        %3681 = vmatprep.subr.bf16.mxu0 0
        %3682 = vmatpush1.bf16.msra.mxu0 0
        %3683 = vmatprep.mubr.bf16.mxu0 0
        %3684 = vmatmul.mubr.bf16.gmra.mrb[0].mxu0 %v3646
        %v3685 = vpop.f32.mrb[0].mxu0
        %v3686 = vadd.f32 0.0, %v3685
        %v3687 = vpop.f32.mrb[0].mxu0
        %v3688 = vpop.f32.mrb[0].mxu0
        %v3689 = vpop.f32.mrb[0].mxu0
        %3690 = vdwg.mxu0
        %v3691 = vsel %vm524, %v3364, 0.0
        %v3692 = vsel %vm524, %v3410, 0.0
        %v3693 = vadd.f32 %v3691, %v3692
        %v3694 = vsel %vm524, %v3456, 0.0
        %v3695 = vadd.f32 %v3693, %v3694
        %v3696 = vsel %vm524, %v3502, 0.0
        %v3697 = vadd.f32 %v3695, %v3696
        %v3698 = vsel %vm524, %v3548, 0.0
        %v3699 = vadd.f32 %v3697, %v3698
        %v3700 = vsel %vm524, %v3594, 0.0
        %v3701 = vadd.f32 %v3699, %v3700
        %v3702 = vsel %vm524, %v3640, 0.0
        %v3703 = vadd.f32 %v3701, %v3702
        %v3704 = vsel %vm524, %v3686, 0.0
        %v3705 = vadd.f32 %v3703, %v3704
        %v3706 = vlaneseq
        %v3707 = vshrl.u32 %v3706, 7
        %v3708 = vsub.s32 0, %v3707
        %v3709 = vrot.slane %v523, %v3708
        %v3710 = vadd.f32 %v3705, %v3709
        %v3711 = vadd.f32 %v517, %v3710
        %v3712 = vsel %vm524, %v3711, 0.0
        %3713 = vadd.xlane.f32.xlu0 %v3712
        %v3714 = vpop.xlane.xlu0 %3713
        %v3715 = vmul.f32 %v3714, %v528
        %v3716 = vsub.f32 %v3711, %v3715
        %v3717 = vmul.f32 %v3716, %v3716
        %v3718 = vsel %vm524, %v3717, 0.0
        %3719 = vadd.xlane.f32.xlu0 %v3718
        %v3720 = vpop.xlane.xlu0 %3719
        %v3721 = vmul.f32 %v3720, %v528
        %v3722 = vadd.f32 %v3721, 1e-05
        %v3723 = vrsqrt.pop %v3722
        %v3724 = vmul.f32 %v3716, %v3723
        %v3725 = vlaneseq
        %v3726 = vshrl.u32 %v3725, 7
        %v3727 = vsub.s32 2, %v3726
        %v3728 = vrot.slane %v522, %v3727
        %v3729 = vmul.f32 %v3724, %v3728
        %v3730 = vlaneseq
        %v3731 = vshrl.u32 %v3730, 7
        %v3732 = vsub.s32 3, %v3731
        %v3733 = vrot.slane %v522, %v3732
        %v3734 = vadd.f32 %v3729, %v3733
        %v3735 = vlaneseq
        %v3736 = vshrl.u32 %v3735, 7
        %v3737 = vsub.s32 4, %v3736
        %v3738 = vrot.slane %v522, %v3737
        %v3739 = vmul.f32 %v3734, %v3738
        %v3740 = vlaneseq
        %v3741 = vshrl.u32 %v3740, 7
        %v3742 = vsub.s32 5, %v3741
        %v3743 = vrot.slane %v522, %v3742
        %v3744 = vadd.f32 %v3739, %v3743
        %v3745 = vpack.c.bf16 %v3744, %v3744
        %v3746 = vld [vmem:[%s11] sm:$0xf]
        %v3747 = vld [vmem:[%s11 + $0x4] sm:$0xf]
        %v3748 = vld [vmem:[%s11 + $0x8] sm:$0xf]
        %v3749 = vld [vmem:[%s11 + $0xc] sm:$0xf]
        %v3750 = vld [vmem:[%s11 + $0x10] sm:$0xf]
        %v3751 = vld [vmem:[%s11 + $0x14] sm:$0xf]
        %v3752 = vld [vmem:[%s11 + $0x18] sm:$0xf]
        %v3753 = vld [vmem:[%s11 + $0x1c] sm:$0xf]
        %v3754 = vld [vmem:[%s12] sm:$0x1]
        %v3756 = vlaneseq
        %v3757 = vshrl.u32 %v3756, 7
        %v3758 = vsub.s32 0, %v3757
        %v3759 = vrot.slane %v3754, %v3758
        %v3769 = vunpack.c.l.b16 %v3746
        %v3770 = vunpack.c.l.b16 %v3747
        %v3771 = vunpack.c.l.b16 %v3748
        %v3772 = vunpack.c.l.b16 %v3749
        %v3773 = vunpack.c.l.b16 %v3750
        %v3774 = vunpack.c.l.b16 %v3751
        %v3775 = vunpack.c.l.b16 %v3752
        %v3776 = vunpack.c.l.b16 %v3753
        %v3777 = vpack.c.b16 %v3770, %v3769
        %v3778 = vpack.c.b16 %v3772, %v3771
        %v3779 = vpack.c.b16 %v3774, %v3773
        %v3780 = vpack.c.b16 %v3776, %v3775
        %v3786 = vsel %vm524, %v3745, 0
        %3788 = vmatprep.subr.bf16.mxu0 0
        %3789 = vmatpush1.bf16.msra.mxu0 %v3777
        %3790 = vmatprep.subr.bf16.mxu0 0
        %3791 = vmatpush1.bf16.msra.mxu0 %v3778
        %3792 = vmatprep.subr.bf16.mxu0 0
        %3793 = vmatpush1.bf16.msra.mxu0 %v3779
        %3794 = vmatprep.subr.bf16.mxu0 0
        %3795 = vmatpush1.bf16.msra.mxu0 %v3780
        %3796 = vmatprep.subr.bf16.mxu0 0
        %3797 = vmatpush1.bf16.msra.mxu0 0
        %3798 = vmatprep.subr.bf16.mxu0 0
        %3799 = vmatpush1.bf16.msra.mxu0 0
        %3800 = vmatprep.subr.bf16.mxu0 0
        %3801 = vmatpush1.bf16.msra.mxu0 0
        %3802 = vmatprep.subr.bf16.mxu0 0
        %3803 = vmatpush1.bf16.msra.mxu0 0
        %3804 = vmatprep.subr.bf16.mxu0 0
        %3805 = vmatpush1.bf16.msra.mxu0 0
        %3806 = vmatprep.subr.bf16.mxu0 0
        %3807 = vmatpush1.bf16.msra.mxu0 0
        %3808 = vmatprep.subr.bf16.mxu0 0
        %3809 = vmatpush1.bf16.msra.mxu0 0
        %3810 = vmatprep.subr.bf16.mxu0 0
        %3811 = vmatpush1.bf16.msra.mxu0 0
        %3812 = vmatprep.subr.bf16.mxu0 0
        %3813 = vmatpush1.bf16.msra.mxu0 0
        %3814 = vmatprep.subr.bf16.mxu0 0
        %3815 = vmatpush1.bf16.msra.mxu0 0
        %3816 = vmatprep.subr.bf16.mxu0 0
        %3817 = vmatpush1.bf16.msra.mxu0 0
        %3818 = vmatprep.subr.bf16.mxu0 0
        %3819 = vmatpush1.bf16.msra.mxu0 0
        %3820 = vmatprep.mubr.bf16.mxu0 0
        %3821 = vmatmul.mubr.bf16.gmra.mrb[0].mxu0 %v3786
        %v3822 = vpop.f32.mrb[0].mxu0
        %v3823 = vadd.f32 %v3759, %v3822
        %v3824 = vpop.f32.mrb[0].mxu0
        %v3825 = vpop.f32.mrb[0].mxu0
        %v3826 = vpop.f32.mrb[0].mxu0
        %3827 = vdwg.mxu0
        %v3828 = vmul.f32 %v3823, 0.5
        %v3829 = vmul.f32 %v3823, 0.70710677
        %v3830 = verf.f32.pop %v3829
        %v3831 = vadd.f32 %v3830, 1.0
        %v3832 = vmul.f32 %v3828, %v3831
        %v3833 = vpack.c.bf16 %v3832, %v3832
        %v3834 = vld [vmem:[%s13] sm:$0xf]
        %v3835 = vld [vmem:[%s13 + $0x4] sm:$0xf]
        %v3836 = vld [vmem:[%s13 + $0x8] sm:$0xf]
        %v3837 = vld [vmem:[%s13 + $0xc] sm:$0xf]
        %v3838 = vld [vmem:[%s13 + $0x10] sm:$0xf]
        %v3839 = vld [vmem:[%s13 + $0x14] sm:$0xf]
        %v3840 = vld [vmem:[%s13 + $0x18] sm:$0xf]
        %v3841 = vld [vmem:[%s13 + $0x1c] sm:$0xf]
        %v3842 = vld [vmem:[%s13 + $0x20] sm:$0xf]
        %v3843 = vld [vmem:[%s13 + $0x24] sm:$0xf]
        %v3844 = vld [vmem:[%s13 + $0x28] sm:$0xf]
        %v3845 = vld [vmem:[%s13 + $0x2c] sm:$0xf]
        %v3846 = vld [vmem:[%s13 + $0x30] sm:$0xf]
        %v3847 = vld [vmem:[%s13 + $0x34] sm:$0xf]
        %v3848 = vld [vmem:[%s13 + $0x38] sm:$0xf]
        %v3849 = vld [vmem:[%s13 + $0x3c] sm:$0xf]
        %v3850 = vlaneseq
        %v3851 = vshrl.u32 %v3850, 7
        %v3852 = vsub.s32 1, %v3851
        %v3853 = vrot.slane %v523, %v3852
        %v3870 = vunpack.c.l.b16 %v3834
        %v3871 = vunpack.c.l.b16 %v3835
        %v3872 = vunpack.c.l.b16 %v3836
        %v3873 = vunpack.c.l.b16 %v3837
        %v3874 = vunpack.c.l.b16 %v3838
        %v3875 = vunpack.c.l.b16 %v3839
        %v3876 = vunpack.c.l.b16 %v3840
        %v3877 = vunpack.c.l.b16 %v3841
        %v3878 = vunpack.c.l.b16 %v3842
        %v3879 = vunpack.c.l.b16 %v3843
        %v3880 = vunpack.c.l.b16 %v3844
        %v3881 = vunpack.c.l.b16 %v3845
        %v3882 = vunpack.c.l.b16 %v3846
        %v3883 = vunpack.c.l.b16 %v3847
        %v3884 = vunpack.c.l.b16 %v3848
        %v3885 = vunpack.c.l.b16 %v3849
        %v3886 = vpack.c.b16 %v3871, %v3870
        %v3887 = vpack.c.b16 %v3873, %v3872
        %v3888 = vpack.c.b16 %v3875, %v3874
        %v3889 = vpack.c.b16 %v3877, %v3876
        %v3890 = vpack.c.b16 %v3879, %v3878
        %v3891 = vpack.c.b16 %v3881, %v3880
        %v3892 = vpack.c.b16 %v3883, %v3882
        %v3893 = vpack.c.b16 %v3885, %v3884
        %3902 = vmatprep.subr.bf16.mxu0 0
        %3903 = vmatpush1.bf16.msra.mxu0 %v3886
        %3904 = vmatprep.subr.bf16.mxu0 0
        %3905 = vmatpush1.bf16.msra.mxu0 %v3887
        %3906 = vmatprep.subr.bf16.mxu0 0
        %3907 = vmatpush1.bf16.msra.mxu0 %v3888
        %3908 = vmatprep.subr.bf16.mxu0 0
        %3909 = vmatpush1.bf16.msra.mxu0 %v3889
        %3910 = vmatprep.subr.bf16.mxu0 0
        %3911 = vmatpush1.bf16.msra.mxu0 %v3890
        %3912 = vmatprep.subr.bf16.mxu0 0
        %3913 = vmatpush1.bf16.msra.mxu0 %v3891
        %3914 = vmatprep.subr.bf16.mxu0 0
        %3915 = vmatpush1.bf16.msra.mxu0 %v3892
        %3916 = vmatprep.subr.bf16.mxu0 0
        %3917 = vmatpush1.bf16.msra.mxu0 %v3893
        %3918 = vmatprep.subr.bf16.mxu0 0
        %3919 = vmatpush1.bf16.msra.mxu0 0
        %3920 = vmatprep.subr.bf16.mxu0 0
        %3921 = vmatpush1.bf16.msra.mxu0 0
        %3922 = vmatprep.subr.bf16.mxu0 0
        %3923 = vmatpush1.bf16.msra.mxu0 0
        %3924 = vmatprep.subr.bf16.mxu0 0
        %3925 = vmatpush1.bf16.msra.mxu0 0
        %3926 = vmatprep.subr.bf16.mxu0 0
        %3927 = vmatpush1.bf16.msra.mxu0 0
        %3928 = vmatprep.subr.bf16.mxu0 0
        %3929 = vmatpush1.bf16.msra.mxu0 0
        %3930 = vmatprep.subr.bf16.mxu0 0
        %3931 = vmatpush1.bf16.msra.mxu0 0
        %3932 = vmatprep.subr.bf16.mxu0 0
        %3933 = vmatpush1.bf16.msra.mxu0 0
        %3934 = vmatprep.mubr.bf16.mxu0 0
        %3935 = vmatmul.mubr.bf16.gmra.mrb[0].mxu0 %v3833
        %v3936 = vpop.f32.mrb[0].mxu0
        %v3937 = vadd.f32 %v3853, %v3936
        %v3938 = vpop.f32.mrb[0].mxu0
        %v3939 = vpop.f32.mrb[0].mxu0
        %v3940 = vpop.f32.mrb[0].mxu0
        %3941 = vdwg.mxu0
        %v3942 = vlaneseq
        %v3943 = vshrl.u32 %v3942, 7
        %v3944 = vsub.s32 6, %v3943
        %v3945 = vrot.slane %v522, %v3944
        %v3946 = vmul.f32 %v3937, %v3945
        %v3947 = vlaneseq
        %v3948 = vshrl.u32 %v3947, 7
        %v3949 = vsub.s32 7, %v3948
        %v3950 = vrot.slane %v522, %v3949
        %v3951 = vadd.f32 %v3946, %v3950
        %v3952 = vadd.f32 %v3711, %v3951
        %v3953 = vld [vmem:[%s1 + $0x1] sm:$0x1]
        %v3954 = vld [vmem:[%s1 + $0x2] sm:$0x1]
        %v3955 = vsel %vm524, %v3952, 0.0
        %3956 = vadd.xlane.f32.xlu0 %v3955
        %v3957 = vpop.xlane.xlu0 %3956
        %v3958 = vmul.f32 %v3957, %v528
        %v3959 = vsub.f32 %v3952, %v3958
        %v3960 = vmul.f32 %v3959, %v3959
        %v3961 = vsel %vm524, %v3960, 0.0
        %3962 = vadd.xlane.f32.xlu0 %v3961
        %v3963 = vpop.xlane.xlu0 %3962
        %v3964 = vmul.f32 %v3963, %v528
        %v3965 = vadd.f32 %v3964, 1e-05
        %v3966 = vrsqrt.pop %v3965
        %v3967 = vmul.f32 %v3959, %v3966
        %v3968 = vlaneseq
        %v3969 = vshrl.u32 %v3968, 7
        %v3970 = vsub.s32 0, %v3969
        %v3971 = vrot.slane %v3953, %v3970
        %v3972 = vmul.f32 %v3967, %v3971
        %v3973 = vlaneseq
        %v3974 = vshrl.u32 %v3973, 7
        %v3975 = vsub.s32 0, %v3974
        %v3976 = vrot.slane %v3954, %v3975
        %v3977 = vadd.f32 %v3972, %v3976
        %v3978 = vld [vmem:[%s1 + $0x3] sm:$0x1]
        %v3979 = vmul.f32 %v3977, %v3978
        %vm3980 = vcmask 516096
        %v3981 = vsel %vm3980, %v3979, 0.0
        %3982 = vadd.xlane.f32.xlu0 %v3981
        %v3983 = vpop.xlane.xlu0 %3982
        %v3984 = vld [vmem:[%s1 + $0x5] sm:$0x1]
        %v3985 = vld [vmem:[%s1 + $0x4] sm:$0x1]
        %v3986 = vlaneseq
        %v3987 = vshrl.u32 %v3986, 7
        %v3988 = vsub.s32 0, %v3987
        %v3989 = vrot.slane %v3985, %v3988
        %v3990 = vmul.f32 %v3977, %v3989
        %v3991 = vsel %vm524, %v3990, 0.0
        %3992 = vadd.xlane.f32.xlu0 %v3991
        %v3993 = vpop.xlane.xlu0 %3992
        %v3994 = vlaneseq
        %v3995 = vshrl.u32 %v3994, 7
        %v3996 = vsub.s32 0, %v3995
        %v3997 = vrot.slane %v3983, %v3996
        %v3998 = vadd.f32 %v3993, %v3997
        %v3999 = vlaneseq
        %v4000 = vshrl.u32 %v3999, 7
        %v4001 = vsub.s32 0, %v4000
        %v4002 = vrot.slane %v3984, %v4001
        %v4003 = vadd.f32 %v3998, %v4002
        %v4004 = vlaneseq
        %v4005 = vshrl.u32 %v4004, 7
        %vm4006 = vcmp.eq.s32.totalorder %v4005, 0
        %v4007 = vsel %vm4006, -inf, %v4003
        %vm4008 = vcmask 7168
        %v4009 = vsel %vm4008, %v4007, -inf
        %v4010 = vrot.slane %v4009, 4
        %v4011 = vmax.f32 %v4009, %v4010
        %v4012 = vrot.slane %v4011, 2
        %v4013 = vmax.f32 %v4011, %v4012
        %v4014 = vrot.slane %v4013, 1
        %v4015 = vmax.f32 %v4013, %v4014
        %v4016 = vsub.f32 %v4007, %v4015
        %v4017 = vmul.f32 %v4016, 1.442695
        %v4018 = vpow.pop %v4017
        %v4019 = vsel %vm4008, %v4018, 0.0
        %v4020 = vrot.slane %v4019, 4
        %v4021 = vadd.f32 %v4019, %v4020
        %v4022 = vrot.slane %v4021, 2
        %v4023 = vadd.f32 %v4021, %v4022
        %v4024 = vrot.slane %v4023, 1
        %v4025 = vadd.f32 %v4023, %v4024
        %v4026 = vrcp.pop %v4025
        %v4027 = vmul.f32 %v4018, %v4026
        %4029 = vset.pattern.permute.xlu0 0
        %4030 = vperm.xlu0 %4029, %v4027
        %v4031 = vpop.permute.xlu0 %4030
        %v4033 = vmul.f32 %v3977, %v4031
        %v4034 = vsel %vm524, %v4033, 0.0
        %v4035 = vrot.slane %v4034, 4
        %v4036 = vadd.f32 %v4034, %v4035
        %v4037 = vrot.slane %v4036, 2
        %v4038 = vadd.f32 %v4036, %v4037
        %v4039 = vrot.slane %v4038, 1
        %v4040 = vadd.f32 %v4038, %v4039
        %v4041 = vadd.f32 %v3977, %v4040
        %4042 = vst.msk [vmem:[%s457] sm:$0x1] %vm3980, %v4041
        %s4043 = sand.u32 %s335, 1
        %s4044 = scalar_lea.sflag [#allocation3], %s4043
        %s4045 = sand.u32 %s335, 1
        %s4046 = scalar_lea.vmem [#allocation2], %s4045
        // Predicated region
        $region77: #{tpu_custom_call.1} parent=75 // pred_check
          %p4047 = pneg %p345
        $region78: #{tpu_custom_call.1} parent=75 // pred_check_branch
          %4049 = sbr.rel (%p4047) target = $region80
        $region79: #{tpu_custom_call.1} parent=75 // pred_region
          %s4051 = ssub.s32 16, 16
          %4052 = vsyncadd %s4044, %s4051
          %s4053 = smul.addr %s28, 16
          %s4054 = scalar_lea.hbm %s14, %s4053
          %s4056 = sshll.u32 %s4046, 4
          %s4057 = int_to_ptr.vmem [resolvable:$true] %s4056
          %4059 = dma.vmem_to_hbm [thread:$0]  %s4057, 16, %s4054, %s4044
        $region80: #{tpu_custom_call.1} parent=75 // pred_fallthru
          _
      $region76: #{tpu_custom_call.1} parent=5 // pred_fallthru
        _
      %p4060 = scmp.le.s32.totalorder 2, %s23
      // Predicated region
      $region81: #{tpu_custom_call.1} parent=5 // pred_check
        %p4061 = pneg %p4060
      $region82: #{tpu_custom_call.1} parent=5 // pred_check_branch
        %4063 = sbr.rel (%p4061) target = $region84
      $region83: #{tpu_custom_call.1} parent=5 // pred_region
        %s4064 = ssub.s32 %s23, 2
        // Predicated region
        $region85: #{tpu_custom_call.1} parent=83 // pred_check
          %p4065 = pneg %p351
        $region86: #{tpu_custom_call.1} parent=83 // pred_check_branch
          %4067 = sbr.rel (%p4065) target = $region88
        $region87: #{tpu_custom_call.1} parent=83 // pred_region
          %s4068 = sand.u32 %s336, 1
          %s4069 = scalar_lea.sflag [#allocation3], %s4068
          %s4070 = sand.u32 %s336, 1
          %s4071 = scalar_lea.vmem [#allocation2], %s4070
          %4072 = dma.done %s4069, 16
        $region88: #{tpu_custom_call.1} parent=83 // pred_fallthru
          _
      $region84: #{tpu_custom_call.1} parent=5 // pred_fallthru
        _
    $region6: #{tpu_custom_call.1} parent=1 // loop_footer
      %s27 = sadd.s32 1, %s23
    $region7: #{tpu_custom_call.1} parent=1 // loop_footer_branch
      %22 = sbr.rel target = $region3
    $region8: #{tpu_custom_call.1} parent=1 // loop_exit
      _
    %4073 = vsyncpa [#allocation3], 1
    %s4074 = scalar_lea.sflag [#allocation3], 1
    %4075 = vsyncpa %s4074, 1

</llo_original>
